<compile_context>
chip_gen: v7x
topology: tpu7x:2x2x1
jax: 0.10.0
libtpu: 0.0.40
codegen_flags: <defaults>
</compile_context>

<pallas_src>
import functools

import numpy as np

import jax
import jax.numpy as jnp
from jax.experimental import pallas as pl
from jax.experimental.pallas import tpu as pltpu

_EPS = 1e-5
_NEG_SLOPE = 0.2


def _round_up(v, m):
    return (v + m - 1) // m * m


# ----------------------------------------------------------------------------
# Constant "tap" matrices: reflect-pad + stride + conv tap k as a 0/1 matmul.
#   (a @ M_k)[c, t] == x_reflect_pad[c, stride*t + k]   for t < T_out, else 0.
# ----------------------------------------------------------------------------
def _build_taps(T_in, K, stride, L):
    pad = (K - 1) // 2
    assert T_in > pad, "reflection padding requires pad < T"
    T_out = (T_in + 2 * pad - K) // stride + 1
    M = np.zeros((K, L, L), np.float32)
    for k in range(K):
        for t in range(T_out):
            m = stride * t + k          # position in the reflect-padded signal
            q = m - pad
            if q < 0:
                src = -q                # left reflection
            elif q >= T_in:
                src = 2 * (T_in - 1) - q  # right reflection
            else:
                src = q
            M[k, src, t] = 1.0
    return M, T_out


def _prep_weight(w, c_in_p, c_out_p):
    # (C_out, C_in, K) -> zero-padded (K, C_out_p, C_in_p) bf16 (bias dropped).
    C_out, C_in, K = w.shape
    wp = jnp.zeros((K, c_out_p, c_in_p), jnp.float32)
    wp = wp.at[:, :C_out, :C_in].set(jnp.transpose(w, (2, 0, 1)))
    return wp.astype(jnp.bfloat16)


# ----------------------------------------------------------------------------
# Fully fused Pallas kernel: all conv / IN / lrelu / residual layers in one call
# ----------------------------------------------------------------------------
def _make_stack_kernel(cfg, n_layers):
    def kernel(*refs):
        x_ref = refs[0]
        taps_ref = refs[1]
        w_refs = refs[2:2 + n_layers]
        o_ref = refs[2 + n_layers]

        act = x_ref[...].astype(jnp.float32)         # (C_p, L), zero outside valid
        residual = None
        for li, lc in enumerate(cfg):
            if lc["save_residual"]:
                residual = act
            a_bf = act.astype(jnp.bfloat16)
            y = None
            for k in range(lc["K"]):
                # Gather (reflect pad + stride + tap shift) as a 0/1 matmul;
                # columns >= T_out come out exactly zero (no bias).
                g = jnp.dot(a_bf, taps_ref[li, k, :, :],
                            preferred_element_type=jnp.float32)
                g = g.astype(jnp.bfloat16)           # exact: values already bf16
                part = jnp.dot(w_refs[li][k], g,
                               preferred_element_type=jnp.float32)
                y = part if y is None else y + part

            # InstanceNorm1d (affine=False) over the valid T_out columns.
            # Invalid columns of y are exactly zero, so plain lane sums with the
            # static divisor T_out give the correct statistics (single pass).
            inv_t = 1.0 / float(lc["T_out"])
            mean = jnp.sum(y, axis=-1, keepdims=True) * inv_t
            ex2 = jnp.sum(y * y, axis=-1, keepdims=True) * inv_t
            var = ex2 - mean * mean
            y = (y - mean) * jax.lax.rsqrt(var + _EPS)
            if lc["apply_act"]:
                y = jnp.where(y >= 0, y, _NEG_SLOPE * y)
            if lc["add_residual"]:
                y = y + residual
                residual = None
            act = y

        o_ref[...] = act.astype(o_ref.dtype)

    return kernel


# ----------------------------------------------------------------------------
# EncoderContent forward (single pallas_call over the whole stack)
# ----------------------------------------------------------------------------
def encoder_content_forward(x, params, *, stride):
    N, C0, T0 = x.shape
    L = max(128, _round_up(T0, 128))   # lane-dense time axis

    cfg, w_list, taps_list = [], [], []
    T = T0
    C_in, C_in_p = C0, _round_up(C0, 8)

    def add_layer(w, layer_stride, apply_act, save_residual, add_residual):
        nonlocal T, C_in, C_in_p
        C_out, _, K = w.shape
        C_out_p = _round_up(C_out, 8)
        taps, T_out = _build_taps(T, K, layer_stride, L)
        taps_list.append(taps)
        w_list.append(_prep_weight(w, C_in_p, C_out_p))
        cfg.append(dict(K=K, T_out=T_out, apply_act=apply_act,
                        save_residual=save_residual, add_residual=add_residual))
        T, C_in, C_in_p = T_out, C_out, C_out_p

    # Downsampling ConvBlocks (bias intentionally dropped: IN cancels it).
    for (w, _b) in params["down"]:
        add_layer(w, stride, True, False, False)
    # ResBlocks: conv/IN/lrelu -> conv/IN, then residual add.
    for (w1, _b1, w2, _b2) in params["res"]:
        add_layer(w1, 1, True, True, False)
        add_layer(w2, 1, False, False, True)

    n_layers = len(cfg)
    K = cfg[0]["K"]
    taps = jnp.asarray(np.stack(taps_list, axis=0), dtype=jnp.bfloat16)  # (n_layers,K,L,L)

    # Zero-pad input to (N, C0_p, L): padded rows/lanes stay provably inert.
    C0_p = _round_up(C0, 8)
    x_pad = jnp.zeros((N, C0_p, L), jnp.float32).at[:, :C0, :T0].set(x)

    in_specs = [
        pl.BlockSpec((None, C0_p, L), lambda n: (n, 0, 0)),
        pl.BlockSpec((n_layers, K, L, L), lambda n: (0, 0, 0, 0)),
    ] + [pl.BlockSpec(w.shape, lambda n: (0, 0, 0)) for w in w_list]

    out = pl.pallas_call(
        _make_stack_kernel(cfg, n_layers),
        out_shape=jax.ShapeDtypeStruct((N, C_in_p, L), jnp.float32),
        grid=(N,),
        in_specs=in_specs,
        out_specs=pl.BlockSpec((None, C_in_p, L), lambda n: (n, 0, 0)),
        compiler_params=pltpu.CompilerParams(
            dimension_semantics=("parallel",),
            vmem_limit_bytes=32 * 1024 * 1024,
        ),
    )(x_pad, taps, *w_list)

    return out[:, :C_in, :T]


# ----------------------------------------------------------------------------
# Pure-JAX reference (faithful to PyTorch, keeps the conv bias)
# ----------------------------------------------------------------------------
def _ref_block(x, w, b, stride, apply_act):
    pad = (w.shape[-1] - 1) // 2
    x_pad = jnp.pad(x, ((0, 0), (0, 0), (pad, pad)), mode="reflect")
    y = jax.lax.conv_general_dilated(
        x_pad, w, (stride,), "VALID", dimension_numbers=("NCH", "OIH", "NCH")
    )
    y = y + b[None, :, None]
    mean = jnp.mean(y, axis=-1, keepdims=True)
    var = jnp.mean(jnp.square(y - mean), axis=-1, keepdims=True)
    y = (y - mean) * jax.lax.rsqrt(var + _EPS)
    if apply_act:
        y = jnp.where(y >= 0, y, _NEG_SLOPE * y)
    return y


def encoder_content_reference(x, params, *, stride):
    for (w, b) in params["down"]:
        x = _ref_block(x, w, b, stride, True)
    for (w1, b1, w2, b2) in params["res"]:
        h = _ref_block(x, w1, b1, 1, True)
        x = _ref_block(h, w2, b2, 1, False) + x
    return x


# ----------------------------------------------------------------------------
# Deterministic parameter init (mimics PyTorch Conv1d default uniform init)
# ----------------------------------------------------------------------------
def _init_conv(key, c_out, c_in, k):
    kw, kb = jax.random.split(key)
    bound = 1.0 / jnp.sqrt(float(c_in * k))
    w = jax.random.uniform(kw, (c_out, c_in, k), jnp.float32, -bound, bound)
    b = jax.random.uniform(kb, (c_out,), jnp.float32, -bound, bound)
    return w, b


def make_params(key, channels, kernel_size, n_resblk):
    n_convs = len(channels) - 1
    keys = jax.random.split(key, n_convs + 2 * n_resblk)
    down, res = [], []
    ki = 0
    for i in range(n_convs):
        down.append(_init_conv(keys[ki], channels[i + 1], channels[i], kernel_size))
        ki += 1
    c = channels[-1]
    for _ in range(n_resblk):
        w1, b1 = _init_conv(keys[ki], c, c, kernel_size); ki += 1
        w2, b2 = _init_conv(keys[ki], c, c, kernel_size); ki += 1
        res.append((w1, b1, w2, b2))
    return {"down": down, "res": res}


if __name__ == "__main__":
    # Small synthetic config (enc_co_channels / kernel_size / stride / down_n / resblks)
    channels = [4, 8, 16]
    kernel_size = 3
    stride = 2
    n_resblk = 2

    key = jax.random.PRNGKey(0)
    k_params, k_x = jax.random.split(key)
    params = make_params(k_params, channels, kernel_size, n_resblk)

    # Input: (N, C, T) = (2, 4, 16)
    x = jax.random.normal(k_x, (2, channels[0], 16), jnp.float32)

    out = jax.block_until_ready(encoder_content_forward(x, params, stride=stride))
    ref = jax.block_until_ready(encoder_content_reference(x, params, stride=stride))

    assert out.shape == ref.shape == (2, channels[-1], 4), out.shape
    # bf16 matmul operands in the kernel (f32 accumulation / IN math), so the
    # check is a relative-Frobenius error rather than a tight elementwise atol.
    rel_err = float(jnp.sqrt(jnp.sum((out - ref) ** 2) / jnp.sum(ref ** 2)))
    assert rel_err < 5e-2, rel_err
    print("KERNEL_OK")
</pallas_src>

<mosaic_0001>
module attributes {stable_mosaic.version = 11 : i64} {
  func.func @kernel(%arg0: i32, %arg1: memref<1x8x128xf32, #tpu.memory_space<vmem>>, %arg2: memref<6x3x128x128xbf16, #tpu.memory_space<vmem>>, %arg3: memref<3x8x8xbf16, #tpu.memory_space<vmem>>, %arg4: memref<3x16x8xbf16, #tpu.memory_space<vmem>>, %arg5: memref<3x16x16xbf16, #tpu.memory_space<vmem>>, %arg6: memref<3x16x16xbf16, #tpu.memory_space<vmem>>, %arg7: memref<3x16x16xbf16, #tpu.memory_space<vmem>>, %arg8: memref<3x16x16xbf16, #tpu.memory_space<vmem>>, %arg9: memref<1x16x128xf32, #tpu.memory_space<vmem>>) attributes {dimension_semantics = [#tpu.dimension_semantics<parallel>], iteration_bounds = array<i64: 2>, scalar_prefetch = 0 : i64, scratch_operands = 0 : i64, tpu.core_type = #tpu.core_type<tc>, window_params = [{transform_indices = @transform_0, window_bounds = array<i64: 1, 8, 128>}, {pipeline_mode = #tpu.pipeline_mode<synchronous>, transform_indices = @transform_1, window_bounds = array<i64: 6, 3, 128, 128>}, {pipeline_mode = #tpu.pipeline_mode<synchronous>, transform_indices = @transform_2, window_bounds = array<i64: 3, 8, 8>}, {pipeline_mode = #tpu.pipeline_mode<synchronous>, transform_indices = @transform_3, window_bounds = array<i64: 3, 16, 8>}, {pipeline_mode = #tpu.pipeline_mode<synchronous>, transform_indices = @transform_4, window_bounds = array<i64: 3, 16, 16>}, {pipeline_mode = #tpu.pipeline_mode<synchronous>, transform_indices = @transform_5, window_bounds = array<i64: 3, 16, 16>}, {pipeline_mode = #tpu.pipeline_mode<synchronous>, transform_indices = @transform_6, window_bounds = array<i64: 3, 16, 16>}, {pipeline_mode = #tpu.pipeline_mode<synchronous>, transform_indices = @transform_7, window_bounds = array<i64: 3, 16, 16>}, {transform_indices = @transform_8, window_bounds = array<i64: 1, 16, 128>}]} {
    %c0 = arith.constant 0 : index
    %c0_0 = arith.constant 0 : index
    %c0_1 = arith.constant 0 : index
    %0 = vector.load %arg1[%c0, %c0_0, %c0_1] : memref<1x8x128xf32, #tpu.memory_space<vmem>>, vector<1x8x128xf32>
    %1 = vector.shape_cast %0 : vector<1x8x128xf32> to vector<8x128xf32>
    %2 = arith.truncf %1 : vector<8x128xf32> to vector<8x128xbf16>
    %c0_2 = arith.constant 0 : index
    %c0_3 = arith.constant 0 : index
    %c0_4 = arith.constant 0 : index
    %c0_5 = arith.constant 0 : index
    %3 = vector.load %arg2[%c0_2, %c0_3, %c0_4, %c0_5] : memref<6x3x128x128xbf16, #tpu.memory_space<vmem>>, vector<1x1x128x128xbf16>
    %4 = vector.shape_cast %3 : vector<1x1x128x128xbf16> to vector<128x128xbf16>
    %cst = arith.constant dense<0.000000e+00> : vector<8x128xf32>
    %5 = tpu.matmul %2, %4, %cst {dimension_numbers = #tpu.dot_dimension_numbers<[1], [0], [0], [1], [0, 0, 1, 1], [], []>} : vector<8x128xbf16>, vector<128x128xbf16>, vector<8x128xf32> -> vector<8x128xf32>
    %6 = arith.truncf %5 : vector<8x128xf32> to vector<8x128xbf16>
    %c0_6 = arith.constant 0 : index
    %c0_7 = arith.constant 0 : index
    %c0_8 = arith.constant 0 : index
    %7 = vector.load %arg3[%c0_6, %c0_7, %c0_8] : memref<3x8x8xbf16, #tpu.memory_space<vmem>>, vector<1x8x8xbf16>
    %8 = vector.shape_cast %7 : vector<1x8x8xbf16> to vector<8x8xbf16>
    %cst_9 = arith.constant dense<0.000000e+00> : vector<8x128xf32>
    %9 = tpu.matmul %8, %6, %cst_9 {dimension_numbers = #tpu.dot_dimension_numbers<[1], [0], [0], [1], [0, 0, 1, 1], [], []>} : vector<8x8xbf16>, vector<8x128xbf16>, vector<8x128xf32> -> vector<8x128xf32>
    %c0_10 = arith.constant 0 : index
    %c1 = arith.constant 1 : index
    %c0_11 = arith.constant 0 : index
    %c0_12 = arith.constant 0 : index
    %10 = vector.load %arg2[%c0_10, %c1, %c0_11, %c0_12] : memref<6x3x128x128xbf16, #tpu.memory_space<vmem>>, vector<1x1x128x128xbf16>
    %11 = vector.shape_cast %10 : vector<1x1x128x128xbf16> to vector<128x128xbf16>
    %cst_13 = arith.constant dense<0.000000e+00> : vector<8x128xf32>
    %12 = tpu.matmul %2, %11, %cst_13 {dimension_numbers = #tpu.dot_dimension_numbers<[1], [0], [0], [1], [0, 0, 1, 1], [], []>} : vector<8x128xbf16>, vector<128x128xbf16>, vector<8x128xf32> -> vector<8x128xf32>
    %13 = arith.truncf %12 : vector<8x128xf32> to vector<8x128xbf16>
    %c1_14 = arith.constant 1 : index
    %c0_15 = arith.constant 0 : index
    %c0_16 = arith.constant 0 : index
    %14 = vector.load %arg3[%c1_14, %c0_15, %c0_16] : memref<3x8x8xbf16, #tpu.memory_space<vmem>>, vector<1x8x8xbf16>
    %15 = vector.shape_cast %14 : vector<1x8x8xbf16> to vector<8x8xbf16>
    %cst_17 = arith.constant dense<0.000000e+00> : vector<8x128xf32>
    %16 = tpu.matmul %15, %13, %cst_17 {dimension_numbers = #tpu.dot_dimension_numbers<[1], [0], [0], [1], [0, 0, 1, 1], [], []>} : vector<8x8xbf16>, vector<8x128xbf16>, vector<8x128xf32> -> vector<8x128xf32>
    %17 = arith.addf %9, %16 : vector<8x128xf32>
    %c0_18 = arith.constant 0 : index
    %c2 = arith.constant 2 : index
    %c0_19 = arith.constant 0 : index
    %c0_20 = arith.constant 0 : index
    %18 = vector.load %arg2[%c0_18, %c2, %c0_19, %c0_20] : memref<6x3x128x128xbf16, #tpu.memory_space<vmem>>, vector<1x1x128x128xbf16>
    %19 = vector.shape_cast %18 : vector<1x1x128x128xbf16> to vector<128x128xbf16>
    %cst_21 = arith.constant dense<0.000000e+00> : vector<8x128xf32>
    %20 = tpu.matmul %2, %19, %cst_21 {dimension_numbers = #tpu.dot_dimension_numbers<[1], [0], [0], [1], [0, 0, 1, 1], [], []>} : vector<8x128xbf16>, vector<128x128xbf16>, vector<8x128xf32> -> vector<8x128xf32>
    %21 = arith.truncf %20 : vector<8x128xf32> to vector<8x128xbf16>
    %c2_22 = arith.constant 2 : index
    %c0_23 = arith.constant 0 : index
    %c0_24 = arith.constant 0 : index
    %22 = vector.load %arg3[%c2_22, %c0_23, %c0_24] : memref<3x8x8xbf16, #tpu.memory_space<vmem>>, vector<1x8x8xbf16>
    %23 = vector.shape_cast %22 : vector<1x8x8xbf16> to vector<8x8xbf16>
    %cst_25 = arith.constant dense<0.000000e+00> : vector<8x128xf32>
    %24 = tpu.matmul %23, %21, %cst_25 {dimension_numbers = #tpu.dot_dimension_numbers<[1], [0], [0], [1], [0, 0, 1, 1], [], []>} : vector<8x8xbf16>, vector<8x128xbf16>, vector<8x128xf32> -> vector<8x128xf32>
    %25 = arith.addf %17, %24 : vector<8x128xf32>
    %cst_26 = arith.constant dense<0.000000e+00> : vector<8xf32>
    %26 = vector.multi_reduction <add>, %25, %cst_26 [1] : vector<8x128xf32> to vector<8xf32>
    %27 = vector.shape_cast %26 : vector<8xf32> to vector<8x1xf32>
    %cst_27 = arith.constant 1.250000e-01 : f32
    %28 = vector.broadcast %cst_27 : f32 to vector<8x1xf32>
    %29 = arith.mulf %27, %28 : vector<8x1xf32>
    %30 = arith.mulf %25, %25 : vector<8x128xf32>
    %cst_28 = arith.constant dense<0.000000e+00> : vector<8xf32>
    %31 = vector.multi_reduction <add>, %30, %cst_28 [1] : vector<8x128xf32> to vector<8xf32>
    %32 = vector.shape_cast %31 : vector<8xf32> to vector<8x1xf32>
    %cst_29 = arith.constant 1.250000e-01 : f32
    %33 = vector.broadcast %cst_29 : f32 to vector<8x1xf32>
    %34 = arith.mulf %32, %33 : vector<8x1xf32>
    %35 = arith.mulf %29, %29 : vector<8x1xf32>
    %36 = arith.subf %34, %35 : vector<8x1xf32>
    %37 = vector.broadcast %29 : vector<8x1xf32> to vector<8x128xf32>
    %38 = arith.subf %25, %37 : vector<8x128xf32>
    %cst_30 = arith.constant 9.99999974E-6 : f32
    %39 = vector.broadcast %cst_30 : f32 to vector<8x1xf32>
    %40 = arith.addf %36, %39 : vector<8x1xf32>
    %41 = math.rsqrt %40 : vector<8x1xf32>
    %42 = vector.broadcast %41 : vector<8x1xf32> to vector<8x128xf32>
    %43 = arith.mulf %38, %42 : vector<8x128xf32>
    %cst_31 = arith.constant 0.000000e+00 : f32
    %44 = vector.broadcast %cst_31 : f32 to vector<8x128xf32>
    %45 = arith.cmpf oge, %43, %44 : vector<8x128xf32>
    %cst_32 = arith.constant 2.000000e-01 : f32
    %46 = vector.broadcast %cst_32 : f32 to vector<8x128xf32>
    %47 = arith.mulf %46, %43 : vector<8x128xf32>
    %48 = arith.select %45, %43, %47 : vector<8x128xi1>, vector<8x128xf32>
    %49 = arith.truncf %48 : vector<8x128xf32> to vector<8x128xbf16>
    %c1_33 = arith.constant 1 : index
    %c0_34 = arith.constant 0 : index
    %c0_35 = arith.constant 0 : index
    %c0_36 = arith.constant 0 : index
    %50 = vector.load %arg2[%c1_33, %c0_34, %c0_35, %c0_36] : memref<6x3x128x128xbf16, #tpu.memory_space<vmem>>, vector<1x1x128x128xbf16>
    %51 = vector.shape_cast %50 : vector<1x1x128x128xbf16> to vector<128x128xbf16>
    %cst_37 = arith.constant dense<0.000000e+00> : vector<8x128xf32>
    %52 = tpu.matmul %49, %51, %cst_37 {dimension_numbers = #tpu.dot_dimension_numbers<[1], [0], [0], [1], [0, 0, 1, 1], [], []>} : vector<8x128xbf16>, vector<128x128xbf16>, vector<8x128xf32> -> vector<8x128xf32>
    %53 = arith.truncf %52 : vector<8x128xf32> to vector<8x128xbf16>
    %c0_38 = arith.constant 0 : index
    %c0_39 = arith.constant 0 : index
    %c0_40 = arith.constant 0 : index
    %54 = vector.load %arg4[%c0_38, %c0_39, %c0_40] : memref<3x16x8xbf16, #tpu.memory_space<vmem>>, vector<1x16x8xbf16>
    %55 = vector.shape_cast %54 : vector<1x16x8xbf16> to vector<16x8xbf16>
    %cst_41 = arith.constant dense<0.000000e+00> : vector<16x128xf32>
    %56 = tpu.matmul %55, %53, %cst_41 {dimension_numbers = #tpu.dot_dimension_numbers<[1], [0], [0], [1], [0, 0, 1, 1], [], []>} : vector<16x8xbf16>, vector<8x128xbf16>, vector<16x128xf32> -> vector<16x128xf32>
    %c1_42 = arith.constant 1 : index
    %c1_43 = arith.constant 1 : index
    %c0_44 = arith.constant 0 : index
    %c0_45 = arith.constant 0 : index
    %57 = vector.load %arg2[%c1_42, %c1_43, %c0_44, %c0_45] : memref<6x3x128x128xbf16, #tpu.memory_space<vmem>>, vector<1x1x128x128xbf16>
    %58 = vector.shape_cast %57 : vector<1x1x128x128xbf16> to vector<128x128xbf16>
    %cst_46 = arith.constant dense<0.000000e+00> : vector<8x128xf32>
    %59 = tpu.matmul %49, %58, %cst_46 {dimension_numbers = #tpu.dot_dimension_numbers<[1], [0], [0], [1], [0, 0, 1, 1], [], []>} : vector<8x128xbf16>, vector<128x128xbf16>, vector<8x128xf32> -> vector<8x128xf32>
    %60 = arith.truncf %59 : vector<8x128xf32> to vector<8x128xbf16>
    %c1_47 = arith.constant 1 : index
    %c0_48 = arith.constant 0 : index
    %c0_49 = arith.constant 0 : index
    %61 = vector.load %arg4[%c1_47, %c0_48, %c0_49] : memref<3x16x8xbf16, #tpu.memory_space<vmem>>, vector<1x16x8xbf16>
    %62 = vector.shape_cast %61 : vector<1x16x8xbf16> to vector<16x8xbf16>
    %cst_50 = arith.constant dense<0.000000e+00> : vector<16x128xf32>
    %63 = tpu.matmul %62, %60, %cst_50 {dimension_numbers = #tpu.dot_dimension_numbers<[1], [0], [0], [1], [0, 0, 1, 1], [], []>} : vector<16x8xbf16>, vector<8x128xbf16>, vector<16x128xf32> -> vector<16x128xf32>
    %64 = arith.addf %56, %63 : vector<16x128xf32>
    %c1_51 = arith.constant 1 : index
    %c2_52 = arith.constant 2 : index
    %c0_53 = arith.constant 0 : index
    %c0_54 = arith.constant 0 : index
    %65 = vector.load %arg2[%c1_51, %c2_52, %c0_53, %c0_54] : memref<6x3x128x128xbf16, #tpu.memory_space<vmem>>, vector<1x1x128x128xbf16>
    %66 = vector.shape_cast %65 : vector<1x1x128x128xbf16> to vector<128x128xbf16>
    %cst_55 = arith.constant dense<0.000000e+00> : vector<8x128xf32>
    %67 = tpu.matmul %49, %66, %cst_55 {dimension_numbers = #tpu.dot_dimension_numbers<[1], [0], [0], [1], [0, 0, 1, 1], [], []>} : vector<8x128xbf16>, vector<128x128xbf16>, vector<8x128xf32> -> vector<8x128xf32>
    %68 = arith.truncf %67 : vector<8x128xf32> to vector<8x128xbf16>
    %c2_56 = arith.constant 2 : index
    %c0_57 = arith.constant 0 : index
    %c0_58 = arith.constant 0 : index
    %69 = vector.load %arg4[%c2_56, %c0_57, %c0_58] : memref<3x16x8xbf16, #tpu.memory_space<vmem>>, vector<1x16x8xbf16>
    %70 = vector.shape_cast %69 : vector<1x16x8xbf16> to vector<16x8xbf16>
    %cst_59 = arith.constant dense<0.000000e+00> : vector<16x128xf32>
    %71 = tpu.matmul %70, %68, %cst_59 {dimension_numbers = #tpu.dot_dimension_numbers<[1], [0], [0], [1], [0, 0, 1, 1], [], []>} : vector<16x8xbf16>, vector<8x128xbf16>, vector<16x128xf32> -> vector<16x128xf32>
    %72 = arith.addf %64, %71 : vector<16x128xf32>
    %cst_60 = arith.constant dense<0.000000e+00> : vector<16xf32>
    %73 = vector.multi_reduction <add>, %72, %cst_60 [1] : vector<16x128xf32> to vector<16xf32>
    %74 = vector.shape_cast %73 : vector<16xf32> to vector<16x1xf32>
    %cst_61 = arith.constant 2.500000e-01 : f32
    %75 = vector.broadcast %cst_61 : f32 to vector<16x1xf32>
    %76 = arith.mulf %74, %75 : vector<16x1xf32>
    %77 = arith.mulf %72, %72 : vector<16x128xf32>
    %cst_62 = arith.constant dense<0.000000e+00> : vector<16xf32>
    %78 = vector.multi_reduction <add>, %77, %cst_62 [1] : vector<16x128xf32> to vector<16xf32>
    %79 = vector.shape_cast %78 : vector<16xf32> to vector<16x1xf32>
    %cst_63 = arith.constant 2.500000e-01 : f32
    %80 = vector.broadcast %cst_63 : f32 to vector<16x1xf32>
    %81 = arith.mulf %79, %80 : vector<16x1xf32>
    %82 = arith.mulf %76, %76 : vector<16x1xf32>
    %83 = arith.subf %81, %82 : vector<16x1xf32>
    %84 = vector.broadcast %76 : vector<16x1xf32> to vector<16x128xf32>
    %85 = arith.subf %72, %84 : vector<16x128xf32>
    %cst_64 = arith.constant 9.99999974E-6 : f32
    %86 = vector.broadcast %cst_64 : f32 to vector<16x1xf32>
    %87 = arith.addf %83, %86 : vector<16x1xf32>
    %88 = math.rsqrt %87 : vector<16x1xf32>
    %89 = vector.broadcast %88 : vector<16x1xf32> to vector<16x128xf32>
    %90 = arith.mulf %85, %89 : vector<16x128xf32>
    %cst_65 = arith.constant 0.000000e+00 : f32
    %91 = vector.broadcast %cst_65 : f32 to vector<16x128xf32>
    %92 = arith.cmpf oge, %90, %91 : vector<16x128xf32>
    %cst_66 = arith.constant 2.000000e-01 : f32
    %93 = vector.broadcast %cst_66 : f32 to vector<16x128xf32>
    %94 = arith.mulf %93, %90 : vector<16x128xf32>
    %95 = arith.select %92, %90, %94 : vector<16x128xi1>, vector<16x128xf32>
    %96 = arith.truncf %95 : vector<16x128xf32> to vector<16x128xbf16>
    %c2_67 = arith.constant 2 : index
    %c0_68 = arith.constant 0 : index
    %c0_69 = arith.constant 0 : index
    %c0_70 = arith.constant 0 : index
    %97 = vector.load %arg2[%c2_67, %c0_68, %c0_69, %c0_70] : memref<6x3x128x128xbf16, #tpu.memory_space<vmem>>, vector<1x1x128x128xbf16>
    %98 = vector.shape_cast %97 : vector<1x1x128x128xbf16> to vector<128x128xbf16>
    %cst_71 = arith.constant dense<0.000000e+00> : vector<16x128xf32>
    %99 = tpu.matmul %96, %98, %cst_71 {dimension_numbers = #tpu.dot_dimension_numbers<[1], [0], [0], [1], [0, 0, 1, 1], [], []>} : vector<16x128xbf16>, vector<128x128xbf16>, vector<16x128xf32> -> vector<16x128xf32>
    %100 = arith.truncf %99 : vector<16x128xf32> to vector<16x128xbf16>
    %c0_72 = arith.constant 0 : index
    %c0_73 = arith.constant 0 : index
    %c0_74 = arith.constant 0 : index
    %101 = vector.load %arg5[%c0_72, %c0_73, %c0_74] : memref<3x16x16xbf16, #tpu.memory_space<vmem>>, vector<1x16x16xbf16>
    %102 = vector.shape_cast %101 : vector<1x16x16xbf16> to vector<16x16xbf16>
    %cst_75 = arith.constant dense<0.000000e+00> : vector<16x128xf32>
    %103 = tpu.matmul %102, %100, %cst_75 {dimension_numbers = #tpu.dot_dimension_numbers<[1], [0], [0], [1], [0, 0, 1, 1], [], []>} : vector<16x16xbf16>, vector<16x128xbf16>, vector<16x128xf32> -> vector<16x128xf32>
    %c2_76 = arith.constant 2 : index
    %c1_77 = arith.constant 1 : index
    %c0_78 = arith.constant 0 : index
    %c0_79 = arith.constant 0 : index
    %104 = vector.load %arg2[%c2_76, %c1_77, %c0_78, %c0_79] : memref<6x3x128x128xbf16, #tpu.memory_space<vmem>>, vector<1x1x128x128xbf16>
    %105 = vector.shape_cast %104 : vector<1x1x128x128xbf16> to vector<128x128xbf16>
    %cst_80 = arith.constant dense<0.000000e+00> : vector<16x128xf32>
    %106 = tpu.matmul %96, %105, %cst_80 {dimension_numbers = #tpu.dot_dimension_numbers<[1], [0], [0], [1], [0, 0, 1, 1], [], []>} : vector<16x128xbf16>, vector<128x128xbf16>, vector<16x128xf32> -> vector<16x128xf32>
    %107 = arith.truncf %106 : vector<16x128xf32> to vector<16x128xbf16>
    %c1_81 = arith.constant 1 : index
    %c0_82 = arith.constant 0 : index
    %c0_83 = arith.constant 0 : index
    %108 = vector.load %arg5[%c1_81, %c0_82, %c0_83] : memref<3x16x16xbf16, #tpu.memory_space<vmem>>, vector<1x16x16xbf16>
    %109 = vector.shape_cast %108 : vector<1x16x16xbf16> to vector<16x16xbf16>
    %cst_84 = arith.constant dense<0.000000e+00> : vector<16x128xf32>
    %110 = tpu.matmul %109, %107, %cst_84 {dimension_numbers = #tpu.dot_dimension_numbers<[1], [0], [0], [1], [0, 0, 1, 1], [], []>} : vector<16x16xbf16>, vector<16x128xbf16>, vector<16x128xf32> -> vector<16x128xf32>
    %111 = arith.addf %103, %110 : vector<16x128xf32>
    %c2_85 = arith.constant 2 : index
    %c2_86 = arith.constant 2 : index
    %c0_87 = arith.constant 0 : index
    %c0_88 = arith.constant 0 : index
    %112 = vector.load %arg2[%c2_85, %c2_86, %c0_87, %c0_88] : memref<6x3x128x128xbf16, #tpu.memory_space<vmem>>, vector<1x1x128x128xbf16>
    %113 = vector.shape_cast %112 : vector<1x1x128x128xbf16> to vector<128x128xbf16>
    %cst_89 = arith.constant dense<0.000000e+00> : vector<16x128xf32>
    %114 = tpu.matmul %96, %113, %cst_89 {dimension_numbers = #tpu.dot_dimension_numbers<[1], [0], [0], [1], [0, 0, 1, 1], [], []>} : vector<16x128xbf16>, vector<128x128xbf16>, vector<16x128xf32> -> vector<16x128xf32>
    %115 = arith.truncf %114 : vector<16x128xf32> to vector<16x128xbf16>
    %c2_90 = arith.constant 2 : index
    %c0_91 = arith.constant 0 : index
    %c0_92 = arith.constant 0 : index
    %116 = vector.load %arg5[%c2_90, %c0_91, %c0_92] : memref<3x16x16xbf16, #tpu.memory_space<vmem>>, vector<1x16x16xbf16>
    %117 = vector.shape_cast %116 : vector<1x16x16xbf16> to vector<16x16xbf16>
    %cst_93 = arith.constant dense<0.000000e+00> : vector<16x128xf32>
    %118 = tpu.matmul %117, %115, %cst_93 {dimension_numbers = #tpu.dot_dimension_numbers<[1], [0], [0], [1], [0, 0, 1, 1], [], []>} : vector<16x16xbf16>, vector<16x128xbf16>, vector<16x128xf32> -> vector<16x128xf32>
    %119 = arith.addf %111, %118 : vector<16x128xf32>
    %cst_94 = arith.constant dense<0.000000e+00> : vector<16xf32>
    %120 = vector.multi_reduction <add>, %119, %cst_94 [1] : vector<16x128xf32> to vector<16xf32>
    %121 = vector.shape_cast %120 : vector<16xf32> to vector<16x1xf32>
    %cst_95 = arith.constant 2.500000e-01 : f32
    %122 = vector.broadcast %cst_95 : f32 to vector<16x1xf32>
    %123 = arith.mulf %121, %122 : vector<16x1xf32>
    %124 = arith.mulf %119, %119 : vector<16x128xf32>
    %cst_96 = arith.constant dense<0.000000e+00> : vector<16xf32>
    %125 = vector.multi_reduction <add>, %124, %cst_96 [1] : vector<16x128xf32> to vector<16xf32>
    %126 = vector.shape_cast %125 : vector<16xf32> to vector<16x1xf32>
    %cst_97 = arith.constant 2.500000e-01 : f32
    %127 = vector.broadcast %cst_97 : f32 to vector<16x1xf32>
    %128 = arith.mulf %126, %127 : vector<16x1xf32>
    %129 = arith.mulf %123, %123 : vector<16x1xf32>
    %130 = arith.subf %128, %129 : vector<16x1xf32>
    %131 = vector.broadcast %123 : vector<16x1xf32> to vector<16x128xf32>
    %132 = arith.subf %119, %131 : vector<16x128xf32>
    %cst_98 = arith.constant 9.99999974E-6 : f32
    %133 = vector.broadcast %cst_98 : f32 to vector<16x1xf32>
    %134 = arith.addf %130, %133 : vector<16x1xf32>
    %135 = math.rsqrt %134 : vector<16x1xf32>
    %136 = vector.broadcast %135 : vector<16x1xf32> to vector<16x128xf32>
    %137 = arith.mulf %132, %136 : vector<16x128xf32>
    %cst_99 = arith.constant 0.000000e+00 : f32
    %138 = vector.broadcast %cst_99 : f32 to vector<16x128xf32>
    %139 = arith.cmpf oge, %137, %138 : vector<16x128xf32>
    %cst_100 = arith.constant 2.000000e-01 : f32
    %140 = vector.broadcast %cst_100 : f32 to vector<16x128xf32>
    %141 = arith.mulf %140, %137 : vector<16x128xf32>
    %142 = arith.select %139, %137, %141 : vector<16x128xi1>, vector<16x128xf32>
    %143 = arith.truncf %142 : vector<16x128xf32> to vector<16x128xbf16>
    %c3 = arith.constant 3 : index
    %c0_101 = arith.constant 0 : index
    %c0_102 = arith.constant 0 : index
    %c0_103 = arith.constant 0 : index
    %144 = vector.load %arg2[%c3, %c0_101, %c0_102, %c0_103] : memref<6x3x128x128xbf16, #tpu.memory_space<vmem>>, vector<1x1x128x128xbf16>
    %145 = vector.shape_cast %144 : vector<1x1x128x128xbf16> to vector<128x128xbf16>
    %cst_104 = arith.constant dense<0.000000e+00> : vector<16x128xf32>
    %146 = tpu.matmul %143, %145, %cst_104 {dimension_numbers = #tpu.dot_dimension_numbers<[1], [0], [0], [1], [0, 0, 1, 1], [], []>} : vector<16x128xbf16>, vector<128x128xbf16>, vector<16x128xf32> -> vector<16x128xf32>
    %147 = arith.truncf %146 : vector<16x128xf32> to vector<16x128xbf16>
    %c0_105 = arith.constant 0 : index
    %c0_106 = arith.constant 0 : index
    %c0_107 = arith.constant 0 : index
    %148 = vector.load %arg6[%c0_105, %c0_106, %c0_107] : memref<3x16x16xbf16, #tpu.memory_space<vmem>>, vector<1x16x16xbf16>
    %149 = vector.shape_cast %148 : vector<1x16x16xbf16> to vector<16x16xbf16>
    %cst_108 = arith.constant dense<0.000000e+00> : vector<16x128xf32>
    %150 = tpu.matmul %149, %147, %cst_108 {dimension_numbers = #tpu.dot_dimension_numbers<[1], [0], [0], [1], [0, 0, 1, 1], [], []>} : vector<16x16xbf16>, vector<16x128xbf16>, vector<16x128xf32> -> vector<16x128xf32>
    %c3_109 = arith.constant 3 : index
    %c1_110 = arith.constant 1 : index
    %c0_111 = arith.constant 0 : index
    %c0_112 = arith.constant 0 : index
    %151 = vector.load %arg2[%c3_109, %c1_110, %c0_111, %c0_112] : memref<6x3x128x128xbf16, #tpu.memory_space<vmem>>, vector<1x1x128x128xbf16>
    %152 = vector.shape_cast %151 : vector<1x1x128x128xbf16> to vector<128x128xbf16>
    %cst_113 = arith.constant dense<0.000000e+00> : vector<16x128xf32>
    %153 = tpu.matmul %143, %152, %cst_113 {dimension_numbers = #tpu.dot_dimension_numbers<[1], [0], [0], [1], [0, 0, 1, 1], [], []>} : vector<16x128xbf16>, vector<128x128xbf16>, vector<16x128xf32> -> vector<16x128xf32>
    %154 = arith.truncf %153 : vector<16x128xf32> to vector<16x128xbf16>
    %c1_114 = arith.constant 1 : index
    %c0_115 = arith.constant 0 : index
    %c0_116 = arith.constant 0 : index
    %155 = vector.load %arg6[%c1_114, %c0_115, %c0_116] : memref<3x16x16xbf16, #tpu.memory_space<vmem>>, vector<1x16x16xbf16>
    %156 = vector.shape_cast %155 : vector<1x16x16xbf16> to vector<16x16xbf16>
    %cst_117 = arith.constant dense<0.000000e+00> : vector<16x128xf32>
    %157 = tpu.matmul %156, %154, %cst_117 {dimension_numbers = #tpu.dot_dimension_numbers<[1], [0], [0], [1], [0, 0, 1, 1], [], []>} : vector<16x16xbf16>, vector<16x128xbf16>, vector<16x128xf32> -> vector<16x128xf32>
    %158 = arith.addf %150, %157 : vector<16x128xf32>
    %c3_118 = arith.constant 3 : index
    %c2_119 = arith.constant 2 : index
    %c0_120 = arith.constant 0 : index
    %c0_121 = arith.constant 0 : index
    %159 = vector.load %arg2[%c3_118, %c2_119, %c0_120, %c0_121] : memref<6x3x128x128xbf16, #tpu.memory_space<vmem>>, vector<1x1x128x128xbf16>
    %160 = vector.shape_cast %159 : vector<1x1x128x128xbf16> to vector<128x128xbf16>
    %cst_122 = arith.constant dense<0.000000e+00> : vector<16x128xf32>
    %161 = tpu.matmul %143, %160, %cst_122 {dimension_numbers = #tpu.dot_dimension_numbers<[1], [0], [0], [1], [0, 0, 1, 1], [], []>} : vector<16x128xbf16>, vector<128x128xbf16>, vector<16x128xf32> -> vector<16x128xf32>
    %162 = arith.truncf %161 : vector<16x128xf32> to vector<16x128xbf16>
    %c2_123 = arith.constant 2 : index
    %c0_124 = arith.constant 0 : index
    %c0_125 = arith.constant 0 : index
    %163 = vector.load %arg6[%c2_123, %c0_124, %c0_125] : memref<3x16x16xbf16, #tpu.memory_space<vmem>>, vector<1x16x16xbf16>
    %164 = vector.shape_cast %163 : vector<1x16x16xbf16> to vector<16x16xbf16>
    %cst_126 = arith.constant dense<0.000000e+00> : vector<16x128xf32>
    %165 = tpu.matmul %164, %162, %cst_126 {dimension_numbers = #tpu.dot_dimension_numbers<[1], [0], [0], [1], [0, 0, 1, 1], [], []>} : vector<16x16xbf16>, vector<16x128xbf16>, vector<16x128xf32> -> vector<16x128xf32>
    %166 = arith.addf %158, %165 : vector<16x128xf32>
    %cst_127 = arith.constant dense<0.000000e+00> : vector<16xf32>
    %167 = vector.multi_reduction <add>, %166, %cst_127 [1] : vector<16x128xf32> to vector<16xf32>
    %168 = vector.shape_cast %167 : vector<16xf32> to vector<16x1xf32>
    %cst_128 = arith.constant 2.500000e-01 : f32
    %169 = vector.broadcast %cst_128 : f32 to vector<16x1xf32>
    %170 = arith.mulf %168, %169 : vector<16x1xf32>
    %171 = arith.mulf %166, %166 : vector<16x128xf32>
    %cst_129 = arith.constant dense<0.000000e+00> : vector<16xf32>
    %172 = vector.multi_reduction <add>, %171, %cst_129 [1] : vector<16x128xf32> to vector<16xf32>
    %173 = vector.shape_cast %172 : vector<16xf32> to vector<16x1xf32>
    %cst_130 = arith.constant 2.500000e-01 : f32
    %174 = vector.broadcast %cst_130 : f32 to vector<16x1xf32>
    %175 = arith.mulf %173, %174 : vector<16x1xf32>
    %176 = arith.mulf %170, %170 : vector<16x1xf32>
    %177 = arith.subf %175, %176 : vector<16x1xf32>
    %178 = vector.broadcast %170 : vector<16x1xf32> to vector<16x128xf32>
    %179 = arith.subf %166, %178 : vector<16x128xf32>
    %cst_131 = arith.constant 9.99999974E-6 : f32
    %180 = vector.broadcast %cst_131 : f32 to vector<16x1xf32>
    %181 = arith.addf %177, %180 : vector<16x1xf32>
    %182 = math.rsqrt %181 : vector<16x1xf32>
    %183 = vector.broadcast %182 : vector<16x1xf32> to vector<16x128xf32>
    %184 = arith.mulf %179, %183 : vector<16x128xf32>
    %185 = arith.addf %184, %95 : vector<16x128xf32>
    %186 = arith.truncf %185 : vector<16x128xf32> to vector<16x128xbf16>
    %c4 = arith.constant 4 : index
    %c0_132 = arith.constant 0 : index
    %c0_133 = arith.constant 0 : index
    %c0_134 = arith.constant 0 : index
    %187 = vector.load %arg2[%c4, %c0_132, %c0_133, %c0_134] : memref<6x3x128x128xbf16, #tpu.memory_space<vmem>>, vector<1x1x128x128xbf16>
    %188 = vector.shape_cast %187 : vector<1x1x128x128xbf16> to vector<128x128xbf16>
    %cst_135 = arith.constant dense<0.000000e+00> : vector<16x128xf32>
    %189 = tpu.matmul %186, %188, %cst_135 {dimension_numbers = #tpu.dot_dimension_numbers<[1], [0], [0], [1], [0, 0, 1, 1], [], []>} : vector<16x128xbf16>, vector<128x128xbf16>, vector<16x128xf32> -> vector<16x128xf32>
    %190 = arith.truncf %189 : vector<16x128xf32> to vector<16x128xbf16>
    %c0_136 = arith.constant 0 : index
    %c0_137 = arith.constant 0 : index
    %c0_138 = arith.constant 0 : index
    %191 = vector.load %arg7[%c0_136, %c0_137, %c0_138] : memref<3x16x16xbf16, #tpu.memory_space<vmem>>, vector<1x16x16xbf16>
    %192 = vector.shape_cast %191 : vector<1x16x16xbf16> to vector<16x16xbf16>
    %cst_139 = arith.constant dense<0.000000e+00> : vector<16x128xf32>
    %193 = tpu.matmul %192, %190, %cst_139 {dimension_numbers = #tpu.dot_dimension_numbers<[1], [0], [0], [1], [0, 0, 1, 1], [], []>} : vector<16x16xbf16>, vector<16x128xbf16>, vector<16x128xf32> -> vector<16x128xf32>
    %c4_140 = arith.constant 4 : index
    %c1_141 = arith.constant 1 : index
    %c0_142 = arith.constant 0 : index
    %c0_143 = arith.constant 0 : index
    %194 = vector.load %arg2[%c4_140, %c1_141, %c0_142, %c0_143] : memref<6x3x128x128xbf16, #tpu.memory_space<vmem>>, vector<1x1x128x128xbf16>
    %195 = vector.shape_cast %194 : vector<1x1x128x128xbf16> to vector<128x128xbf16>
    %cst_144 = arith.constant dense<0.000000e+00> : vector<16x128xf32>
    %196 = tpu.matmul %186, %195, %cst_144 {dimension_numbers = #tpu.dot_dimension_numbers<[1], [0], [0], [1], [0, 0, 1, 1], [], []>} : vector<16x128xbf16>, vector<128x128xbf16>, vector<16x128xf32> -> vector<16x128xf32>
    %197 = arith.truncf %196 : vector<16x128xf32> to vector<16x128xbf16>
    %c1_145 = arith.constant 1 : index
    %c0_146 = arith.constant 0 : index
    %c0_147 = arith.constant 0 : index
    %198 = vector.load %arg7[%c1_145, %c0_146, %c0_147] : memref<3x16x16xbf16, #tpu.memory_space<vmem>>, vector<1x16x16xbf16>
    %199 = vector.shape_cast %198 : vector<1x16x16xbf16> to vector<16x16xbf16>
    %cst_148 = arith.constant dense<0.000000e+00> : vector<16x128xf32>
    %200 = tpu.matmul %199, %197, %cst_148 {dimension_numbers = #tpu.dot_dimension_numbers<[1], [0], [0], [1], [0, 0, 1, 1], [], []>} : vector<16x16xbf16>, vector<16x128xbf16>, vector<16x128xf32> -> vector<16x128xf32>
    %201 = arith.addf %193, %200 : vector<16x128xf32>
    %c4_149 = arith.constant 4 : index
    %c2_150 = arith.constant 2 : index
    %c0_151 = arith.constant 0 : index
    %c0_152 = arith.constant 0 : index
    %202 = vector.load %arg2[%c4_149, %c2_150, %c0_151, %c0_152] : memref<6x3x128x128xbf16, #tpu.memory_space<vmem>>, vector<1x1x128x128xbf16>
    %203 = vector.shape_cast %202 : vector<1x1x128x128xbf16> to vector<128x128xbf16>
    %cst_153 = arith.constant dense<0.000000e+00> : vector<16x128xf32>
    %204 = tpu.matmul %186, %203, %cst_153 {dimension_numbers = #tpu.dot_dimension_numbers<[1], [0], [0], [1], [0, 0, 1, 1], [], []>} : vector<16x128xbf16>, vector<128x128xbf16>, vector<16x128xf32> -> vector<16x128xf32>
    %205 = arith.truncf %204 : vector<16x128xf32> to vector<16x128xbf16>
    %c2_154 = arith.constant 2 : index
    %c0_155 = arith.constant 0 : index
    %c0_156 = arith.constant 0 : index
    %206 = vector.load %arg7[%c2_154, %c0_155, %c0_156] : memref<3x16x16xbf16, #tpu.memory_space<vmem>>, vector<1x16x16xbf16>
    %207 = vector.shape_cast %206 : vector<1x16x16xbf16> to vector<16x16xbf16>
    %cst_157 = arith.constant dense<0.000000e+00> : vector<16x128xf32>
    %208 = tpu.matmul %207, %205, %cst_157 {dimension_numbers = #tpu.dot_dimension_numbers<[1], [0], [0], [1], [0, 0, 1, 1], [], []>} : vector<16x16xbf16>, vector<16x128xbf16>, vector<16x128xf32> -> vector<16x128xf32>
    %209 = arith.addf %201, %208 : vector<16x128xf32>
    %cst_158 = arith.constant dense<0.000000e+00> : vector<16xf32>
    %210 = vector.multi_reduction <add>, %209, %cst_158 [1] : vector<16x128xf32> to vector<16xf32>
    %211 = vector.shape_cast %210 : vector<16xf32> to vector<16x1xf32>
    %cst_159 = arith.constant 2.500000e-01 : f32
    %212 = vector.broadcast %cst_159 : f32 to vector<16x1xf32>
    %213 = arith.mulf %211, %212 : vector<16x1xf32>
    %214 = arith.mulf %209, %209 : vector<16x128xf32>
    %cst_160 = arith.constant dense<0.000000e+00> : vector<16xf32>
    %215 = vector.multi_reduction <add>, %214, %cst_160 [1] : vector<16x128xf32> to vector<16xf32>
    %216 = vector.shape_cast %215 : vector<16xf32> to vector<16x1xf32>
    %cst_161 = arith.constant 2.500000e-01 : f32
    %217 = vector.broadcast %cst_161 : f32 to vector<16x1xf32>
    %218 = arith.mulf %216, %217 : vector<16x1xf32>
    %219 = arith.mulf %213, %213 : vector<16x1xf32>
    %220 = arith.subf %218, %219 : vector<16x1xf32>
    %221 = vector.broadcast %213 : vector<16x1xf32> to vector<16x128xf32>
    %222 = arith.subf %209, %221 : vector<16x128xf32>
    %cst_162 = arith.constant 9.99999974E-6 : f32
    %223 = vector.broadcast %cst_162 : f32 to vector<16x1xf32>
    %224 = arith.addf %220, %223 : vector<16x1xf32>
    %225 = math.rsqrt %224 : vector<16x1xf32>
    %226 = vector.broadcast %225 : vector<16x1xf32> to vector<16x128xf32>
    %227 = arith.mulf %222, %226 : vector<16x128xf32>
    %cst_163 = arith.constant 0.000000e+00 : f32
    %228 = vector.broadcast %cst_163 : f32 to vector<16x128xf32>
    %229 = arith.cmpf oge, %227, %228 : vector<16x128xf32>
    %cst_164 = arith.constant 2.000000e-01 : f32
    %230 = vector.broadcast %cst_164 : f32 to vector<16x128xf32>
    %231 = arith.mulf %230, %227 : vector<16x128xf32>
    %232 = arith.select %229, %227, %231 : vector<16x128xi1>, vector<16x128xf32>
    %233 = arith.truncf %232 : vector<16x128xf32> to vector<16x128xbf16>
    %c5 = arith.constant 5 : index
    %c0_165 = arith.constant 0 : index
    %c0_166 = arith.constant 0 : index
    %c0_167 = arith.constant 0 : index
    %234 = vector.load %arg2[%c5, %c0_165, %c0_166, %c0_167] : memref<6x3x128x128xbf16, #tpu.memory_space<vmem>>, vector<1x1x128x128xbf16>
    %235 = vector.shape_cast %234 : vector<1x1x128x128xbf16> to vector<128x128xbf16>
    %cst_168 = arith.constant dense<0.000000e+00> : vector<16x128xf32>
    %236 = tpu.matmul %233, %235, %cst_168 {dimension_numbers = #tpu.dot_dimension_numbers<[1], [0], [0], [1], [0, 0, 1, 1], [], []>} : vector<16x128xbf16>, vector<128x128xbf16>, vector<16x128xf32> -> vector<16x128xf32>
    %237 = arith.truncf %236 : vector<16x128xf32> to vector<16x128xbf16>
    %c0_169 = arith.constant 0 : index
    %c0_170 = arith.constant 0 : index
    %c0_171 = arith.constant 0 : index
    %238 = vector.load %arg8[%c0_169, %c0_170, %c0_171] : memref<3x16x16xbf16, #tpu.memory_space<vmem>>, vector<1x16x16xbf16>
    %239 = vector.shape_cast %238 : vector<1x16x16xbf16> to vector<16x16xbf16>
    %cst_172 = arith.constant dense<0.000000e+00> : vector<16x128xf32>
    %240 = tpu.matmul %239, %237, %cst_172 {dimension_numbers = #tpu.dot_dimension_numbers<[1], [0], [0], [1], [0, 0, 1, 1], [], []>} : vector<16x16xbf16>, vector<16x128xbf16>, vector<16x128xf32> -> vector<16x128xf32>
    %c5_173 = arith.constant 5 : index
    %c1_174 = arith.constant 1 : index
    %c0_175 = arith.constant 0 : index
    %c0_176 = arith.constant 0 : index
    %241 = vector.load %arg2[%c5_173, %c1_174, %c0_175, %c0_176] : memref<6x3x128x128xbf16, #tpu.memory_space<vmem>>, vector<1x1x128x128xbf16>
    %242 = vector.shape_cast %241 : vector<1x1x128x128xbf16> to vector<128x128xbf16>
    %cst_177 = arith.constant dense<0.000000e+00> : vector<16x128xf32>
    %243 = tpu.matmul %233, %242, %cst_177 {dimension_numbers = #tpu.dot_dimension_numbers<[1], [0], [0], [1], [0, 0, 1, 1], [], []>} : vector<16x128xbf16>, vector<128x128xbf16>, vector<16x128xf32> -> vector<16x128xf32>
    %244 = arith.truncf %243 : vector<16x128xf32> to vector<16x128xbf16>
    %c1_178 = arith.constant 1 : index
    %c0_179 = arith.constant 0 : index
    %c0_180 = arith.constant 0 : index
    %245 = vector.load %arg8[%c1_178, %c0_179, %c0_180] : memref<3x16x16xbf16, #tpu.memory_space<vmem>>, vector<1x16x16xbf16>
    %246 = vector.shape_cast %245 : vector<1x16x16xbf16> to vector<16x16xbf16>
    %cst_181 = arith.constant dense<0.000000e+00> : vector<16x128xf32>
    %247 = tpu.matmul %246, %244, %cst_181 {dimension_numbers = #tpu.dot_dimension_numbers<[1], [0], [0], [1], [0, 0, 1, 1], [], []>} : vector<16x16xbf16>, vector<16x128xbf16>, vector<16x128xf32> -> vector<16x128xf32>
    %248 = arith.addf %240, %247 : vector<16x128xf32>
    %c5_182 = arith.constant 5 : index
    %c2_183 = arith.constant 2 : index
    %c0_184 = arith.constant 0 : index
    %c0_185 = arith.constant 0 : index
    %249 = vector.load %arg2[%c5_182, %c2_183, %c0_184, %c0_185] : memref<6x3x128x128xbf16, #tpu.memory_space<vmem>>, vector<1x1x128x128xbf16>
    %250 = vector.shape_cast %249 : vector<1x1x128x128xbf16> to vector<128x128xbf16>
    %cst_186 = arith.constant dense<0.000000e+00> : vector<16x128xf32>
    %251 = tpu.matmul %233, %250, %cst_186 {dimension_numbers = #tpu.dot_dimension_numbers<[1], [0], [0], [1], [0, 0, 1, 1], [], []>} : vector<16x128xbf16>, vector<128x128xbf16>, vector<16x128xf32> -> vector<16x128xf32>
    %252 = arith.truncf %251 : vector<16x128xf32> to vector<16x128xbf16>
    %c2_187 = arith.constant 2 : index
    %c0_188 = arith.constant 0 : index
    %c0_189 = arith.constant 0 : index
    %253 = vector.load %arg8[%c2_187, %c0_188, %c0_189] : memref<3x16x16xbf16, #tpu.memory_space<vmem>>, vector<1x16x16xbf16>
    %254 = vector.shape_cast %253 : vector<1x16x16xbf16> to vector<16x16xbf16>
    %cst_190 = arith.constant dense<0.000000e+00> : vector<16x128xf32>
    %255 = tpu.matmul %254, %252, %cst_190 {dimension_numbers = #tpu.dot_dimension_numbers<[1], [0], [0], [1], [0, 0, 1, 1], [], []>} : vector<16x16xbf16>, vector<16x128xbf16>, vector<16x128xf32> -> vector<16x128xf32>
    %256 = arith.addf %248, %255 : vector<16x128xf32>
    %cst_191 = arith.constant dense<0.000000e+00> : vector<16xf32>
    %257 = vector.multi_reduction <add>, %256, %cst_191 [1] : vector<16x128xf32> to vector<16xf32>
    %258 = vector.shape_cast %257 : vector<16xf32> to vector<16x1xf32>
    %cst_192 = arith.constant 2.500000e-01 : f32
    %259 = vector.broadcast %cst_192 : f32 to vector<16x1xf32>
    %260 = arith.mulf %258, %259 : vector<16x1xf32>
    %261 = arith.mulf %256, %256 : vector<16x128xf32>
    %cst_193 = arith.constant dense<0.000000e+00> : vector<16xf32>
    %262 = vector.multi_reduction <add>, %261, %cst_193 [1] : vector<16x128xf32> to vector<16xf32>
    %263 = vector.shape_cast %262 : vector<16xf32> to vector<16x1xf32>
    %cst_194 = arith.constant 2.500000e-01 : f32
    %264 = vector.broadcast %cst_194 : f32 to vector<16x1xf32>
    %265 = arith.mulf %263, %264 : vector<16x1xf32>
    %266 = arith.mulf %260, %260 : vector<16x1xf32>
    %267 = arith.subf %265, %266 : vector<16x1xf32>
    %268 = vector.broadcast %260 : vector<16x1xf32> to vector<16x128xf32>
    %269 = arith.subf %256, %268 : vector<16x128xf32>
    %cst_195 = arith.constant 9.99999974E-6 : f32
    %270 = vector.broadcast %cst_195 : f32 to vector<16x1xf32>
    %271 = arith.addf %267, %270 : vector<16x1xf32>
    %272 = math.rsqrt %271 : vector<16x1xf32>
    %273 = vector.broadcast %272 : vector<16x1xf32> to vector<16x128xf32>
    %274 = arith.mulf %269, %273 : vector<16x128xf32>
    %275 = arith.addf %274, %185 : vector<16x128xf32>
    %c0_196 = arith.constant 0 : index
    %c0_197 = arith.constant 0 : index
    %c0_198 = arith.constant 0 : index
    %276 = vector.load %arg9[%c0_196, %c0_197, %c0_198] : memref<1x16x128xf32, #tpu.memory_space<vmem>>, vector<1x16x128xf32>
    %277 = vector.shape_cast %276 : vector<1x16x128xf32> to vector<16x128xf32>
    %278 = vector.shape_cast %275 : vector<16x128xf32> to vector<1x16x128xf32>
    tpu.vector_store %arg9[%c0_196, %c0_197, %c0_198], %278 {strides = array<i32>} : memref<1x16x128xf32, #tpu.memory_space<vmem>>, vector<1x16x128xf32>,
    return
  }
  func.func @transform_0(%arg0: i32) -> (i32, i32, i32) {
    %c0_i32 = arith.constant 0 : i32
    %c0_i32_0 = arith.constant 0 : i32
    %c0_i32_1 = arith.constant 0 : i32
    return %arg0, %c0_i32, %c0_i32_0 : i32, i32, i32
  }
  func.func @transform_1(%arg0: i32) -> (i32, i32, i32, i32) {
    %c0_i32 = arith.constant 0 : i32
    %c0_i32_0 = arith.constant 0 : i32
    %c0_i32_1 = arith.constant 0 : i32
    %c0_i32_2 = arith.constant 0 : i32
    %c0_i32_3 = arith.constant 0 : i32
    return %c0_i32, %c0_i32_0, %c0_i32_1, %c0_i32_2 : i32, i32, i32, i32
  }
  func.func @transform_2(%arg0: i32) -> (i32, i32, i32) {
    %c0_i32 = arith.constant 0 : i32
    %c0_i32_0 = arith.constant 0 : i32
    %c0_i32_1 = arith.constant 0 : i32
    %c0_i32_2 = arith.constant 0 : i32
    return %c0_i32, %c0_i32_0, %c0_i32_1 : i32, i32, i32
  }
  func.func @transform_3(%arg0: i32) -> (i32, i32, i32) {
    %c0_i32 = arith.constant 0 : i32
    %c0_i32_0 = arith.constant 0 : i32
    %c0_i32_1 = arith.constant 0 : i32
    %c0_i32_2 = arith.constant 0 : i32
    return %c0_i32, %c0_i32_0, %c0_i32_1 : i32, i32, i32
  }
  func.func @transform_4(%arg0: i32) -> (i32, i32, i32) {
    %c0_i32 = arith.constant 0 : i32
    %c0_i32_0 = arith.constant 0 : i32
    %c0_i32_1 = arith.constant 0 : i32
    %c0_i32_2 = arith.constant 0 : i32
    return %c0_i32, %c0_i32_0, %c0_i32_1 : i32, i32, i32
  }
  func.func @transform_5(%arg0: i32) -> (i32, i32, i32) {
    %c0_i32 = arith.constant 0 : i32
    %c0_i32_0 = arith.constant 0 : i32
    %c0_i32_1 = arith.constant 0 : i32
    %c0_i32_2 = arith.constant 0 : i32
    return %c0_i32, %c0_i32_0, %c0_i32_1 : i32, i32, i32
  }
  func.func @transform_6(%arg0: i32) -> (i32, i32, i32) {
    %c0_i32 = arith.constant 0 : i32
    %c0_i32_0 = arith.constant 0 : i32
    %c0_i32_1 = arith.constant 0 : i32
    %c0_i32_2 = arith.constant 0 : i32
    return %c0_i32, %c0_i32_0, %c0_i32_1 : i32, i32, i32
  }
  func.func @transform_7(%arg0: i32) -> (i32, i32, i32) {
    %c0_i32 = arith.constant 0 : i32
    %c0_i32_0 = arith.constant 0 : i32
    %c0_i32_1 = arith.constant 0 : i32
    %c0_i32_2 = arith.constant 0 : i32
    return %c0_i32, %c0_i32_0, %c0_i32_1 : i32, i32, i32
  }
  func.func @transform_8(%arg0: i32) -> (i32, i32, i32) {
    %c0_i32 = arith.constant 0 : i32
    %c0_i32_0 = arith.constant 0 : i32
    %c0_i32_1 = arith.constant 0 : i32
    return %arg0, %c0_i32, %c0_i32_0 : i32, i32, i32
  }
}

</mosaic_0001>

<llo_original>
// kernel: tpu_custom_call.1
$region0: #{tpu_custom_call.1}
  #allocation0 [shape = 'u32[]', space=smem, size = 0x4, offset = 0x4, fixed_abs, tag = 'smem constant byte address 0x4 - core index']
  #allocation1 [shape = 'u32[144,128]{1,0:T(1,128)}', space=vmem, size = 0x12000, scoped, tag = 'internal scratch']
  %s0 = inlined_call_operand.hbm [shape: f32[2,8,128], index: 0, kind: input, shape index: {}]
  %s1 = inlined_call_operand.hbm [shape: bf16[6,3,128,128], index: 1, kind: input, shape index: {}]
  %s2 = inlined_call_operand.hbm [shape: bf16[3,8,8], index: 2, kind: input, shape index: {}]
  %s3 = inlined_call_operand.vmem [shape: bf16[3,16,8], index: 3, kind: input, shape index: {}]
  %s4 = inlined_call_operand.vmem [shape: bf16[3,16,16], index: 4, kind: input, shape index: {}]
  %s5 = inlined_call_operand.vmem [shape: bf16[3,16,16], index: 5, kind: input, shape index: {}]
  %s6 = inlined_call_operand.hbm [shape: bf16[3,16,16], index: 6, kind: input, shape index: {}]
  %s7 = inlined_call_operand.hbm [shape: bf16[3,16,16], index: 7, kind: input, shape index: {}]
  %s8 = inlined_call_operand.hbm [shape: f32[2,16,128], index: 8, kind: output, shape index: {}]
  %s9 = sld [smem:[#allocation0]]
  $region85: #{tpu_custom_call.1} parent=0
    _
  %s11 = ssub.s32 1, %s9
  %s12 = scalar_select 0, %s11, %s9
  $region1: #{tpu_custom_call.1} parent=0
    #allocation2 [shape = 'u8[8192]{0}', space=vmem, size = 0x2000, scoped, tag = 'input window, operand 0']
    #allocation3 [shape = 's32[2]{0}', space=sflag, size = 0x8, scoped, tag = 'scoped memory for tpu_custom_call.1']
    #allocation4 [shape = 's32[2]{0}', space=sflag, size = 0x8, scoped, tag = 'scoped memory for tpu_custom_call.1']
    #allocation5 [shape = 'u8[589824]{0}', space=vmem, size = 0x90000, scoped, tag = 'input window, operand 1, single buffered']
    #allocation6 [shape = 's32[1]{0}', space=sflag, size = 0x4, scoped, tag = 'scoped memory for tpu_custom_call.1']
    #allocation7 [shape = 'u8[6144]{0}', space=vmem, size = 0x1800, scoped, tag = 'input window, operand 2, single buffered']
    #allocation8 [shape = 'u8[12288]{0}', space=vmem, size = 0x3000, scoped, tag = 'input window, operand 6, single buffered']
    #allocation9 [shape = 's32[1]{0}', space=sflag, size = 0x4, scoped, tag = 'scoped memory for tpu_custom_call.1']
    #allocation10 [shape = 'u8[12288]{0}', space=vmem, size = 0x3000, scoped, tag = 'input window, operand 7, single buffered']
    #allocation11 [shape = 'u8[16384]{0}', space=vmem, size = 0x4000, scoped, tag = 'output window, operand 0']
    %13 = vsyncpa [#allocation3], 0
    %s14 = scalar_lea.sflag [#allocation3], 1
    %15 = vsyncpa %s14, 0
    %16 = vsyncpa [#allocation6], 0
    %17 = vsyncpa [#allocation9], 0
    %18 = vsyncpa [#allocation4], 0
    %s19 = scalar_lea.sflag [#allocation4], 1
    %20 = vsyncpa %s19, 0
    loop: start=0, step=1, limit=4
    $region2: #{tpu_custom_call.1} parent=1 // loop_pre_header
      _
    $region3: #{tpu_custom_call.1} parent=1 // loop_header
      %s22 = sphi 0, %s26
      %p23 = scmp.ge.s32.totalorder %s22, 4
      %s32 = sphi 0, %s34
      %s35 = sphi 0, %s32
      %s36 = sphi 0, %s35
      %s52 = sphi 0, %s36
      %s56 = sphi 0, %s56
      %s58 = sphi 0, %s56
      %s59 = sphi 0, %s58
      %s73 = sphi 0, %s59
      %s77 = sphi 0, %s77
      %s79 = sphi 0, %s77
      %s80 = sphi 0, %s79
      %s94 = sphi 0, %s80
      %s98 = sphi 0, %s98
      %s100 = sphi 0, %s98
      %s101 = sphi 0, %s100
      %s115 = sphi 0, %s101
      %s119 = sphi 0, %s119
      %s121 = sphi 0, %s119
      %s122 = sphi 0, %s121
      %s136 = sphi 0, %s122
      %s140 = sphi 0, %s140
      %s142 = sphi 0, %s140
      %s143 = sphi 0, %s142
      %s157 = sphi 0, %s143
      %s161 = sphi 0, %s161
      %s163 = sphi 0, %s161
      %s164 = sphi 0, %s163
      %s178 = sphi 0, %s164
      %s182 = sphi 0, %s182
      %s184 = sphi 0, %s182
      %s185 = sphi 0, %s184
      %s199 = sphi 0, %s185
      %s205 = sphi 0, %s207
      %s208 = sphi 0, %s205
      %s209 = sphi 0, %s208
      %s225 = sphi 0, %s209
    $region4: #{tpu_custom_call.1} parent=1 // loop_header_branch
      %25 = sbr.rel (%p23) target = $region8
    $region5: #{tpu_custom_call.1} parent=1 // loop_body
      %s27 = ssub.s32 %s22, 1
      %s28 = ssub.s32 %s22, 2
      %s29 = sadd.s32 %s22, 1
      %s30 = ssub.s32 %s22, %s29
      %p31 = scmp.eq.s32.totalorder %s30, 0
      %s33 = sadd.s32 %s32, 1
      %s34 = scalar_select %p31, %s32, %s33
      %p37 = pneg %p31
      %p38 = scmp.eq.s32.totalorder %s22, 1
      %p39 = por %p37, %p38
      %p40 = scmp.ne.s32.totalorder %s32, %s35
      %p41 = scmp.eq.s32.totalorder %s22, 0
      %p42 = por %p40, %p41
      %p43 = scmp.ne.s32.totalorder %s32, %s35
      %p44 = scmp.eq.s32.totalorder %s27, 1
      %p45 = por %p43, %p44
      %p46 = scmp.ne.s32.totalorder %s35, %s36
      %p47 = scmp.eq.s32.totalorder %s27, 0
      %p48 = por %p46, %p47
      %p49 = scmp.ne.s32.totalorder %s35, %s36
      %p50 = scmp.eq.s32.totalorder %s28, 1
      %p51 = por %p49, %p50
      %p53 = scmp.ne.s32.totalorder %s36, %s52
      %p54 = scmp.eq.s32.totalorder %s28, 0
      %p55 = por %p53, %p54
      %s57 = sadd.s32 %s56, 1
      %p60 = scmp.eq.s32.totalorder %s22, 1
      %p61 = scmp.ne.s32.totalorder %s56, %s58
      %p62 = scmp.eq.s32.totalorder %s22, 0
      %p63 = por %p61, %p62
      %p64 = scmp.ne.s32.totalorder %s56, %s58
      %p65 = scmp.eq.s32.totalorder %s27, 1
      %p66 = por %p64, %p65
      %p67 = scmp.ne.s32.totalorder %s58, %s59
      %p68 = scmp.eq.s32.totalorder %s27, 0
      %p69 = por %p67, %p68
      %p70 = scmp.ne.s32.totalorder %s58, %s59
      %p71 = scmp.eq.s32.totalorder %s28, 1
      %p72 = por %p70, %p71
      %p74 = scmp.ne.s32.totalorder %s59, %s73
      %p75 = scmp.eq.s32.totalorder %s28, 0
      %p76 = por %p74, %p75
      %s78 = sadd.s32 %s77, 1
      %p81 = scmp.eq.s32.totalorder %s22, 1
      %p82 = scmp.ne.s32.totalorder %s77, %s79
      %p83 = scmp.eq.s32.totalorder %s22, 0
      %p84 = por %p82, %p83
      %p85 = scmp.ne.s32.totalorder %s77, %s79
      %p86 = scmp.eq.s32.totalorder %s27, 1
      %p87 = por %p85, %p86
      %p88 = scmp.ne.s32.totalorder %s79, %s80
      %p89 = scmp.eq.s32.totalorder %s27, 0
      %p90 = por %p88, %p89
      %p91 = scmp.ne.s32.totalorder %s79, %s80
      %p92 = scmp.eq.s32.totalorder %s28, 1
      %p93 = por %p91, %p92
      %p95 = scmp.ne.s32.totalorder %s80, %s94
      %p96 = scmp.eq.s32.totalorder %s28, 0
      %p97 = por %p95, %p96
      %s99 = sadd.s32 %s98, 1
      %p102 = scmp.eq.s32.totalorder %s22, 1
      %p103 = scmp.ne.s32.totalorder %s98, %s100
      %p104 = scmp.eq.s32.totalorder %s22, 0
      %p105 = por %p103, %p104
      %p106 = scmp.ne.s32.totalorder %s98, %s100
      %p107 = scmp.eq.s32.totalorder %s27, 1
      %p108 = por %p106, %p107
      %p109 = scmp.ne.s32.totalorder %s100, %s101
      %p110 = scmp.eq.s32.totalorder %s27, 0
      %p111 = por %p109, %p110
      %p112 = scmp.ne.s32.totalorder %s100, %s101
      %p113 = scmp.eq.s32.totalorder %s28, 1
      %p114 = por %p112, %p113
      %p116 = scmp.ne.s32.totalorder %s101, %s115
      %p117 = scmp.eq.s32.totalorder %s28, 0
      %p118 = por %p116, %p117
      %s120 = sadd.s32 %s119, 1
      %p123 = scmp.eq.s32.totalorder %s22, 1
      %p124 = scmp.ne.s32.totalorder %s119, %s121
      %p125 = scmp.eq.s32.totalorder %s22, 0
      %p126 = por %p124, %p125
      %p127 = scmp.ne.s32.totalorder %s119, %s121
      %p128 = scmp.eq.s32.totalorder %s27, 1
      %p129 = por %p127, %p128
      %p130 = scmp.ne.s32.totalorder %s121, %s122
      %p131 = scmp.eq.s32.totalorder %s27, 0
      %p132 = por %p130, %p131
      %p133 = scmp.ne.s32.totalorder %s121, %s122
      %p134 = scmp.eq.s32.totalorder %s28, 1
      %p135 = por %p133, %p134
      %p137 = scmp.ne.s32.totalorder %s122, %s136
      %p138 = scmp.eq.s32.totalorder %s28, 0
      %p139 = por %p137, %p138
      %s141 = sadd.s32 %s140, 1
      %p144 = scmp.eq.s32.totalorder %s22, 1
      %p145 = scmp.ne.s32.totalorder %s140, %s142
      %p146 = scmp.eq.s32.totalorder %s22, 0
      %p147 = por %p145, %p146
      %p148 = scmp.ne.s32.totalorder %s140, %s142
      %p149 = scmp.eq.s32.totalorder %s27, 1
      %p150 = por %p148, %p149
      %p151 = scmp.ne.s32.totalorder %s142, %s143
      %p152 = scmp.eq.s32.totalorder %s27, 0
      %p153 = por %p151, %p152
      %p154 = scmp.ne.s32.totalorder %s142, %s143
      %p155 = scmp.eq.s32.totalorder %s28, 1
      %p156 = por %p154, %p155
      %p158 = scmp.ne.s32.totalorder %s143, %s157
      %p159 = scmp.eq.s32.totalorder %s28, 0
      %p160 = por %p158, %p159
      %s162 = sadd.s32 %s161, 1
      %p165 = scmp.eq.s32.totalorder %s22, 1
      %p166 = scmp.ne.s32.totalorder %s161, %s163
      %p167 = scmp.eq.s32.totalorder %s22, 0
      %p168 = por %p166, %p167
      %p169 = scmp.ne.s32.totalorder %s161, %s163
      %p170 = scmp.eq.s32.totalorder %s27, 1
      %p171 = por %p169, %p170
      %p172 = scmp.ne.s32.totalorder %s163, %s164
      %p173 = scmp.eq.s32.totalorder %s27, 0
      %p174 = por %p172, %p173
      %p175 = scmp.ne.s32.totalorder %s163, %s164
      %p176 = scmp.eq.s32.totalorder %s28, 1
      %p177 = por %p175, %p176
      %p179 = scmp.ne.s32.totalorder %s164, %s178
      %p180 = scmp.eq.s32.totalorder %s28, 0
      %p181 = por %p179, %p180
      %s183 = sadd.s32 %s182, 1
      %p186 = scmp.eq.s32.totalorder %s22, 1
      %p187 = scmp.ne.s32.totalorder %s182, %s184
      %p188 = scmp.eq.s32.totalorder %s22, 0
      %p189 = por %p187, %p188
      %p190 = scmp.ne.s32.totalorder %s182, %s184
      %p191 = scmp.eq.s32.totalorder %s27, 1
      %p192 = por %p190, %p191
      %p193 = scmp.ne.s32.totalorder %s184, %s185
      %p194 = scmp.eq.s32.totalorder %s27, 0
      %p195 = por %p193, %p194
      %p196 = scmp.ne.s32.totalorder %s184, %s185
      %p197 = scmp.eq.s32.totalorder %s28, 1
      %p198 = por %p196, %p197
      %p200 = scmp.ne.s32.totalorder %s185, %s199
      %p201 = scmp.eq.s32.totalorder %s28, 0
      %p202 = por %p200, %p201
      %s203 = ssub.s32 %s22, %s29
      %p204 = scmp.eq.s32.totalorder %s203, 0
      %s206 = sadd.s32 %s205, 1
      %s207 = scalar_select %p204, %s205, %s206
      %p210 = pneg %p204
      %p211 = scmp.eq.s32.totalorder %s22, 1
      %p212 = por %p210, %p211
      %p213 = scmp.ne.s32.totalorder %s205, %s208
      %p214 = scmp.eq.s32.totalorder %s22, 0
      %p215 = por %p213, %p214
      %p216 = scmp.ne.s32.totalorder %s205, %s208
      %p217 = scmp.eq.s32.totalorder %s27, 1
      %p218 = por %p216, %p217
      %p219 = scmp.ne.s32.totalorder %s208, %s209
      %p220 = scmp.eq.s32.totalorder %s27, 0
      %p221 = por %p219, %p220
      %p222 = scmp.ne.s32.totalorder %s208, %s209
      %p223 = scmp.eq.s32.totalorder %s28, 1
      %p224 = por %p222, %p223
      %p226 = scmp.ne.s32.totalorder %s209, %s225
      %p227 = scmp.eq.s32.totalorder %s28, 0
      %p228 = por %p226, %p227
      %p229 = scmp.le.s32.totalorder 1, %s22
      %p230 = scmp.lt.s32.totalorder %s22, 3
      %p231 = pnand %p229, %p230
      %p232 = pneg %p231
      // Predicated region
      $region9: #{tpu_custom_call.1} parent=5 // pred_check
        _
      $region10: #{tpu_custom_call.1} parent=5 // pred_check_branch
        %234 = sbr.rel (%p231) target = $region12
      $region11: #{tpu_custom_call.1} parent=5 // pred_region
        %s235 = ssub.s32 %s22, 1
        // Predicated region
        $region13: #{tpu_custom_call.1} parent=11 // pred_check
          %p236 = pneg %p69
        $region14: #{tpu_custom_call.1} parent=11 // pred_check_branch
          %238 = sbr.rel (%p236) target = $region16
        $region15: #{tpu_custom_call.1} parent=11 // pred_region
          %s240 = ssub.s32 18432, 18432
          %241 = vsyncadd [#allocation6], %s240
          %s242 = sshll.u32 [#allocation5], 4
          %s243 = int_to_ptr.vmem [resolvable:$true] %s242
          %248 = dma.hbm_to_vmem [thread:$0]  %s1, 18432, %s243, [#allocation6], 64, 64, 4
        $region16: #{tpu_custom_call.1} parent=11 // pred_fallthru
          _
        // Predicated region
        $region17: #{tpu_custom_call.1} parent=11 // pred_check
          %p249 = pneg %p90
        $region18: #{tpu_custom_call.1} parent=11 // pred_check_branch
          %251 = sbr.rel (%p249) target = $region20
        $region19: #{tpu_custom_call.1} parent=11 // pred_region
          %s253 = ssub.s32 192, 192
          %254 = vsyncadd [#allocation6], %s253
          %s255 = sshll.u32 [#allocation7], 4
          %s256 = int_to_ptr.vmem [resolvable:$true] %s255
          %261 = dma.hbm_to_vmem [thread:$0]  %s2, 192, %s256, [#allocation6], 64, 64, 4
        $region20: #{tpu_custom_call.1} parent=11 // pred_fallthru
          _
        // Predicated region
        $region21: #{tpu_custom_call.1} parent=11 // pred_check
          %p262 = pneg %p111
        $region22: #{tpu_custom_call.1} parent=11 // pred_check_branch
          %264 = sbr.rel (%p262) target = $region24
        $region23: #{tpu_custom_call.1} parent=11 // pred_region
          _
        $region24: #{tpu_custom_call.1} parent=11 // pred_fallthru
          _
        // Predicated region
        $region25: #{tpu_custom_call.1} parent=11 // pred_check
          %p265 = pneg %p132
        $region26: #{tpu_custom_call.1} parent=11 // pred_check_branch
          %267 = sbr.rel (%p265) target = $region28
        $region27: #{tpu_custom_call.1} parent=11 // pred_region
          _
        $region28: #{tpu_custom_call.1} parent=11 // pred_fallthru
          _
        // Predicated region
        $region29: #{tpu_custom_call.1} parent=11 // pred_check
          %p268 = pneg %p153
        $region30: #{tpu_custom_call.1} parent=11 // pred_check_branch
          %270 = sbr.rel (%p268) target = $region32
        $region31: #{tpu_custom_call.1} parent=11 // pred_region
          _
        $region32: #{tpu_custom_call.1} parent=11 // pred_fallthru
          _
        // Predicated region
        $region33: #{tpu_custom_call.1} parent=11 // pred_check
          %p271 = pneg %p174
        $region34: #{tpu_custom_call.1} parent=11 // pred_check_branch
          %273 = sbr.rel (%p271) target = $region36
        $region35: #{tpu_custom_call.1} parent=11 // pred_region
          %s275 = ssub.s32 384, 384
          %276 = vsyncadd [#allocation9], %s275
          %s277 = sshll.u32 [#allocation8], 4
          %s278 = int_to_ptr.vmem [resolvable:$true] %s277
          %283 = dma.hbm_to_vmem [thread:$0]  %s6, 384, %s278, [#allocation9], 64, 64, 4
        $region36: #{tpu_custom_call.1} parent=11 // pred_fallthru
          _
        // Predicated region
        $region37: #{tpu_custom_call.1} parent=11 // pred_check
          %p284 = pneg %p195
        $region38: #{tpu_custom_call.1} parent=11 // pred_check_branch
          %286 = sbr.rel (%p284) target = $region40
        $region39: #{tpu_custom_call.1} parent=11 // pred_region
          %s288 = ssub.s32 384, 384
          %289 = vsyncadd [#allocation9], %s288
          %s290 = sshll.u32 [#allocation10], 4
          %s291 = int_to_ptr.vmem [resolvable:$true] %s290
          %296 = dma.hbm_to_vmem [thread:$0]  %s7, 384, %s291, [#allocation9], 64, 64, 4
        $region40: #{tpu_custom_call.1} parent=11 // pred_fallthru
          _
      $region12: #{tpu_custom_call.1} parent=5 // pred_fallthru
        _
      %p297 = scmp.lt.s32.totalorder %s22, 2
      // Predicated region
      $region41: #{tpu_custom_call.1} parent=5 // pred_check
        %p298 = pneg %p297
      $region42: #{tpu_custom_call.1} parent=5 // pred_check_branch
        %300 = sbr.rel (%p298) target = $region44
      $region43: #{tpu_custom_call.1} parent=5 // pred_region
        // Predicated region
        $region45: #{tpu_custom_call.1} parent=43 // pred_check
          %p301 = pneg %p42
        $region46: #{tpu_custom_call.1} parent=43 // pred_check_branch
          %303 = sbr.rel (%p301) target = $region48
        $region47: #{tpu_custom_call.1} parent=43 // pred_region
          %s304 = sand.u32 %s32, 1
          %s305 = scalar_lea.sflag [#allocation3], %s304
          %s306 = sand.u32 %s32, 1
          %s307 = smul.addr %s306, 8
          %s308 = scalar_lea.vmem [#allocation2], %s307
          %s310 = ssub.s32 128, 128
          %311 = vsyncadd %s305, %s310
          %s312 = smul.addr %s22, 128
          %s313 = scalar_lea.hbm %s0, %s312
          %s315 = sshll.u32 %s308, 4
          %s316 = int_to_ptr.vmem [resolvable:$true] %s315
          %318 = dma.hbm_to_vmem [thread:$0]  %s313, 128, %s316, %s305
        $region48: #{tpu_custom_call.1} parent=43 // pred_fallthru
          _
      $region44: #{tpu_custom_call.1} parent=5 // pred_fallthru
        _
      %p319 = scmp.le.s32.totalorder 1, %s22
      %p320 = scmp.lt.s32.totalorder %s22, 3
      %p321 = pnand %p319, %p320
      %p322 = pneg %p321
      // Predicated region
      $region49: #{tpu_custom_call.1} parent=5 // pred_check
        _
      $region50: #{tpu_custom_call.1} parent=5 // pred_check_branch
        %324 = sbr.rel (%p321) target = $region52
      $region51: #{tpu_custom_call.1} parent=5 // pred_region
        %s325 = ssub.s32 %s22, 1
        %s326 = sand.u32 %s35, 1
        %s327 = scalar_lea.sflag [#allocation3], %s326
        %s328 = sand.u32 %s35, 1
        %s329 = smul.addr %s328, 8
        %s330 = scalar_lea.vmem [#allocation2], %s329
        // Predicated region
        $region53: #{tpu_custom_call.1} parent=51 // pred_check
          %p331 = pneg %p48
        $region54: #{tpu_custom_call.1} parent=51 // pred_check_branch
          %333 = sbr.rel (%p331) target = $region56
        $region55: #{tpu_custom_call.1} parent=51 // pred_region
          %334 = dma.done %s327, 128
        $region56: #{tpu_custom_call.1} parent=51 // pred_fallthru
          _
        // Predicated region
        $region57: #{tpu_custom_call.1} parent=51 // pred_check
          %p335 = pneg %p69
        $region58: #{tpu_custom_call.1} parent=51 // pred_check_branch
          %337 = sbr.rel (%p335) target = $region60
        $region59: #{tpu_custom_call.1} parent=51 // pred_region
          %338 = dma.done [#allocation6], 18432
        $region60: #{tpu_custom_call.1} parent=51 // pred_fallthru
          _
        // Predicated region
        $region61: #{tpu_custom_call.1} parent=51 // pred_check
          %p339 = pneg %p90
        $region62: #{tpu_custom_call.1} parent=51 // pred_check_branch
          %341 = sbr.rel (%p339) target = $region64
        $region63: #{tpu_custom_call.1} parent=51 // pred_region
          %342 = dma.done [#allocation6], 192
        $region64: #{tpu_custom_call.1} parent=51 // pred_fallthru
          _
        // Predicated region
        $region65: #{tpu_custom_call.1} parent=51 // pred_check
          %p343 = pneg %p174
        $region66: #{tpu_custom_call.1} parent=51 // pred_check_branch
          %345 = sbr.rel (%p343) target = $region68
        $region67: #{tpu_custom_call.1} parent=51 // pred_region
          %346 = dma.done [#allocation9], 384
        $region68: #{tpu_custom_call.1} parent=51 // pred_fallthru
          _
        // Predicated region
        $region69: #{tpu_custom_call.1} parent=51 // pred_check
          %p347 = pneg %p195
        $region70: #{tpu_custom_call.1} parent=51 // pred_check_branch
          %349 = sbr.rel (%p347) target = $region72
        $region71: #{tpu_custom_call.1} parent=51 // pred_region
          %350 = dma.done [#allocation9], 384
        $region72: #{tpu_custom_call.1} parent=51 // pred_fallthru
          _
        %s351 = sand.u32 %s35, 1
        %s352 = scalar_lea.sflag [#allocation3], %s351
        %s353 = sand.u32 %s35, 1
        %s354 = smul.addr %s353, 8
        %s355 = scalar_lea.vmem [#allocation2], %s354
        %p356 = pneg %p48
        %p357 = pneg %p45
        %p358 = pneg %p69
        %p359 = pneg %p66
        %p360 = pneg %p90
        %p361 = pneg %p87
        %p362 = pneg %p111
        %p363 = pneg %p108
        %p364 = pneg %p132
        %p365 = pneg %p129
        %p366 = pneg %p153
        %p367 = pneg %p150
        %p368 = pneg %p174
        %p369 = pneg %p171
        %p370 = pneg %p195
        %p371 = pneg %p192
        %p372 = pneg %p221
        %p373 = pneg %p218
        %s374 = sand.u32 %s208, 1
        %s375 = scalar_lea.sflag [#allocation4], %s374
        %s376 = sand.u32 %s208, 1
        %s377 = smul.addr %s376, 16
        %s378 = scalar_lea.vmem [#allocation11], %s377
        %v380 = vld [vmem:[%s330] sm:$0xff]
        %v381 = vpack.c.bf16 %v380, %v380
        %v382 = vld [vmem:[#allocation5] sm:$0xf]
        %v383 = vld [vmem:[#allocation5 + $0x4] sm:$0xf]
        %v384 = vld [vmem:[#allocation5 + $0x8] sm:$0xf]
        %v385 = vld [vmem:[#allocation5 + $0xc] sm:$0xf]
        %v386 = vld [vmem:[#allocation5 + $0x10] sm:$0xf]
        %v387 = vld [vmem:[#allocation5 + $0x14] sm:$0xf]
        %v388 = vld [vmem:[#allocation5 + $0x18] sm:$0xf]
        %v389 = vld [vmem:[#allocation5 + $0x1c] sm:$0xf]
        %v390 = vld [vmem:[#allocation5 + $0x20] sm:$0xf]
        %v391 = vld [vmem:[#allocation5 + $0x24] sm:$0xf]
        %v392 = vld [vmem:[#allocation5 + $0x28] sm:$0xf]
        %v393 = vld [vmem:[#allocation5 + $0x2c] sm:$0xf]
        %v394 = vld [vmem:[#allocation5 + $0x30] sm:$0xf]
        %v395 = vld [vmem:[#allocation5 + $0x34] sm:$0xf]
        %v396 = vld [vmem:[#allocation5 + $0x38] sm:$0xf]
        %v397 = vld [vmem:[#allocation5 + $0x3c] sm:$0xf]
        %v414 = vunpack.c.l.b16 %v382
        %v415 = vunpack.c.l.b16 %v383
        %v416 = vunpack.c.l.b16 %v384
        %v417 = vunpack.c.l.b16 %v385
        %v418 = vunpack.c.l.b16 %v386
        %v419 = vunpack.c.l.b16 %v387
        %v420 = vunpack.c.l.b16 %v388
        %v421 = vunpack.c.l.b16 %v389
        %v422 = vunpack.c.l.b16 %v390
        %v423 = vunpack.c.l.b16 %v391
        %v424 = vunpack.c.l.b16 %v392
        %v425 = vunpack.c.l.b16 %v393
        %v426 = vunpack.c.l.b16 %v394
        %v427 = vunpack.c.l.b16 %v395
        %v428 = vunpack.c.l.b16 %v396
        %v429 = vunpack.c.l.b16 %v397
        %v430 = vpack.c.b16 %v415, %v414
        %v431 = vpack.c.b16 %v417, %v416
        %v432 = vpack.c.b16 %v419, %v418
        %v433 = vpack.c.b16 %v421, %v420
        %v434 = vpack.c.b16 %v423, %v422
        %v435 = vpack.c.b16 %v425, %v424
        %v436 = vpack.c.b16 %v427, %v426
        %v437 = vpack.c.b16 %v429, %v428
        %446 = vmatprep.subr.bf16.mxu0 0
        %447 = vmatpush1.bf16.msra.mxu0 %v430
        %448 = vmatprep.subr.bf16.mxu0 0
        %449 = vmatpush1.bf16.msra.mxu0 %v431
        %450 = vmatprep.subr.bf16.mxu0 0
        %451 = vmatpush1.bf16.msra.mxu0 %v432
        %452 = vmatprep.subr.bf16.mxu0 0
        %453 = vmatpush1.bf16.msra.mxu0 %v433
        %454 = vmatprep.subr.bf16.mxu0 0
        %455 = vmatpush1.bf16.msra.mxu0 %v434
        %456 = vmatprep.subr.bf16.mxu0 0
        %457 = vmatpush1.bf16.msra.mxu0 %v435
        %458 = vmatprep.subr.bf16.mxu0 0
        %459 = vmatpush1.bf16.msra.mxu0 %v436
        %460 = vmatprep.subr.bf16.mxu0 0
        %461 = vmatpush1.bf16.msra.mxu0 %v437
        %462 = vmatprep.subr.bf16.mxu0 0
        %463 = vmatpush1.bf16.msra.mxu0 0
        %464 = vmatprep.subr.bf16.mxu0 0
        %465 = vmatpush1.bf16.msra.mxu0 0
        %466 = vmatprep.subr.bf16.mxu0 0
        %467 = vmatpush1.bf16.msra.mxu0 0
        %468 = vmatprep.subr.bf16.mxu0 0
        %469 = vmatpush1.bf16.msra.mxu0 0
        %470 = vmatprep.subr.bf16.mxu0 0
        %471 = vmatpush1.bf16.msra.mxu0 0
        %472 = vmatprep.subr.bf16.mxu0 0
        %473 = vmatpush1.bf16.msra.mxu0 0
        %474 = vmatprep.subr.bf16.mxu0 0
        %475 = vmatpush1.bf16.msra.mxu0 0
        %476 = vmatprep.subr.bf16.mxu0 0
        %477 = vmatpush1.bf16.msra.mxu0 0
        %478 = vmatprep.mubr.bf16.mxu0 0
        %479 = vmatmul.mubr.bf16.gmra.mrb[0].mxu0 %v381
        %v480 = vpop.f32.mrb[0].mxu0
        %v481 = vadd.f32 0.0, %v480
        %v482 = vpop.f32.mrb[0].mxu0
        %v483 = vpop.f32.mrb[0].mxu0
        %v484 = vpop.f32.mrb[0].mxu0
        %485 = vdwg.mxu0
        %v486 = vpack.c.bf16 %v481, %v481
        %v487 = vld [vmem:[#allocation7] sm:$0xf]
        %s488 = scalar_lea.vmem [#allocation5], 64
        %v489 = vld [vmem:[%s488] sm:$0xf]
        %v490 = vld [vmem:[%s488 + $0x4] sm:$0xf]
        %v491 = vld [vmem:[%s488 + $0x8] sm:$0xf]
        %v492 = vld [vmem:[%s488 + $0xc] sm:$0xf]
        %v493 = vld [vmem:[%s488 + $0x10] sm:$0xf]
        %v494 = vld [vmem:[%s488 + $0x14] sm:$0xf]
        %v495 = vld [vmem:[%s488 + $0x18] sm:$0xf]
        %v496 = vld [vmem:[%s488 + $0x1c] sm:$0xf]
        %v497 = vld [vmem:[%s488 + $0x20] sm:$0xf]
        %v498 = vld [vmem:[%s488 + $0x24] sm:$0xf]
        %v499 = vld [vmem:[%s488 + $0x28] sm:$0xf]
        %v500 = vld [vmem:[%s488 + $0x2c] sm:$0xf]
        %v501 = vld [vmem:[%s488 + $0x30] sm:$0xf]
        %v502 = vld [vmem:[%s488 + $0x34] sm:$0xf]
        %v503 = vld [vmem:[%s488 + $0x38] sm:$0xf]
        %v504 = vld [vmem:[%s488 + $0x3c] sm:$0xf]
        %v521 = vunpack.c.l.b16 %v489
        %v522 = vunpack.c.l.b16 %v490
        %v523 = vunpack.c.l.b16 %v491
        %v524 = vunpack.c.l.b16 %v492
        %v525 = vunpack.c.l.b16 %v493
        %v526 = vunpack.c.l.b16 %v494
        %v527 = vunpack.c.l.b16 %v495
        %v528 = vunpack.c.l.b16 %v496
        %v529 = vunpack.c.l.b16 %v497
        %v530 = vunpack.c.l.b16 %v498
        %v531 = vunpack.c.l.b16 %v499
        %v532 = vunpack.c.l.b16 %v500
        %v533 = vunpack.c.l.b16 %v501
        %v534 = vunpack.c.l.b16 %v502
        %v535 = vunpack.c.l.b16 %v503
        %v536 = vunpack.c.l.b16 %v504
        %v537 = vpack.c.b16 %v522, %v521
        %v538 = vpack.c.b16 %v524, %v523
        %v539 = vpack.c.b16 %v526, %v525
        %v540 = vpack.c.b16 %v528, %v527
        %v541 = vpack.c.b16 %v530, %v529
        %v542 = vpack.c.b16 %v532, %v531
        %v543 = vpack.c.b16 %v534, %v533
        %v544 = vpack.c.b16 %v536, %v535
        %553 = vmatprep.subr.bf16.mxu0 0
        %554 = vmatpush1.bf16.msra.mxu0 %v537
        %555 = vmatprep.subr.bf16.mxu0 0
        %556 = vmatpush1.bf16.msra.mxu0 %v538
        %557 = vmatprep.subr.bf16.mxu0 0
        %558 = vmatpush1.bf16.msra.mxu0 %v539
        %559 = vmatprep.subr.bf16.mxu0 0
        %560 = vmatpush1.bf16.msra.mxu0 %v540
        %561 = vmatprep.subr.bf16.mxu0 0
        %562 = vmatpush1.bf16.msra.mxu0 %v541
        %563 = vmatprep.subr.bf16.mxu0 0
        %564 = vmatpush1.bf16.msra.mxu0 %v542
        %565 = vmatprep.subr.bf16.mxu0 0
        %566 = vmatpush1.bf16.msra.mxu0 %v543
        %567 = vmatprep.subr.bf16.mxu0 0
        %568 = vmatpush1.bf16.msra.mxu0 %v544
        %569 = vmatprep.subr.bf16.mxu0 0
        %570 = vmatpush1.bf16.msra.mxu0 0
        %571 = vmatprep.subr.bf16.mxu0 0
        %572 = vmatpush1.bf16.msra.mxu0 0
        %573 = vmatprep.subr.bf16.mxu0 0
        %574 = vmatpush1.bf16.msra.mxu0 0
        %575 = vmatprep.subr.bf16.mxu0 0
        %576 = vmatpush1.bf16.msra.mxu0 0
        %577 = vmatprep.subr.bf16.mxu0 0
        %578 = vmatpush1.bf16.msra.mxu0 0
        %579 = vmatprep.subr.bf16.mxu0 0
        %580 = vmatpush1.bf16.msra.mxu0 0
        %581 = vmatprep.subr.bf16.mxu0 0
        %582 = vmatpush1.bf16.msra.mxu0 0
        %583 = vmatprep.subr.bf16.mxu0 0
        %584 = vmatpush1.bf16.msra.mxu0 0
        %585 = vmatprep.mubr.bf16.mxu0 0
        %586 = vmatmul.mubr.bf16.gmra.mrb[0].mxu0 %v381
        %v587 = vpop.f32.mrb[0].mxu0
        %v588 = vadd.f32 0.0, %v587
        %v589 = vpop.f32.mrb[0].mxu0
        %v590 = vpop.f32.mrb[0].mxu0
        %v591 = vpop.f32.mrb[0].mxu0
        %592 = vdwg.mxu0
        %v593 = vpack.c.bf16 %v588, %v588
        %s594 = scalar_lea.vmem [#allocation7], 4
        %v595 = vld [vmem:[%s594] sm:$0xf]
        %vm596 = vcmask 64512
        %v598 = vsel %vm596, %v595, 0
        %vm600 = vcmask 1043456
        %v602 = vsel %vm600, %v593, 0
        %604 = vmatprep.subr.bf16.mxu0 0
        %605 = vmatpush1.bf16.msra.mxu0 %v602
        %606 = vmatprep.subr.bf16.mxu0 0
        %607 = vmatpush1.bf16.msra.mxu0 0
        %608 = vmatprep.subr.bf16.mxu0 0
        %609 = vmatpush1.bf16.msra.mxu0 0
        %610 = vmatprep.subr.bf16.mxu0 0
        %611 = vmatpush1.bf16.msra.mxu0 0
        %612 = vmatprep.subr.bf16.mxu0 0
        %613 = vmatpush1.bf16.msra.mxu0 0
        %614 = vmatprep.subr.bf16.mxu0 0
        %615 = vmatpush1.bf16.msra.mxu0 0
        %616 = vmatprep.subr.bf16.mxu0 0
        %617 = vmatpush1.bf16.msra.mxu0 0
        %618 = vmatprep.subr.bf16.mxu0 0
        %619 = vmatpush1.bf16.msra.mxu0 0
        %620 = vmatprep.subr.bf16.mxu0 0
        %621 = vmatpush1.bf16.msra.mxu0 0
        %622 = vmatprep.subr.bf16.mxu0 0
        %623 = vmatpush1.bf16.msra.mxu0 0
        %624 = vmatprep.subr.bf16.mxu0 0
        %625 = vmatpush1.bf16.msra.mxu0 0
        %626 = vmatprep.subr.bf16.mxu0 0
        %627 = vmatpush1.bf16.msra.mxu0 0
        %628 = vmatprep.subr.bf16.mxu0 0
        %629 = vmatpush1.bf16.msra.mxu0 0
        %630 = vmatprep.subr.bf16.mxu0 0
        %631 = vmatpush1.bf16.msra.mxu0 0
        %632 = vmatprep.subr.bf16.mxu0 0
        %633 = vmatpush1.bf16.msra.mxu0 0
        %634 = vmatprep.subr.bf16.mxu0 0
        %635 = vmatpush1.bf16.msra.mxu0 0
        %636 = vmatprep.mubr.bf16.mxu0 0
        %637 = vmatmul.mubr.bf16.gmra.mrb[0].mxu0 %v598
        %v638 = vpop.f32.mrb[0].mxu0
        %v639 = vadd.f32 0.0, %v638
        %v640 = vpop.f32.mrb[0].mxu0
        %v641 = vpop.f32.mrb[0].mxu0
        %v642 = vpop.f32.mrb[0].mxu0
        %643 = vdwg.mxu0
        %v645 = vsel %vm596, %v487, 0
        %v648 = vsel %vm600, %v486, 0
        %650 = vmatprep.subr.bf16.mxu0 0
        %651 = vmatpush1.bf16.msra.mxu0 %v648
        %652 = vmatprep.subr.bf16.mxu0 0
        %653 = vmatpush1.bf16.msra.mxu0 0
        %654 = vmatprep.subr.bf16.mxu0 0
        %655 = vmatpush1.bf16.msra.mxu0 0
        %656 = vmatprep.subr.bf16.mxu0 0
        %657 = vmatpush1.bf16.msra.mxu0 0
        %658 = vmatprep.subr.bf16.mxu0 0
        %659 = vmatpush1.bf16.msra.mxu0 0
        %660 = vmatprep.subr.bf16.mxu0 0
        %661 = vmatpush1.bf16.msra.mxu0 0
        %662 = vmatprep.subr.bf16.mxu0 0
        %663 = vmatpush1.bf16.msra.mxu0 0
        %664 = vmatprep.subr.bf16.mxu0 0
        %665 = vmatpush1.bf16.msra.mxu0 0
        %666 = vmatprep.subr.bf16.mxu0 0
        %667 = vmatpush1.bf16.msra.mxu0 0
        %668 = vmatprep.subr.bf16.mxu0 0
        %669 = vmatpush1.bf16.msra.mxu0 0
        %670 = vmatprep.subr.bf16.mxu0 0
        %671 = vmatpush1.bf16.msra.mxu0 0
        %672 = vmatprep.subr.bf16.mxu0 0
        %673 = vmatpush1.bf16.msra.mxu0 0
        %674 = vmatprep.subr.bf16.mxu0 0
        %675 = vmatpush1.bf16.msra.mxu0 0
        %676 = vmatprep.subr.bf16.mxu0 0
        %677 = vmatpush1.bf16.msra.mxu0 0
        %678 = vmatprep.subr.bf16.mxu0 0
        %679 = vmatpush1.bf16.msra.mxu0 0
        %680 = vmatprep.subr.bf16.mxu0 0
        %681 = vmatpush1.bf16.msra.mxu0 0
        %682 = vmatprep.mubr.bf16.mxu0 0
        %683 = vmatmul.mubr.bf16.gmra.mrb[0].mxu0 %v645
        %v684 = vpop.f32.mrb[0].mxu0
        %v685 = vadd.f32 %v639, %v684
        %v686 = vpop.f32.mrb[0].mxu0
        %v687 = vpop.f32.mrb[0].mxu0
        %v688 = vpop.f32.mrb[0].mxu0
        %689 = vdwg.mxu0
        %s690 = scalar_lea.vmem [#allocation5], 128
        %v691 = vld [vmem:[%s690] sm:$0xf]
        %v692 = vld [vmem:[%s690 + $0x4] sm:$0xf]
        %v693 = vld [vmem:[%s690 + $0x8] sm:$0xf]
        %v694 = vld [vmem:[%s690 + $0xc] sm:$0xf]
        %v695 = vld [vmem:[%s690 + $0x10] sm:$0xf]
        %v696 = vld [vmem:[%s690 + $0x14] sm:$0xf]
        %v697 = vld [vmem:[%s690 + $0x18] sm:$0xf]
        %v698 = vld [vmem:[%s690 + $0x1c] sm:$0xf]
        %v699 = vld [vmem:[%s690 + $0x20] sm:$0xf]
        %v700 = vld [vmem:[%s690 + $0x24] sm:$0xf]
        %v701 = vld [vmem:[%s690 + $0x28] sm:$0xf]
        %v702 = vld [vmem:[%s690 + $0x2c] sm:$0xf]
        %v703 = vld [vmem:[%s690 + $0x30] sm:$0xf]
        %v704 = vld [vmem:[%s690 + $0x34] sm:$0xf]
        %v705 = vld [vmem:[%s690 + $0x38] sm:$0xf]
        %v706 = vld [vmem:[%s690 + $0x3c] sm:$0xf]
        %v723 = vunpack.c.l.b16 %v691
        %v724 = vunpack.c.l.b16 %v692
        %v725 = vunpack.c.l.b16 %v693
        %v726 = vunpack.c.l.b16 %v694
        %v727 = vunpack.c.l.b16 %v695
        %v728 = vunpack.c.l.b16 %v696
        %v729 = vunpack.c.l.b16 %v697
        %v730 = vunpack.c.l.b16 %v698
        %v731 = vunpack.c.l.b16 %v699
        %v732 = vunpack.c.l.b16 %v700
        %v733 = vunpack.c.l.b16 %v701
        %v734 = vunpack.c.l.b16 %v702
        %v735 = vunpack.c.l.b16 %v703
        %v736 = vunpack.c.l.b16 %v704
        %v737 = vunpack.c.l.b16 %v705
        %v738 = vunpack.c.l.b16 %v706
        %v739 = vpack.c.b16 %v724, %v723
        %v740 = vpack.c.b16 %v726, %v725
        %v741 = vpack.c.b16 %v728, %v727
        %v742 = vpack.c.b16 %v730, %v729
        %v743 = vpack.c.b16 %v732, %v731
        %v744 = vpack.c.b16 %v734, %v733
        %v745 = vpack.c.b16 %v736, %v735
        %v746 = vpack.c.b16 %v738, %v737
        %755 = vmatprep.subr.bf16.mxu0 0
        %756 = vmatpush1.bf16.msra.mxu0 %v739
        %757 = vmatprep.subr.bf16.mxu0 0
        %758 = vmatpush1.bf16.msra.mxu0 %v740
        %759 = vmatprep.subr.bf16.mxu0 0
        %760 = vmatpush1.bf16.msra.mxu0 %v741
        %761 = vmatprep.subr.bf16.mxu0 0
        %762 = vmatpush1.bf16.msra.mxu0 %v742
        %763 = vmatprep.subr.bf16.mxu0 0
        %764 = vmatpush1.bf16.msra.mxu0 %v743
        %765 = vmatprep.subr.bf16.mxu0 0
        %766 = vmatpush1.bf16.msra.mxu0 %v744
        %767 = vmatprep.subr.bf16.mxu0 0
        %768 = vmatpush1.bf16.msra.mxu0 %v745
        %769 = vmatprep.subr.bf16.mxu0 0
        %770 = vmatpush1.bf16.msra.mxu0 %v746
        %771 = vmatprep.subr.bf16.mxu0 0
        %772 = vmatpush1.bf16.msra.mxu0 0
        %773 = vmatprep.subr.bf16.mxu0 0
        %774 = vmatpush1.bf16.msra.mxu0 0
        %775 = vmatprep.subr.bf16.mxu0 0
        %776 = vmatpush1.bf16.msra.mxu0 0
        %777 = vmatprep.subr.bf16.mxu0 0
        %778 = vmatpush1.bf16.msra.mxu0 0
        %779 = vmatprep.subr.bf16.mxu0 0
        %780 = vmatpush1.bf16.msra.mxu0 0
        %781 = vmatprep.subr.bf16.mxu0 0
        %782 = vmatpush1.bf16.msra.mxu0 0
        %783 = vmatprep.subr.bf16.mxu0 0
        %784 = vmatpush1.bf16.msra.mxu0 0
        %785 = vmatprep.subr.bf16.mxu0 0
        %786 = vmatpush1.bf16.msra.mxu0 0
        %787 = vmatprep.mubr.bf16.mxu0 0
        %788 = vmatmul.mubr.bf16.gmra.mrb[0].mxu0 %v381
        %v789 = vpop.f32.mrb[0].mxu0
        %v790 = vadd.f32 0.0, %v789
        %v791 = vpop.f32.mrb[0].mxu0
        %v792 = vpop.f32.mrb[0].mxu0
        %v793 = vpop.f32.mrb[0].mxu0
        %794 = vdwg.mxu0
        %v795 = vpack.c.bf16 %v790, %v790
        %s796 = scalar_lea.vmem [#allocation7], 8
        %v797 = vld [vmem:[%s796] sm:$0xf]
        %v799 = vsel %vm596, %v797, 0
        %v802 = vsel %vm600, %v795, 0
        %804 = vmatprep.subr.bf16.mxu0 0
        %805 = vmatpush1.bf16.msra.mxu0 %v802
        %806 = vmatprep.subr.bf16.mxu0 0
        %807 = vmatpush1.bf16.msra.mxu0 0
        %808 = vmatprep.subr.bf16.mxu0 0
        %809 = vmatpush1.bf16.msra.mxu0 0
        %810 = vmatprep.subr.bf16.mxu0 0
        %811 = vmatpush1.bf16.msra.mxu0 0
        %812 = vmatprep.subr.bf16.mxu0 0
        %813 = vmatpush1.bf16.msra.mxu0 0
        %814 = vmatprep.subr.bf16.mxu0 0
        %815 = vmatpush1.bf16.msra.mxu0 0
        %816 = vmatprep.subr.bf16.mxu0 0
        %817 = vmatpush1.bf16.msra.mxu0 0
        %818 = vmatprep.subr.bf16.mxu0 0
        %819 = vmatpush1.bf16.msra.mxu0 0
        %820 = vmatprep.subr.bf16.mxu0 0
        %821 = vmatpush1.bf16.msra.mxu0 0
        %822 = vmatprep.subr.bf16.mxu0 0
        %823 = vmatpush1.bf16.msra.mxu0 0
        %824 = vmatprep.subr.bf16.mxu0 0
        %825 = vmatpush1.bf16.msra.mxu0 0
        %826 = vmatprep.subr.bf16.mxu0 0
        %827 = vmatpush1.bf16.msra.mxu0 0
        %828 = vmatprep.subr.bf16.mxu0 0
        %829 = vmatpush1.bf16.msra.mxu0 0
        %830 = vmatprep.subr.bf16.mxu0 0
        %831 = vmatpush1.bf16.msra.mxu0 0
        %832 = vmatprep.subr.bf16.mxu0 0
        %833 = vmatpush1.bf16.msra.mxu0 0
        %834 = vmatprep.subr.bf16.mxu0 0
        %835 = vmatpush1.bf16.msra.mxu0 0
        %836 = vmatprep.mubr.bf16.mxu0 0
        %837 = vmatmul.mubr.bf16.gmra.mrb[0].mxu0 %v799
        %v838 = vpop.f32.mrb[0].mxu0
        %v839 = vadd.f32 0.0, %v838
        %v840 = vpop.f32.mrb[0].mxu0
        %v841 = vpop.f32.mrb[0].mxu0
        %v842 = vpop.f32.mrb[0].mxu0
        %843 = vdwg.mxu0
        %v844 = vadd.f32 %v685, %v839
        %845 = vadd.xlane.f32.xlu0 %v844
        %v846 = vpop.xlane.xlu0 %845
        %v847 = vmul.f32 %v846, 0.125
        %v848 = vmul.f32 %v844, %v844
        %849 = vadd.xlane.f32.xlu0 %v848
        %v850 = vpop.xlane.xlu0 %849
        %v851 = vmul.f32 %v850, 0.125
        %v852 = vmul.f32 %v847, %v847
        %v853 = vsub.f32 %v851, %v852
        %v854 = vsub.f32 %v844, %v847
        %v855 = vadd.f32 %v853, 1e-05
        %v856 = vrsqrt.pop %v855
        %v857 = vmul.f32 %v854, %v856
        %vm858 = vcmp.ge.f32.partialorder %v857, 0.0
        %v859 = vmul.f32 %v857, 0.2
        %v860 = vsel %vm858, %v857, %v859
        %v861 = vpack.c.bf16 %v860, %v860
        %s862 = scalar_lea.vmem [#allocation5], 192
        %v863 = vld [vmem:[%s862] sm:$0xf]
        %v864 = vld [vmem:[%s862 + $0x4] sm:$0xf]
        %v865 = vld [vmem:[%s862 + $0x8] sm:$0xf]
        %v866 = vld [vmem:[%s862 + $0xc] sm:$0xf]
        %v867 = vld [vmem:[%s862 + $0x10] sm:$0xf]
        %v868 = vld [vmem:[%s862 + $0x14] sm:$0xf]
        %v869 = vld [vmem:[%s862 + $0x18] sm:$0xf]
        %v870 = vld [vmem:[%s862 + $0x1c] sm:$0xf]
        %v871 = vld [vmem:[%s862 + $0x20] sm:$0xf]
        %v872 = vld [vmem:[%s862 + $0x24] sm:$0xf]
        %v873 = vld [vmem:[%s862 + $0x28] sm:$0xf]
        %v874 = vld [vmem:[%s862 + $0x2c] sm:$0xf]
        %v875 = vld [vmem:[%s862 + $0x30] sm:$0xf]
        %v876 = vld [vmem:[%s862 + $0x34] sm:$0xf]
        %v877 = vld [vmem:[%s862 + $0x38] sm:$0xf]
        %v878 = vld [vmem:[%s862 + $0x3c] sm:$0xf]
        %v895 = vunpack.c.l.b16 %v863
        %v896 = vunpack.c.l.b16 %v864
        %v897 = vunpack.c.l.b16 %v865
        %v898 = vunpack.c.l.b16 %v866
        %v899 = vunpack.c.l.b16 %v867
        %v900 = vunpack.c.l.b16 %v868
        %v901 = vunpack.c.l.b16 %v869
        %v902 = vunpack.c.l.b16 %v870
        %v903 = vunpack.c.l.b16 %v871
        %v904 = vunpack.c.l.b16 %v872
        %v905 = vunpack.c.l.b16 %v873
        %v906 = vunpack.c.l.b16 %v874
        %v907 = vunpack.c.l.b16 %v875
        %v908 = vunpack.c.l.b16 %v876
        %v909 = vunpack.c.l.b16 %v877
        %v910 = vunpack.c.l.b16 %v878
        %v911 = vpack.c.b16 %v896, %v895
        %v912 = vpack.c.b16 %v898, %v897
        %v913 = vpack.c.b16 %v900, %v899
        %v914 = vpack.c.b16 %v902, %v901
        %v915 = vpack.c.b16 %v904, %v903
        %v916 = vpack.c.b16 %v906, %v905
        %v917 = vpack.c.b16 %v908, %v907
        %v918 = vpack.c.b16 %v910, %v909
        %927 = vmatprep.subr.bf16.mxu0 0
        %928 = vmatpush1.bf16.msra.mxu0 %v911
        %929 = vmatprep.subr.bf16.mxu0 0
        %930 = vmatpush1.bf16.msra.mxu0 %v912
        %931 = vmatprep.subr.bf16.mxu0 0
        %932 = vmatpush1.bf16.msra.mxu0 %v913
        %933 = vmatprep.subr.bf16.mxu0 0
        %934 = vmatpush1.bf16.msra.mxu0 %v914
        %935 = vmatprep.subr.bf16.mxu0 0
        %936 = vmatpush1.bf16.msra.mxu0 %v915
        %937 = vmatprep.subr.bf16.mxu0 0
        %938 = vmatpush1.bf16.msra.mxu0 %v916
        %939 = vmatprep.subr.bf16.mxu0 0
        %940 = vmatpush1.bf16.msra.mxu0 %v917
        %941 = vmatprep.subr.bf16.mxu0 0
        %942 = vmatpush1.bf16.msra.mxu0 %v918
        %943 = vmatprep.subr.bf16.mxu0 0
        %944 = vmatpush1.bf16.msra.mxu0 0
        %945 = vmatprep.subr.bf16.mxu0 0
        %946 = vmatpush1.bf16.msra.mxu0 0
        %947 = vmatprep.subr.bf16.mxu0 0
        %948 = vmatpush1.bf16.msra.mxu0 0
        %949 = vmatprep.subr.bf16.mxu0 0
        %950 = vmatpush1.bf16.msra.mxu0 0
        %951 = vmatprep.subr.bf16.mxu0 0
        %952 = vmatpush1.bf16.msra.mxu0 0
        %953 = vmatprep.subr.bf16.mxu0 0
        %954 = vmatpush1.bf16.msra.mxu0 0
        %955 = vmatprep.subr.bf16.mxu0 0
        %956 = vmatpush1.bf16.msra.mxu0 0
        %957 = vmatprep.subr.bf16.mxu0 0
        %958 = vmatpush1.bf16.msra.mxu0 0
        %959 = vmatprep.mubr.bf16.mxu0 0
        %960 = vmatmul.mubr.bf16.gmra.mrb[0].mxu0 %v861
        %v961 = vpop.f32.mrb[0].mxu0
        %v962 = vadd.f32 0.0, %v961
        %v963 = vpop.f32.mrb[0].mxu0
        %v964 = vpop.f32.mrb[0].mxu0
        %v965 = vpop.f32.mrb[0].mxu0
        %966 = vdwg.mxu0
        %v967 = vpack.c.bf16 %v962, %v962
        %v968 = vld [vmem:[%s3] sm:$0xf]
        %v969 = vld [vmem:[%s3 + $0x4] sm:$0xf]
        %s970 = scalar_lea.vmem [#allocation5], 256
        %v971 = vld [vmem:[%s970] sm:$0xf]
        %v972 = vld [vmem:[%s970 + $0x4] sm:$0xf]
        %v973 = vld [vmem:[%s970 + $0x8] sm:$0xf]
        %v974 = vld [vmem:[%s970 + $0xc] sm:$0xf]
        %v975 = vld [vmem:[%s970 + $0x10] sm:$0xf]
        %v976 = vld [vmem:[%s970 + $0x14] sm:$0xf]
        %v977 = vld [vmem:[%s970 + $0x18] sm:$0xf]
        %v978 = vld [vmem:[%s970 + $0x1c] sm:$0xf]
        %v979 = vld [vmem:[%s970 + $0x20] sm:$0xf]
        %v980 = vld [vmem:[%s970 + $0x24] sm:$0xf]
        %v981 = vld [vmem:[%s970 + $0x28] sm:$0xf]
        %v982 = vld [vmem:[%s970 + $0x2c] sm:$0xf]
        %v983 = vld [vmem:[%s970 + $0x30] sm:$0xf]
        %v984 = vld [vmem:[%s970 + $0x34] sm:$0xf]
        %v985 = vld [vmem:[%s970 + $0x38] sm:$0xf]
        %v986 = vld [vmem:[%s970 + $0x3c] sm:$0xf]
        %v1003 = vunpack.c.l.b16 %v971
        %v1004 = vunpack.c.l.b16 %v972
        %v1005 = vunpack.c.l.b16 %v973
        %v1006 = vunpack.c.l.b16 %v974
        %v1007 = vunpack.c.l.b16 %v975
        %v1008 = vunpack.c.l.b16 %v976
        %v1009 = vunpack.c.l.b16 %v977
        %v1010 = vunpack.c.l.b16 %v978
        %v1011 = vunpack.c.l.b16 %v979
        %v1012 = vunpack.c.l.b16 %v980
        %v1013 = vunpack.c.l.b16 %v981
        %v1014 = vunpack.c.l.b16 %v982
        %v1015 = vunpack.c.l.b16 %v983
        %v1016 = vunpack.c.l.b16 %v984
        %v1017 = vunpack.c.l.b16 %v985
        %v1018 = vunpack.c.l.b16 %v986
        %v1019 = vpack.c.b16 %v1004, %v1003
        %v1020 = vpack.c.b16 %v1006, %v1005
        %v1021 = vpack.c.b16 %v1008, %v1007
        %v1022 = vpack.c.b16 %v1010, %v1009
        %v1023 = vpack.c.b16 %v1012, %v1011
        %v1024 = vpack.c.b16 %v1014, %v1013
        %v1025 = vpack.c.b16 %v1016, %v1015
        %v1026 = vpack.c.b16 %v1018, %v1017
        %1035 = vmatprep.subr.bf16.mxu0 0
        %1036 = vmatpush1.bf16.msra.mxu0 %v1019
        %1037 = vmatprep.subr.bf16.mxu0 0
        %1038 = vmatpush1.bf16.msra.mxu0 %v1020
        %1039 = vmatprep.subr.bf16.mxu0 0
        %1040 = vmatpush1.bf16.msra.mxu0 %v1021
        %1041 = vmatprep.subr.bf16.mxu0 0
        %1042 = vmatpush1.bf16.msra.mxu0 %v1022
        %1043 = vmatprep.subr.bf16.mxu0 0
        %1044 = vmatpush1.bf16.msra.mxu0 %v1023
        %1045 = vmatprep.subr.bf16.mxu0 0
        %1046 = vmatpush1.bf16.msra.mxu0 %v1024
        %1047 = vmatprep.subr.bf16.mxu0 0
        %1048 = vmatpush1.bf16.msra.mxu0 %v1025
        %1049 = vmatprep.subr.bf16.mxu0 0
        %1050 = vmatpush1.bf16.msra.mxu0 %v1026
        %1051 = vmatprep.subr.bf16.mxu0 0
        %1052 = vmatpush1.bf16.msra.mxu0 0
        %1053 = vmatprep.subr.bf16.mxu0 0
        %1054 = vmatpush1.bf16.msra.mxu0 0
        %1055 = vmatprep.subr.bf16.mxu0 0
        %1056 = vmatpush1.bf16.msra.mxu0 0
        %1057 = vmatprep.subr.bf16.mxu0 0
        %1058 = vmatpush1.bf16.msra.mxu0 0
        %1059 = vmatprep.subr.bf16.mxu0 0
        %1060 = vmatpush1.bf16.msra.mxu0 0
        %1061 = vmatprep.subr.bf16.mxu0 0
        %1062 = vmatpush1.bf16.msra.mxu0 0
        %1063 = vmatprep.subr.bf16.mxu0 0
        %1064 = vmatpush1.bf16.msra.mxu0 0
        %1065 = vmatprep.subr.bf16.mxu0 0
        %1066 = vmatpush1.bf16.msra.mxu0 0
        %1067 = vmatprep.mubr.bf16.mxu0 0
        %1068 = vmatmul.mubr.bf16.gmra.mrb[0].mxu0 %v861
        %v1069 = vpop.f32.mrb[0].mxu0
        %v1070 = vadd.f32 0.0, %v1069
        %v1071 = vpop.f32.mrb[0].mxu0
        %v1072 = vpop.f32.mrb[0].mxu0
        %v1073 = vpop.f32.mrb[0].mxu0
        %1074 = vdwg.mxu0
        %v1075 = vpack.c.bf16 %v1070, %v1070
        %s1076 = scalar_lea.vmem %s3, 8
        %v1077 = vld [vmem:[%s1076] sm:$0xf]
        %v1078 = vld [vmem:[%s1076 + $0x4] sm:$0xf]
        %v1081 = vunpack.c.l.b16 %v1077
        %v1082 = vunpack.c.l.b16 %v1078
        %v1083 = vpack.c.b16 %v1082, %v1081
        %v1085 = vsel %vm596, %v1083, 0
        %v1088 = vsel %vm600, %v1075, 0
        %1090 = vmatprep.subr.bf16.mxu0 0
        %1091 = vmatpush1.bf16.msra.mxu0 %v1088
        %1092 = vmatprep.subr.bf16.mxu0 0
        %1093 = vmatpush1.bf16.msra.mxu0 0
        %1094 = vmatprep.subr.bf16.mxu0 0
        %1095 = vmatpush1.bf16.msra.mxu0 0
        %1096 = vmatprep.subr.bf16.mxu0 0
        %1097 = vmatpush1.bf16.msra.mxu0 0
        %1098 = vmatprep.subr.bf16.mxu0 0
        %1099 = vmatpush1.bf16.msra.mxu0 0
        %1100 = vmatprep.subr.bf16.mxu0 0
        %1101 = vmatpush1.bf16.msra.mxu0 0
        %1102 = vmatprep.subr.bf16.mxu0 0
        %1103 = vmatpush1.bf16.msra.mxu0 0
        %1104 = vmatprep.subr.bf16.mxu0 0
        %1105 = vmatpush1.bf16.msra.mxu0 0
        %1106 = vmatprep.subr.bf16.mxu0 0
        %1107 = vmatpush1.bf16.msra.mxu0 0
        %1108 = vmatprep.subr.bf16.mxu0 0
        %1109 = vmatpush1.bf16.msra.mxu0 0
        %1110 = vmatprep.subr.bf16.mxu0 0
        %1111 = vmatpush1.bf16.msra.mxu0 0
        %1112 = vmatprep.subr.bf16.mxu0 0
        %1113 = vmatpush1.bf16.msra.mxu0 0
        %1114 = vmatprep.subr.bf16.mxu0 0
        %1115 = vmatpush1.bf16.msra.mxu0 0
        %1116 = vmatprep.subr.bf16.mxu0 0
        %1117 = vmatpush1.bf16.msra.mxu0 0
        %1118 = vmatprep.subr.bf16.mxu0 0
        %1119 = vmatpush1.bf16.msra.mxu0 0
        %1120 = vmatprep.subr.bf16.mxu0 0
        %1121 = vmatpush1.bf16.msra.mxu0 0
        %1122 = vmatprep.mubr.bf16.mxu0 0
        %1123 = vmatmul.mubr.bf16.gmra.mrb[0].mxu0 %v1085
        %v1124 = vpop.f32.mrb[0].mxu0
        %v1125 = vadd.f32 0.0, %v1124
        %v1126 = vpop.f32.mrb[0].mxu0
        %v1127 = vpop.f32.mrb[0].mxu0
        %v1128 = vadd.f32 0.0, %v1127
        %v1129 = vpop.f32.mrb[0].mxu0
        %1130 = vdwg.mxu0
        %v1133 = vunpack.c.l.b16 %v968
        %v1134 = vunpack.c.l.b16 %v969
        %v1135 = vpack.c.b16 %v1134, %v1133
        %v1137 = vsel %vm596, %v1135, 0
        %v1140 = vsel %vm600, %v967, 0
        %1142 = vmatprep.subr.bf16.mxu0 0
        %1143 = vmatpush1.bf16.msra.mxu0 %v1140
        %1144 = vmatprep.subr.bf16.mxu0 0
        %1145 = vmatpush1.bf16.msra.mxu0 0
        %1146 = vmatprep.subr.bf16.mxu0 0
        %1147 = vmatpush1.bf16.msra.mxu0 0
        %1148 = vmatprep.subr.bf16.mxu0 0
        %1149 = vmatpush1.bf16.msra.mxu0 0
        %1150 = vmatprep.subr.bf16.mxu0 0
        %1151 = vmatpush1.bf16.msra.mxu0 0
        %1152 = vmatprep.subr.bf16.mxu0 0
        %1153 = vmatpush1.bf16.msra.mxu0 0
        %1154 = vmatprep.subr.bf16.mxu0 0
        %1155 = vmatpush1.bf16.msra.mxu0 0
        %1156 = vmatprep.subr.bf16.mxu0 0
        %1157 = vmatpush1.bf16.msra.mxu0 0
        %1158 = vmatprep.subr.bf16.mxu0 0
        %1159 = vmatpush1.bf16.msra.mxu0 0
        %1160 = vmatprep.subr.bf16.mxu0 0
        %1161 = vmatpush1.bf16.msra.mxu0 0
        %1162 = vmatprep.subr.bf16.mxu0 0
        %1163 = vmatpush1.bf16.msra.mxu0 0
        %1164 = vmatprep.subr.bf16.mxu0 0
        %1165 = vmatpush1.bf16.msra.mxu0 0
        %1166 = vmatprep.subr.bf16.mxu0 0
        %1167 = vmatpush1.bf16.msra.mxu0 0
        %1168 = vmatprep.subr.bf16.mxu0 0
        %1169 = vmatpush1.bf16.msra.mxu0 0
        %1170 = vmatprep.subr.bf16.mxu0 0
        %1171 = vmatpush1.bf16.msra.mxu0 0
        %1172 = vmatprep.subr.bf16.mxu0 0
        %1173 = vmatpush1.bf16.msra.mxu0 0
        %1174 = vmatprep.mubr.bf16.mxu0 0
        %1175 = vmatmul.mubr.bf16.gmra.mrb[0].mxu0 %v1137
        %v1176 = vpop.f32.mrb[0].mxu0
        %v1177 = vadd.f32 %v1125, %v1176
        %v1178 = vpop.f32.mrb[0].mxu0
        %v1179 = vpop.f32.mrb[0].mxu0
        %v1180 = vadd.f32 %v1128, %v1179
        %v1181 = vpop.f32.mrb[0].mxu0
        %1182 = vdwg.mxu0
        %s1183 = scalar_lea.vmem [#allocation5], 320
        %v1184 = vld [vmem:[%s1183] sm:$0xf]
        %v1185 = vld [vmem:[%s1183 + $0x4] sm:$0xf]
        %v1186 = vld [vmem:[%s1183 + $0x8] sm:$0xf]
        %v1187 = vld [vmem:[%s1183 + $0xc] sm:$0xf]
        %v1188 = vld [vmem:[%s1183 + $0x10] sm:$0xf]
        %v1189 = vld [vmem:[%s1183 + $0x14] sm:$0xf]
        %v1190 = vld [vmem:[%s1183 + $0x18] sm:$0xf]
        %v1191 = vld [vmem:[%s1183 + $0x1c] sm:$0xf]
        %v1192 = vld [vmem:[%s1183 + $0x20] sm:$0xf]
        %v1193 = vld [vmem:[%s1183 + $0x24] sm:$0xf]
        %v1194 = vld [vmem:[%s1183 + $0x28] sm:$0xf]
        %v1195 = vld [vmem:[%s1183 + $0x2c] sm:$0xf]
        %v1196 = vld [vmem:[%s1183 + $0x30] sm:$0xf]
        %v1197 = vld [vmem:[%s1183 + $0x34] sm:$0xf]
        %v1198 = vld [vmem:[%s1183 + $0x38] sm:$0xf]
        %v1199 = vld [vmem:[%s1183 + $0x3c] sm:$0xf]
        %v1216 = vunpack.c.l.b16 %v1184
        %v1217 = vunpack.c.l.b16 %v1185
        %v1218 = vunpack.c.l.b16 %v1186
        %v1219 = vunpack.c.l.b16 %v1187
        %v1220 = vunpack.c.l.b16 %v1188
        %v1221 = vunpack.c.l.b16 %v1189
        %v1222 = vunpack.c.l.b16 %v1190
        %v1223 = vunpack.c.l.b16 %v1191
        %v1224 = vunpack.c.l.b16 %v1192
        %v1225 = vunpack.c.l.b16 %v1193
        %v1226 = vunpack.c.l.b16 %v1194
        %v1227 = vunpack.c.l.b16 %v1195
        %v1228 = vunpack.c.l.b16 %v1196
        %v1229 = vunpack.c.l.b16 %v1197
        %v1230 = vunpack.c.l.b16 %v1198
        %v1231 = vunpack.c.l.b16 %v1199
        %v1232 = vpack.c.b16 %v1217, %v1216
        %v1233 = vpack.c.b16 %v1219, %v1218
        %v1234 = vpack.c.b16 %v1221, %v1220
        %v1235 = vpack.c.b16 %v1223, %v1222
        %v1236 = vpack.c.b16 %v1225, %v1224
        %v1237 = vpack.c.b16 %v1227, %v1226
        %v1238 = vpack.c.b16 %v1229, %v1228
        %v1239 = vpack.c.b16 %v1231, %v1230
        %1248 = vmatprep.subr.bf16.mxu0 0
        %1249 = vmatpush1.bf16.msra.mxu0 %v1232
        %1250 = vmatprep.subr.bf16.mxu0 0
        %1251 = vmatpush1.bf16.msra.mxu0 %v1233
        %1252 = vmatprep.subr.bf16.mxu0 0
        %1253 = vmatpush1.bf16.msra.mxu0 %v1234
        %1254 = vmatprep.subr.bf16.mxu0 0
        %1255 = vmatpush1.bf16.msra.mxu0 %v1235
        %1256 = vmatprep.subr.bf16.mxu0 0
        %1257 = vmatpush1.bf16.msra.mxu0 %v1236
        %1258 = vmatprep.subr.bf16.mxu0 0
        %1259 = vmatpush1.bf16.msra.mxu0 %v1237
        %1260 = vmatprep.subr.bf16.mxu0 0
        %1261 = vmatpush1.bf16.msra.mxu0 %v1238
        %1262 = vmatprep.subr.bf16.mxu0 0
        %1263 = vmatpush1.bf16.msra.mxu0 %v1239
        %1264 = vmatprep.subr.bf16.mxu0 0
        %1265 = vmatpush1.bf16.msra.mxu0 0
        %1266 = vmatprep.subr.bf16.mxu0 0
        %1267 = vmatpush1.bf16.msra.mxu0 0
        %1268 = vmatprep.subr.bf16.mxu0 0
        %1269 = vmatpush1.bf16.msra.mxu0 0
        %1270 = vmatprep.subr.bf16.mxu0 0
        %1271 = vmatpush1.bf16.msra.mxu0 0
        %1272 = vmatprep.subr.bf16.mxu0 0
        %1273 = vmatpush1.bf16.msra.mxu0 0
        %1274 = vmatprep.subr.bf16.mxu0 0
        %1275 = vmatpush1.bf16.msra.mxu0 0
        %1276 = vmatprep.subr.bf16.mxu0 0
        %1277 = vmatpush1.bf16.msra.mxu0 0
        %1278 = vmatprep.subr.bf16.mxu0 0
        %1279 = vmatpush1.bf16.msra.mxu0 0
        %1280 = vmatprep.mubr.bf16.mxu0 0
        %1281 = vmatmul.mubr.bf16.gmra.mrb[0].mxu0 %v861
        %v1282 = vpop.f32.mrb[0].mxu0
        %v1283 = vadd.f32 0.0, %v1282
        %v1284 = vpop.f32.mrb[0].mxu0
        %v1285 = vpop.f32.mrb[0].mxu0
        %v1286 = vpop.f32.mrb[0].mxu0
        %1287 = vdwg.mxu0
        %v1288 = vpack.c.bf16 %v1283, %v1283
        %s1289 = scalar_lea.vmem %s3, 16
        %v1290 = vld [vmem:[%s1289] sm:$0xf]
        %v1291 = vld [vmem:[%s1289 + $0x4] sm:$0xf]
        %v1294 = vunpack.c.l.b16 %v1290
        %v1295 = vunpack.c.l.b16 %v1291
        %v1296 = vpack.c.b16 %v1295, %v1294
        %v1298 = vsel %vm596, %v1296, 0
        %v1301 = vsel %vm600, %v1288, 0
        %1303 = vmatprep.subr.bf16.mxu0 0
        %1304 = vmatpush1.bf16.msra.mxu0 %v1301
        %1305 = vmatprep.subr.bf16.mxu0 0
        %1306 = vmatpush1.bf16.msra.mxu0 0
        %1307 = vmatprep.subr.bf16.mxu0 0
        %1308 = vmatpush1.bf16.msra.mxu0 0
        %1309 = vmatprep.subr.bf16.mxu0 0
        %1310 = vmatpush1.bf16.msra.mxu0 0
        %1311 = vmatprep.subr.bf16.mxu0 0
        %1312 = vmatpush1.bf16.msra.mxu0 0
        %1313 = vmatprep.subr.bf16.mxu0 0
        %1314 = vmatpush1.bf16.msra.mxu0 0
        %1315 = vmatprep.subr.bf16.mxu0 0
        %1316 = vmatpush1.bf16.msra.mxu0 0
        %1317 = vmatprep.subr.bf16.mxu0 0
        %1318 = vmatpush1.bf16.msra.mxu0 0
        %1319 = vmatprep.subr.bf16.mxu0 0
        %1320 = vmatpush1.bf16.msra.mxu0 0
        %1321 = vmatprep.subr.bf16.mxu0 0
        %1322 = vmatpush1.bf16.msra.mxu0 0
        %1323 = vmatprep.subr.bf16.mxu0 0
        %1324 = vmatpush1.bf16.msra.mxu0 0
        %1325 = vmatprep.subr.bf16.mxu0 0
        %1326 = vmatpush1.bf16.msra.mxu0 0
        %1327 = vmatprep.subr.bf16.mxu0 0
        %1328 = vmatpush1.bf16.msra.mxu0 0
        %1329 = vmatprep.subr.bf16.mxu0 0
        %1330 = vmatpush1.bf16.msra.mxu0 0
        %1331 = vmatprep.subr.bf16.mxu0 0
        %1332 = vmatpush1.bf16.msra.mxu0 0
        %1333 = vmatprep.subr.bf16.mxu0 0
        %1334 = vmatpush1.bf16.msra.mxu0 0
        %1335 = vmatprep.mubr.bf16.mxu0 0
        %1336 = vmatmul.mubr.bf16.gmra.mrb[0].mxu0 %v1298
        %v1337 = vpop.f32.mrb[0].mxu0
        %v1338 = vadd.f32 0.0, %v1337
        %v1339 = vpop.f32.mrb[0].mxu0
        %v1340 = vpop.f32.mrb[0].mxu0
        %v1341 = vadd.f32 0.0, %v1340
        %v1342 = vpop.f32.mrb[0].mxu0
        %1343 = vdwg.mxu0
        %v1344 = vadd.f32 %v1177, %v1338
        %v1345 = vadd.f32 %v1180, %v1341
        %1346 = vadd.xlane.f32.xlu0 %v1344
        %v1347 = vpop.xlane.xlu0 %1346
        %1348 = vadd.xlane.f32.xlu0 %v1345
        %v1349 = vpop.xlane.xlu0 %1348
        %v1350 = vmul.f32 %v1347, 0.25
        %v1351 = vmul.f32 %v1349, 0.25
        %v1352 = vmul.f32 %v1344, %v1344
        %v1353 = vmul.f32 %v1345, %v1345
        %1354 = vadd.xlane.f32.xlu0 %v1352
        %v1355 = vpop.xlane.xlu0 %1354
        %1356 = vadd.xlane.f32.xlu0 %v1353
        %v1357 = vpop.xlane.xlu0 %1356
        %v1358 = vmul.f32 %v1355, 0.25
        %v1359 = vmul.f32 %v1357, 0.25
        %v1360 = vmul.f32 %v1350, %v1350
        %v1361 = vmul.f32 %v1351, %v1351
        %v1362 = vsub.f32 %v1358, %v1360
        %v1363 = vsub.f32 %v1359, %v1361
        %v1364 = vsub.f32 %v1344, %v1350
        %v1365 = vsub.f32 %v1345, %v1351
        %v1366 = vadd.f32 %v1362, 1e-05
        %v1367 = vadd.f32 %v1363, 1e-05
        %v1368 = vrsqrt.pop %v1366
        %v1369 = vrsqrt.pop %v1367
        %v1370 = vmul.f32 %v1364, %v1368
        %v1371 = vmul.f32 %v1365, %v1369
        %vm1372 = vcmp.ge.f32.partialorder %v1370, 0.0
        %vm1373 = vcmp.ge.f32.partialorder %v1371, 0.0
        %v1374 = vmul.f32 %v1370, 0.2
        %v1375 = vmul.f32 %v1371, 0.2
        %v1376 = vsel %vm1372, %v1370, %v1374
        %v1377 = vsel %vm1373, %v1371, %v1375
        %v1378 = vpack.c.bf16 %v1377, %v1376
        %s1379 = scalar_lea.vmem [#allocation5], 384
        %v1380 = vld [vmem:[%s1379] sm:$0xf]
        %v1381 = vld [vmem:[%s1379 + $0x4] sm:$0xf]
        %v1382 = vld [vmem:[%s1379 + $0x8] sm:$0xf]
        %v1383 = vld [vmem:[%s1379 + $0xc] sm:$0xf]
        %v1384 = vld [vmem:[%s1379 + $0x10] sm:$0xf]
        %v1385 = vld [vmem:[%s1379 + $0x14] sm:$0xf]
        %v1386 = vld [vmem:[%s1379 + $0x18] sm:$0xf]
        %v1387 = vld [vmem:[%s1379 + $0x1c] sm:$0xf]
        %v1388 = vld [vmem:[%s1379 + $0x20] sm:$0xf]
        %v1389 = vld [vmem:[%s1379 + $0x24] sm:$0xf]
        %v1390 = vld [vmem:[%s1379 + $0x28] sm:$0xf]
        %v1391 = vld [vmem:[%s1379 + $0x2c] sm:$0xf]
        %v1392 = vld [vmem:[%s1379 + $0x30] sm:$0xf]
        %v1393 = vld [vmem:[%s1379 + $0x34] sm:$0xf]
        %v1394 = vld [vmem:[%s1379 + $0x38] sm:$0xf]
        %v1395 = vld [vmem:[%s1379 + $0x3c] sm:$0xf]
        %v1412 = vunpack.c.l.b16 %v1380
        %v1413 = vunpack.c.l.b16 %v1381
        %v1414 = vunpack.c.l.b16 %v1382
        %v1415 = vunpack.c.l.b16 %v1383
        %v1416 = vunpack.c.l.b16 %v1384
        %v1417 = vunpack.c.l.b16 %v1385
        %v1418 = vunpack.c.l.b16 %v1386
        %v1419 = vunpack.c.l.b16 %v1387
        %v1420 = vunpack.c.l.b16 %v1388
        %v1421 = vunpack.c.l.b16 %v1389
        %v1422 = vunpack.c.l.b16 %v1390
        %v1423 = vunpack.c.l.b16 %v1391
        %v1424 = vunpack.c.l.b16 %v1392
        %v1425 = vunpack.c.l.b16 %v1393
        %v1426 = vunpack.c.l.b16 %v1394
        %v1427 = vunpack.c.l.b16 %v1395
        %v1428 = vpack.c.b16 %v1413, %v1412
        %v1429 = vpack.c.b16 %v1415, %v1414
        %v1430 = vpack.c.b16 %v1417, %v1416
        %v1431 = vpack.c.b16 %v1419, %v1418
        %v1432 = vpack.c.b16 %v1421, %v1420
        %v1433 = vpack.c.b16 %v1423, %v1422
        %v1434 = vpack.c.b16 %v1425, %v1424
        %v1435 = vpack.c.b16 %v1427, %v1426
        %1444 = vmatprep.subr.bf16.mxu0 0
        %1445 = vmatpush1.bf16.msra.mxu0 %v1428
        %1446 = vmatprep.subr.bf16.mxu0 0
        %1447 = vmatpush1.bf16.msra.mxu0 %v1429
        %1448 = vmatprep.subr.bf16.mxu0 0
        %1449 = vmatpush1.bf16.msra.mxu0 %v1430
        %1450 = vmatprep.subr.bf16.mxu0 0
        %1451 = vmatpush1.bf16.msra.mxu0 %v1431
        %1452 = vmatprep.subr.bf16.mxu0 0
        %1453 = vmatpush1.bf16.msra.mxu0 %v1432
        %1454 = vmatprep.subr.bf16.mxu0 0
        %1455 = vmatpush1.bf16.msra.mxu0 %v1433
        %1456 = vmatprep.subr.bf16.mxu0 0
        %1457 = vmatpush1.bf16.msra.mxu0 %v1434
        %1458 = vmatprep.subr.bf16.mxu0 0
        %1459 = vmatpush1.bf16.msra.mxu0 %v1435
        %1460 = vmatprep.subr.bf16.mxu0 0
        %1461 = vmatpush1.bf16.msra.mxu0 0
        %1462 = vmatprep.subr.bf16.mxu0 0
        %1463 = vmatpush1.bf16.msra.mxu0 0
        %1464 = vmatprep.subr.bf16.mxu0 0
        %1465 = vmatpush1.bf16.msra.mxu0 0
        %1466 = vmatprep.subr.bf16.mxu0 0
        %1467 = vmatpush1.bf16.msra.mxu0 0
        %1468 = vmatprep.subr.bf16.mxu0 0
        %1469 = vmatpush1.bf16.msra.mxu0 0
        %1470 = vmatprep.subr.bf16.mxu0 0
        %1471 = vmatpush1.bf16.msra.mxu0 0
        %1472 = vmatprep.subr.bf16.mxu0 0
        %1473 = vmatpush1.bf16.msra.mxu0 0
        %1474 = vmatprep.subr.bf16.mxu0 0
        %1475 = vmatpush1.bf16.msra.mxu0 0
        %1476 = vmatprep.mubr.bf16.mxu0 0
        %1477 = vmatmul.mubr.bf16.gmra.mrb[0].mxu0 %v1378
        %v1478 = vpop.f32.mrb[0].mxu0
        %v1479 = vadd.f32 0.0, %v1478
        %v1480 = vpop.f32.mrb[0].mxu0
        %v1481 = vpop.f32.mrb[0].mxu0
        %v1482 = vadd.f32 0.0, %v1481
        %v1483 = vpop.f32.mrb[0].mxu0
        %1484 = vdwg.mxu0
        %v1485 = vpack.c.bf16 %v1482, %v1479
        %v1486 = vld [vmem:[%s4] sm:$0xf]
        %v1487 = vld [vmem:[%s4 + $0x4] sm:$0xf]
        %s1488 = scalar_lea.vmem [#allocation5], 448
        %v1489 = vld [vmem:[%s1488] sm:$0xf]
        %v1490 = vld [vmem:[%s1488 + $0x4] sm:$0xf]
        %v1491 = vld [vmem:[%s1488 + $0x8] sm:$0xf]
        %v1492 = vld [vmem:[%s1488 + $0xc] sm:$0xf]
        %v1493 = vld [vmem:[%s1488 + $0x10] sm:$0xf]
        %v1494 = vld [vmem:[%s1488 + $0x14] sm:$0xf]
        %v1495 = vld [vmem:[%s1488 + $0x18] sm:$0xf]
        %v1496 = vld [vmem:[%s1488 + $0x1c] sm:$0xf]
        %v1497 = vld [vmem:[%s1488 + $0x20] sm:$0xf]
        %v1498 = vld [vmem:[%s1488 + $0x24] sm:$0xf]
        %v1499 = vld [vmem:[%s1488 + $0x28] sm:$0xf]
        %v1500 = vld [vmem:[%s1488 + $0x2c] sm:$0xf]
        %v1501 = vld [vmem:[%s1488 + $0x30] sm:$0xf]
        %v1502 = vld [vmem:[%s1488 + $0x34] sm:$0xf]
        %v1503 = vld [vmem:[%s1488 + $0x38] sm:$0xf]
        %v1504 = vld [vmem:[%s1488 + $0x3c] sm:$0xf]
        %v1521 = vunpack.c.l.b16 %v1489
        %v1522 = vunpack.c.l.b16 %v1490
        %v1523 = vunpack.c.l.b16 %v1491
        %v1524 = vunpack.c.l.b16 %v1492
        %v1525 = vunpack.c.l.b16 %v1493
        %v1526 = vunpack.c.l.b16 %v1494
        %v1527 = vunpack.c.l.b16 %v1495
        %v1528 = vunpack.c.l.b16 %v1496
        %v1529 = vunpack.c.l.b16 %v1497
        %v1530 = vunpack.c.l.b16 %v1498
        %v1531 = vunpack.c.l.b16 %v1499
        %v1532 = vunpack.c.l.b16 %v1500
        %v1533 = vunpack.c.l.b16 %v1501
        %v1534 = vunpack.c.l.b16 %v1502
        %v1535 = vunpack.c.l.b16 %v1503
        %v1536 = vunpack.c.l.b16 %v1504
        %v1537 = vpack.c.b16 %v1522, %v1521
        %v1538 = vpack.c.b16 %v1524, %v1523
        %v1539 = vpack.c.b16 %v1526, %v1525
        %v1540 = vpack.c.b16 %v1528, %v1527
        %v1541 = vpack.c.b16 %v1530, %v1529
        %v1542 = vpack.c.b16 %v1532, %v1531
        %v1543 = vpack.c.b16 %v1534, %v1533
        %v1544 = vpack.c.b16 %v1536, %v1535
        %1553 = vmatprep.subr.bf16.mxu0 0
        %1554 = vmatpush1.bf16.msra.mxu0 %v1537
        %1555 = vmatprep.subr.bf16.mxu0 0
        %1556 = vmatpush1.bf16.msra.mxu0 %v1538
        %1557 = vmatprep.subr.bf16.mxu0 0
        %1558 = vmatpush1.bf16.msra.mxu0 %v1539
        %1559 = vmatprep.subr.bf16.mxu0 0
        %1560 = vmatpush1.bf16.msra.mxu0 %v1540
        %1561 = vmatprep.subr.bf16.mxu0 0
        %1562 = vmatpush1.bf16.msra.mxu0 %v1541
        %1563 = vmatprep.subr.bf16.mxu0 0
        %1564 = vmatpush1.bf16.msra.mxu0 %v1542
        %1565 = vmatprep.subr.bf16.mxu0 0
        %1566 = vmatpush1.bf16.msra.mxu0 %v1543
        %1567 = vmatprep.subr.bf16.mxu0 0
        %1568 = vmatpush1.bf16.msra.mxu0 %v1544
        %1569 = vmatprep.subr.bf16.mxu0 0
        %1570 = vmatpush1.bf16.msra.mxu0 0
        %1571 = vmatprep.subr.bf16.mxu0 0
        %1572 = vmatpush1.bf16.msra.mxu0 0
        %1573 = vmatprep.subr.bf16.mxu0 0
        %1574 = vmatpush1.bf16.msra.mxu0 0
        %1575 = vmatprep.subr.bf16.mxu0 0
        %1576 = vmatpush1.bf16.msra.mxu0 0
        %1577 = vmatprep.subr.bf16.mxu0 0
        %1578 = vmatpush1.bf16.msra.mxu0 0
        %1579 = vmatprep.subr.bf16.mxu0 0
        %1580 = vmatpush1.bf16.msra.mxu0 0
        %1581 = vmatprep.subr.bf16.mxu0 0
        %1582 = vmatpush1.bf16.msra.mxu0 0
        %1583 = vmatprep.subr.bf16.mxu0 0
        %1584 = vmatpush1.bf16.msra.mxu0 0
        %1585 = vmatprep.mubr.bf16.mxu0 0
        %1586 = vmatmul.mubr.bf16.gmra.mrb[0].mxu0 %v1378
        %v1587 = vpop.f32.mrb[0].mxu0
        %v1588 = vadd.f32 0.0, %v1587
        %v1589 = vpop.f32.mrb[0].mxu0
        %v1590 = vpop.f32.mrb[0].mxu0
        %v1591 = vadd.f32 0.0, %v1590
        %v1592 = vpop.f32.mrb[0].mxu0
        %1593 = vdwg.mxu0
        %v1594 = vpack.c.bf16 %v1591, %v1588
        %s1595 = scalar_lea.vmem %s4, 8
        %v1596 = vld [vmem:[%s1595] sm:$0xf]
        %v1597 = vld [vmem:[%s1595 + $0x4] sm:$0xf]
        %v1600 = vunpack.c.l.b16 %v1596
        %v1601 = vunpack.c.l.b16 %v1597
        %v1602 = vpack.c.b16 %v1601, %v1600
        %vm1603 = vcmask 130048
        %v1605 = vsel %vm1603, %v1602, 0
        %1607 = vmatprep.subr.bf16.mxu0 0
        %1608 = vmatpush1.bf16.msra.mxu0 %v1594
        %1609 = vmatprep.subr.bf16.mxu0 0
        %1610 = vmatpush1.bf16.msra.mxu0 0
        %1611 = vmatprep.subr.bf16.mxu0 0
        %1612 = vmatpush1.bf16.msra.mxu0 0
        %1613 = vmatprep.subr.bf16.mxu0 0
        %1614 = vmatpush1.bf16.msra.mxu0 0
        %1615 = vmatprep.subr.bf16.mxu0 0
        %1616 = vmatpush1.bf16.msra.mxu0 0
        %1617 = vmatprep.subr.bf16.mxu0 0
        %1618 = vmatpush1.bf16.msra.mxu0 0
        %1619 = vmatprep.subr.bf16.mxu0 0
        %1620 = vmatpush1.bf16.msra.mxu0 0
        %1621 = vmatprep.subr.bf16.mxu0 0
        %1622 = vmatpush1.bf16.msra.mxu0 0
        %1623 = vmatprep.subr.bf16.mxu0 0
        %1624 = vmatpush1.bf16.msra.mxu0 0
        %1625 = vmatprep.subr.bf16.mxu0 0
        %1626 = vmatpush1.bf16.msra.mxu0 0
        %1627 = vmatprep.subr.bf16.mxu0 0
        %1628 = vmatpush1.bf16.msra.mxu0 0
        %1629 = vmatprep.subr.bf16.mxu0 0
        %1630 = vmatpush1.bf16.msra.mxu0 0
        %1631 = vmatprep.subr.bf16.mxu0 0
        %1632 = vmatpush1.bf16.msra.mxu0 0
        %1633 = vmatprep.subr.bf16.mxu0 0
        %1634 = vmatpush1.bf16.msra.mxu0 0
        %1635 = vmatprep.subr.bf16.mxu0 0
        %1636 = vmatpush1.bf16.msra.mxu0 0
        %1637 = vmatprep.subr.bf16.mxu0 0
        %1638 = vmatpush1.bf16.msra.mxu0 0
        %1639 = vmatprep.mubr.bf16.mxu0 0
        %1640 = vmatmul.mubr.bf16.gmra.mrb[0].mxu0 %v1605
        %v1641 = vpop.f32.mrb[0].mxu0
        %v1642 = vadd.f32 0.0, %v1641
        %v1643 = vpop.f32.mrb[0].mxu0
        %v1644 = vpop.f32.mrb[0].mxu0
        %v1645 = vadd.f32 0.0, %v1644
        %v1646 = vpop.f32.mrb[0].mxu0
        %1647 = vdwg.mxu0
        %v1650 = vunpack.c.l.b16 %v1486
        %v1651 = vunpack.c.l.b16 %v1487
        %v1652 = vpack.c.b16 %v1651, %v1650
        %v1654 = vsel %vm1603, %v1652, 0
        %1656 = vmatprep.subr.bf16.mxu0 0
        %1657 = vmatpush1.bf16.msra.mxu0 %v1485
        %1658 = vmatprep.subr.bf16.mxu0 0
        %1659 = vmatpush1.bf16.msra.mxu0 0
        %1660 = vmatprep.subr.bf16.mxu0 0
        %1661 = vmatpush1.bf16.msra.mxu0 0
        %1662 = vmatprep.subr.bf16.mxu0 0
        %1663 = vmatpush1.bf16.msra.mxu0 0
        %1664 = vmatprep.subr.bf16.mxu0 0
        %1665 = vmatpush1.bf16.msra.mxu0 0
        %1666 = vmatprep.subr.bf16.mxu0 0
        %1667 = vmatpush1.bf16.msra.mxu0 0
        %1668 = vmatprep.subr.bf16.mxu0 0
        %1669 = vmatpush1.bf16.msra.mxu0 0
        %1670 = vmatprep.subr.bf16.mxu0 0
        %1671 = vmatpush1.bf16.msra.mxu0 0
        %1672 = vmatprep.subr.bf16.mxu0 0
        %1673 = vmatpush1.bf16.msra.mxu0 0
        %1674 = vmatprep.subr.bf16.mxu0 0
        %1675 = vmatpush1.bf16.msra.mxu0 0
        %1676 = vmatprep.subr.bf16.mxu0 0
        %1677 = vmatpush1.bf16.msra.mxu0 0
        %1678 = vmatprep.subr.bf16.mxu0 0
        %1679 = vmatpush1.bf16.msra.mxu0 0
        %1680 = vmatprep.subr.bf16.mxu0 0
        %1681 = vmatpush1.bf16.msra.mxu0 0
        %1682 = vmatprep.subr.bf16.mxu0 0
        %1683 = vmatpush1.bf16.msra.mxu0 0
        %1684 = vmatprep.subr.bf16.mxu0 0
        %1685 = vmatpush1.bf16.msra.mxu0 0
        %1686 = vmatprep.subr.bf16.mxu0 0
        %1687 = vmatpush1.bf16.msra.mxu0 0
        %1688 = vmatprep.mubr.bf16.mxu0 0
        %1689 = vmatmul.mubr.bf16.gmra.mrb[0].mxu0 %v1654
        %v1690 = vpop.f32.mrb[0].mxu0
        %v1691 = vadd.f32 %v1642, %v1690
        %v1692 = vpop.f32.mrb[0].mxu0
        %v1693 = vpop.f32.mrb[0].mxu0
        %v1694 = vadd.f32 %v1645, %v1693
        %v1695 = vpop.f32.mrb[0].mxu0
        %1696 = vdwg.mxu0
        %s1697 = scalar_lea.vmem [#allocation5], 512
        %v1698 = vld [vmem:[%s1697] sm:$0xf]
        %v1699 = vld [vmem:[%s1697 + $0x4] sm:$0xf]
        %v1700 = vld [vmem:[%s1697 + $0x8] sm:$0xf]
        %v1701 = vld [vmem:[%s1697 + $0xc] sm:$0xf]
        %v1702 = vld [vmem:[%s1697 + $0x10] sm:$0xf]
        %v1703 = vld [vmem:[%s1697 + $0x14] sm:$0xf]
        %v1704 = vld [vmem:[%s1697 + $0x18] sm:$0xf]
        %v1705 = vld [vmem:[%s1697 + $0x1c] sm:$0xf]
        %v1706 = vld [vmem:[%s1697 + $0x20] sm:$0xf]
        %v1707 = vld [vmem:[%s1697 + $0x24] sm:$0xf]
        %v1708 = vld [vmem:[%s1697 + $0x28] sm:$0xf]
        %v1709 = vld [vmem:[%s1697 + $0x2c] sm:$0xf]
        %v1710 = vld [vmem:[%s1697 + $0x30] sm:$0xf]
        %v1711 = vld [vmem:[%s1697 + $0x34] sm:$0xf]
        %v1712 = vld [vmem:[%s1697 + $0x38] sm:$0xf]
        %v1713 = vld [vmem:[%s1697 + $0x3c] sm:$0xf]
        %v1730 = vunpack.c.l.b16 %v1698
        %v1731 = vunpack.c.l.b16 %v1699
        %v1732 = vunpack.c.l.b16 %v1700
        %v1733 = vunpack.c.l.b16 %v1701
        %v1734 = vunpack.c.l.b16 %v1702
        %v1735 = vunpack.c.l.b16 %v1703
        %v1736 = vunpack.c.l.b16 %v1704
        %v1737 = vunpack.c.l.b16 %v1705
        %v1738 = vunpack.c.l.b16 %v1706
        %v1739 = vunpack.c.l.b16 %v1707
        %v1740 = vunpack.c.l.b16 %v1708
        %v1741 = vunpack.c.l.b16 %v1709
        %v1742 = vunpack.c.l.b16 %v1710
        %v1743 = vunpack.c.l.b16 %v1711
        %v1744 = vunpack.c.l.b16 %v1712
        %v1745 = vunpack.c.l.b16 %v1713
        %v1746 = vpack.c.b16 %v1731, %v1730
        %v1747 = vpack.c.b16 %v1733, %v1732
        %v1748 = vpack.c.b16 %v1735, %v1734
        %v1749 = vpack.c.b16 %v1737, %v1736
        %v1750 = vpack.c.b16 %v1739, %v1738
        %v1751 = vpack.c.b16 %v1741, %v1740
        %v1752 = vpack.c.b16 %v1743, %v1742
        %v1753 = vpack.c.b16 %v1745, %v1744
        %1762 = vmatprep.subr.bf16.mxu0 0
        %1763 = vmatpush1.bf16.msra.mxu0 %v1746
        %1764 = vmatprep.subr.bf16.mxu0 0
        %1765 = vmatpush1.bf16.msra.mxu0 %v1747
        %1766 = vmatprep.subr.bf16.mxu0 0
        %1767 = vmatpush1.bf16.msra.mxu0 %v1748
        %1768 = vmatprep.subr.bf16.mxu0 0
        %1769 = vmatpush1.bf16.msra.mxu0 %v1749
        %1770 = vmatprep.subr.bf16.mxu0 0
        %1771 = vmatpush1.bf16.msra.mxu0 %v1750
        %1772 = vmatprep.subr.bf16.mxu0 0
        %1773 = vmatpush1.bf16.msra.mxu0 %v1751
        %1774 = vmatprep.subr.bf16.mxu0 0
        %1775 = vmatpush1.bf16.msra.mxu0 %v1752
        %1776 = vmatprep.subr.bf16.mxu0 0
        %1777 = vmatpush1.bf16.msra.mxu0 %v1753
        %1778 = vmatprep.subr.bf16.mxu0 0
        %1779 = vmatpush1.bf16.msra.mxu0 0
        %1780 = vmatprep.subr.bf16.mxu0 0
        %1781 = vmatpush1.bf16.msra.mxu0 0
        %1782 = vmatprep.subr.bf16.mxu0 0
        %1783 = vmatpush1.bf16.msra.mxu0 0
        %1784 = vmatprep.subr.bf16.mxu0 0
        %1785 = vmatpush1.bf16.msra.mxu0 0
        %1786 = vmatprep.subr.bf16.mxu0 0
        %1787 = vmatpush1.bf16.msra.mxu0 0
        %1788 = vmatprep.subr.bf16.mxu0 0
        %1789 = vmatpush1.bf16.msra.mxu0 0
        %1790 = vmatprep.subr.bf16.mxu0 0
        %1791 = vmatpush1.bf16.msra.mxu0 0
        %1792 = vmatprep.subr.bf16.mxu0 0
        %1793 = vmatpush1.bf16.msra.mxu0 0
        %1794 = vmatprep.mubr.bf16.mxu0 0
        %1795 = vmatmul.mubr.bf16.gmra.mrb[0].mxu0 %v1378
        %v1796 = vpop.f32.mrb[0].mxu0
        %v1797 = vadd.f32 0.0, %v1796
        %v1798 = vpop.f32.mrb[0].mxu0
        %v1799 = vpop.f32.mrb[0].mxu0
        %v1800 = vadd.f32 0.0, %v1799
        %v1801 = vpop.f32.mrb[0].mxu0
        %1802 = vdwg.mxu0
        %v1803 = vpack.c.bf16 %v1800, %v1797
        %s1804 = scalar_lea.vmem %s4, 16
        %v1805 = vld [vmem:[%s1804] sm:$0xf]
        %v1806 = vld [vmem:[%s1804 + $0x4] sm:$0xf]
        %v1809 = vunpack.c.l.b16 %v1805
        %v1810 = vunpack.c.l.b16 %v1806
        %v1811 = vpack.c.b16 %v1810, %v1809
        %v1813 = vsel %vm1603, %v1811, 0
        %1815 = vmatprep.subr.bf16.mxu0 0
        %1816 = vmatpush1.bf16.msra.mxu0 %v1803
        %1817 = vmatprep.subr.bf16.mxu0 0
        %1818 = vmatpush1.bf16.msra.mxu0 0
        %1819 = vmatprep.subr.bf16.mxu0 0
        %1820 = vmatpush1.bf16.msra.mxu0 0
        %1821 = vmatprep.subr.bf16.mxu0 0
        %1822 = vmatpush1.bf16.msra.mxu0 0
        %1823 = vmatprep.subr.bf16.mxu0 0
        %1824 = vmatpush1.bf16.msra.mxu0 0
        %1825 = vmatprep.subr.bf16.mxu0 0
        %1826 = vmatpush1.bf16.msra.mxu0 0
        %1827 = vmatprep.subr.bf16.mxu0 0
        %1828 = vmatpush1.bf16.msra.mxu0 0
        %1829 = vmatprep.subr.bf16.mxu0 0
        %1830 = vmatpush1.bf16.msra.mxu0 0
        %1831 = vmatprep.subr.bf16.mxu0 0
        %1832 = vmatpush1.bf16.msra.mxu0 0
        %1833 = vmatprep.subr.bf16.mxu0 0
        %1834 = vmatpush1.bf16.msra.mxu0 0
        %1835 = vmatprep.subr.bf16.mxu0 0
        %1836 = vmatpush1.bf16.msra.mxu0 0
        %1837 = vmatprep.subr.bf16.mxu0 0
        %1838 = vmatpush1.bf16.msra.mxu0 0
        %1839 = vmatprep.subr.bf16.mxu0 0
        %1840 = vmatpush1.bf16.msra.mxu0 0
        %1841 = vmatprep.subr.bf16.mxu0 0
        %1842 = vmatpush1.bf16.msra.mxu0 0
        %1843 = vmatprep.subr.bf16.mxu0 0
        %1844 = vmatpush1.bf16.msra.mxu0 0
        %1845 = vmatprep.subr.bf16.mxu0 0
        %1846 = vmatpush1.bf16.msra.mxu0 0
        %1847 = vmatprep.mubr.bf16.mxu0 0
        %1848 = vmatmul.mubr.bf16.gmra.mrb[0].mxu0 %v1813
        %v1849 = vpop.f32.mrb[0].mxu0
        %v1850 = vadd.f32 0.0, %v1849
        %v1851 = vpop.f32.mrb[0].mxu0
        %v1852 = vpop.f32.mrb[0].mxu0
        %v1853 = vadd.f32 0.0, %v1852
        %v1854 = vpop.f32.mrb[0].mxu0
        %1855 = vdwg.mxu0
        %v1856 = vadd.f32 %v1691, %v1850
        %v1857 = vadd.f32 %v1694, %v1853
        %1858 = vadd.xlane.f32.xlu0 %v1856
        %v1859 = vpop.xlane.xlu0 %1858
        %1860 = vadd.xlane.f32.xlu0 %v1857
        %v1861 = vpop.xlane.xlu0 %1860
        %v1862 = vmul.f32 %v1859, 0.25
        %v1863 = vmul.f32 %v1861, 0.25
        %v1864 = vmul.f32 %v1856, %v1856
        %v1865 = vmul.f32 %v1857, %v1857
        %1866 = vadd.xlane.f32.xlu0 %v1864
        %v1867 = vpop.xlane.xlu0 %1866
        %1868 = vadd.xlane.f32.xlu0 %v1865
        %v1869 = vpop.xlane.xlu0 %1868
        %v1870 = vmul.f32 %v1867, 0.25
        %v1871 = vmul.f32 %v1869, 0.25
        %v1872 = vmul.f32 %v1862, %v1862
        %v1873 = vmul.f32 %v1863, %v1863
        %v1874 = vsub.f32 %v1870, %v1872
        %v1875 = vsub.f32 %v1871, %v1873
        %v1876 = vsub.f32 %v1856, %v1862
        %v1877 = vsub.f32 %v1857, %v1863
        %v1878 = vadd.f32 %v1874, 1e-05
        %v1879 = vadd.f32 %v1875, 1e-05
        %v1880 = vrsqrt.pop %v1878
        %v1881 = vrsqrt.pop %v1879
        %v1882 = vmul.f32 %v1876, %v1880
        %v1883 = vmul.f32 %v1877, %v1881
        %vm1884 = vcmp.ge.f32.partialorder %v1882, 0.0
        %vm1885 = vcmp.ge.f32.partialorder %v1883, 0.0
        %v1886 = vmul.f32 %v1882, 0.2
        %v1887 = vmul.f32 %v1883, 0.2
        %v1888 = vsel %vm1884, %v1882, %v1886
        %v1889 = vsel %vm1885, %v1883, %v1887
        %v1890 = vpack.c.bf16 %v1889, %v1888
        %s1891 = scalar_lea.vmem [#allocation5], 576
        %v1892 = vld [vmem:[%s1891] sm:$0xf]
        %v1893 = vld [vmem:[%s1891 + $0x4] sm:$0xf]
        %v1894 = vld [vmem:[%s1891 + $0x8] sm:$0xf]
        %v1895 = vld [vmem:[%s1891 + $0xc] sm:$0xf]
        %v1896 = vld [vmem:[%s1891 + $0x10] sm:$0xf]
        %v1897 = vld [vmem:[%s1891 + $0x14] sm:$0xf]
        %v1898 = vld [vmem:[%s1891 + $0x18] sm:$0xf]
        %v1899 = vld [vmem:[%s1891 + $0x1c] sm:$0xf]
        %v1900 = vld [vmem:[%s1891 + $0x20] sm:$0xf]
        %v1901 = vld [vmem:[%s1891 + $0x24] sm:$0xf]
        %v1902 = vld [vmem:[%s1891 + $0x28] sm:$0xf]
        %v1903 = vld [vmem:[%s1891 + $0x2c] sm:$0xf]
        %v1904 = vld [vmem:[%s1891 + $0x30] sm:$0xf]
        %v1905 = vld [vmem:[%s1891 + $0x34] sm:$0xf]
        %v1906 = vld [vmem:[%s1891 + $0x38] sm:$0xf]
        %v1907 = vld [vmem:[%s1891 + $0x3c] sm:$0xf]
        %v1924 = vunpack.c.l.b16 %v1892
        %v1925 = vunpack.c.l.b16 %v1893
        %v1926 = vunpack.c.l.b16 %v1894
        %v1927 = vunpack.c.l.b16 %v1895
        %v1928 = vunpack.c.l.b16 %v1896
        %v1929 = vunpack.c.l.b16 %v1897
        %v1930 = vunpack.c.l.b16 %v1898
        %v1931 = vunpack.c.l.b16 %v1899
        %v1932 = vunpack.c.l.b16 %v1900
        %v1933 = vunpack.c.l.b16 %v1901
        %v1934 = vunpack.c.l.b16 %v1902
        %v1935 = vunpack.c.l.b16 %v1903
        %v1936 = vunpack.c.l.b16 %v1904
        %v1937 = vunpack.c.l.b16 %v1905
        %v1938 = vunpack.c.l.b16 %v1906
        %v1939 = vunpack.c.l.b16 %v1907
        %v1940 = vpack.c.b16 %v1925, %v1924
        %v1941 = vpack.c.b16 %v1927, %v1926
        %v1942 = vpack.c.b16 %v1929, %v1928
        %v1943 = vpack.c.b16 %v1931, %v1930
        %v1944 = vpack.c.b16 %v1933, %v1932
        %v1945 = vpack.c.b16 %v1935, %v1934
        %v1946 = vpack.c.b16 %v1937, %v1936
        %v1947 = vpack.c.b16 %v1939, %v1938
        %1956 = vmatprep.subr.bf16.mxu0 0
        %1957 = vmatpush1.bf16.msra.mxu0 %v1940
        %1958 = vmatprep.subr.bf16.mxu0 0
        %1959 = vmatpush1.bf16.msra.mxu0 %v1941
        %1960 = vmatprep.subr.bf16.mxu0 0
        %1961 = vmatpush1.bf16.msra.mxu0 %v1942
        %1962 = vmatprep.subr.bf16.mxu0 0
        %1963 = vmatpush1.bf16.msra.mxu0 %v1943
        %1964 = vmatprep.subr.bf16.mxu0 0
        %1965 = vmatpush1.bf16.msra.mxu0 %v1944
        %1966 = vmatprep.subr.bf16.mxu0 0
        %1967 = vmatpush1.bf16.msra.mxu0 %v1945
        %1968 = vmatprep.subr.bf16.mxu0 0
        %1969 = vmatpush1.bf16.msra.mxu0 %v1946
        %1970 = vmatprep.subr.bf16.mxu0 0
        %1971 = vmatpush1.bf16.msra.mxu0 %v1947
        %1972 = vmatprep.subr.bf16.mxu0 0
        %1973 = vmatpush1.bf16.msra.mxu0 0
        %1974 = vmatprep.subr.bf16.mxu0 0
        %1975 = vmatpush1.bf16.msra.mxu0 0
        %1976 = vmatprep.subr.bf16.mxu0 0
        %1977 = vmatpush1.bf16.msra.mxu0 0
        %1978 = vmatprep.subr.bf16.mxu0 0
        %1979 = vmatpush1.bf16.msra.mxu0 0
        %1980 = vmatprep.subr.bf16.mxu0 0
        %1981 = vmatpush1.bf16.msra.mxu0 0
        %1982 = vmatprep.subr.bf16.mxu0 0
        %1983 = vmatpush1.bf16.msra.mxu0 0
        %1984 = vmatprep.subr.bf16.mxu0 0
        %1985 = vmatpush1.bf16.msra.mxu0 0
        %1986 = vmatprep.subr.bf16.mxu0 0
        %1987 = vmatpush1.bf16.msra.mxu0 0
        %1988 = vmatprep.mubr.bf16.mxu0 0
        %1989 = vmatmul.mubr.bf16.gmra.mrb[0].mxu0 %v1890
        %v1990 = vpop.f32.mrb[0].mxu0
        %v1991 = vadd.f32 0.0, %v1990
        %v1992 = vpop.f32.mrb[0].mxu0
        %v1993 = vpop.f32.mrb[0].mxu0
        %v1994 = vadd.f32 0.0, %v1993
        %v1995 = vpop.f32.mrb[0].mxu0
        %1996 = vdwg.mxu0
        %v1997 = vpack.c.bf16 %v1994, %v1991
        %v1998 = vld [vmem:[%s5] sm:$0xf]
        %v1999 = vld [vmem:[%s5 + $0x4] sm:$0xf]
        %s2000 = scalar_lea.vmem [#allocation5], 640
        %v2001 = vld [vmem:[%s2000] sm:$0xf]
        %v2002 = vld [vmem:[%s2000 + $0x4] sm:$0xf]
        %v2003 = vld [vmem:[%s2000 + $0x8] sm:$0xf]
        %v2004 = vld [vmem:[%s2000 + $0xc] sm:$0xf]
        %v2005 = vld [vmem:[%s2000 + $0x10] sm:$0xf]
        %v2006 = vld [vmem:[%s2000 + $0x14] sm:$0xf]
        %v2007 = vld [vmem:[%s2000 + $0x18] sm:$0xf]
        %v2008 = vld [vmem:[%s2000 + $0x1c] sm:$0xf]
        %v2009 = vld [vmem:[%s2000 + $0x20] sm:$0xf]
        %v2010 = vld [vmem:[%s2000 + $0x24] sm:$0xf]
        %v2011 = vld [vmem:[%s2000 + $0x28] sm:$0xf]
        %v2012 = vld [vmem:[%s2000 + $0x2c] sm:$0xf]
        %v2013 = vld [vmem:[%s2000 + $0x30] sm:$0xf]
        %v2014 = vld [vmem:[%s2000 + $0x34] sm:$0xf]
        %v2015 = vld [vmem:[%s2000 + $0x38] sm:$0xf]
        %v2016 = vld [vmem:[%s2000 + $0x3c] sm:$0xf]
        %v2033 = vunpack.c.l.b16 %v2001
        %v2034 = vunpack.c.l.b16 %v2002
        %v2035 = vunpack.c.l.b16 %v2003
        %v2036 = vunpack.c.l.b16 %v2004
        %v2037 = vunpack.c.l.b16 %v2005
        %v2038 = vunpack.c.l.b16 %v2006
        %v2039 = vunpack.c.l.b16 %v2007
        %v2040 = vunpack.c.l.b16 %v2008
        %v2041 = vunpack.c.l.b16 %v2009
        %v2042 = vunpack.c.l.b16 %v2010
        %v2043 = vunpack.c.l.b16 %v2011
        %v2044 = vunpack.c.l.b16 %v2012
        %v2045 = vunpack.c.l.b16 %v2013
        %v2046 = vunpack.c.l.b16 %v2014
        %v2047 = vunpack.c.l.b16 %v2015
        %v2048 = vunpack.c.l.b16 %v2016
        %v2049 = vpack.c.b16 %v2034, %v2033
        %v2050 = vpack.c.b16 %v2036, %v2035
        %v2051 = vpack.c.b16 %v2038, %v2037
        %v2052 = vpack.c.b16 %v2040, %v2039
        %v2053 = vpack.c.b16 %v2042, %v2041
        %v2054 = vpack.c.b16 %v2044, %v2043
        %v2055 = vpack.c.b16 %v2046, %v2045
        %v2056 = vpack.c.b16 %v2048, %v2047
        %2065 = vmatprep.subr.bf16.mxu0 0
        %2066 = vmatpush1.bf16.msra.mxu0 %v2049
        %2067 = vmatprep.subr.bf16.mxu0 0
        %2068 = vmatpush1.bf16.msra.mxu0 %v2050
        %2069 = vmatprep.subr.bf16.mxu0 0
        %2070 = vmatpush1.bf16.msra.mxu0 %v2051
        %2071 = vmatprep.subr.bf16.mxu0 0
        %2072 = vmatpush1.bf16.msra.mxu0 %v2052
        %2073 = vmatprep.subr.bf16.mxu0 0
        %2074 = vmatpush1.bf16.msra.mxu0 %v2053
        %2075 = vmatprep.subr.bf16.mxu0 0
        %2076 = vmatpush1.bf16.msra.mxu0 %v2054
        %2077 = vmatprep.subr.bf16.mxu0 0
        %2078 = vmatpush1.bf16.msra.mxu0 %v2055
        %2079 = vmatprep.subr.bf16.mxu0 0
        %2080 = vmatpush1.bf16.msra.mxu0 %v2056
        %2081 = vmatprep.subr.bf16.mxu0 0
        %2082 = vmatpush1.bf16.msra.mxu0 0
        %2083 = vmatprep.subr.bf16.mxu0 0
        %2084 = vmatpush1.bf16.msra.mxu0 0
        %2085 = vmatprep.subr.bf16.mxu0 0
        %2086 = vmatpush1.bf16.msra.mxu0 0
        %2087 = vmatprep.subr.bf16.mxu0 0
        %2088 = vmatpush1.bf16.msra.mxu0 0
        %2089 = vmatprep.subr.bf16.mxu0 0
        %2090 = vmatpush1.bf16.msra.mxu0 0
        %2091 = vmatprep.subr.bf16.mxu0 0
        %2092 = vmatpush1.bf16.msra.mxu0 0
        %2093 = vmatprep.subr.bf16.mxu0 0
        %2094 = vmatpush1.bf16.msra.mxu0 0
        %2095 = vmatprep.subr.bf16.mxu0 0
        %2096 = vmatpush1.bf16.msra.mxu0 0
        %2097 = vmatprep.mubr.bf16.mxu0 0
        %2098 = vmatmul.mubr.bf16.gmra.mrb[0].mxu0 %v1890
        %v2099 = vpop.f32.mrb[0].mxu0
        %v2100 = vadd.f32 0.0, %v2099
        %v2101 = vpop.f32.mrb[0].mxu0
        %v2102 = vpop.f32.mrb[0].mxu0
        %v2103 = vadd.f32 0.0, %v2102
        %v2104 = vpop.f32.mrb[0].mxu0
        %2105 = vdwg.mxu0
        %v2106 = vpack.c.bf16 %v2103, %v2100
        %s2107 = scalar_lea.vmem %s5, 8
        %v2108 = vld [vmem:[%s2107] sm:$0xf]
        %v2109 = vld [vmem:[%s2107 + $0x4] sm:$0xf]
        %v2112 = vunpack.c.l.b16 %v2108
        %v2113 = vunpack.c.l.b16 %v2109
        %v2114 = vpack.c.b16 %v2113, %v2112
        %v2116 = vsel %vm1603, %v2114, 0
        %2118 = vmatprep.subr.bf16.mxu0 0
        %2119 = vmatpush1.bf16.msra.mxu0 %v2106
        %2120 = vmatprep.subr.bf16.mxu0 0
        %2121 = vmatpush1.bf16.msra.mxu0 0
        %2122 = vmatprep.subr.bf16.mxu0 0
        %2123 = vmatpush1.bf16.msra.mxu0 0
        %2124 = vmatprep.subr.bf16.mxu0 0
        %2125 = vmatpush1.bf16.msra.mxu0 0
        %2126 = vmatprep.subr.bf16.mxu0 0
        %2127 = vmatpush1.bf16.msra.mxu0 0
        %2128 = vmatprep.subr.bf16.mxu0 0
        %2129 = vmatpush1.bf16.msra.mxu0 0
        %2130 = vmatprep.subr.bf16.mxu0 0
        %2131 = vmatpush1.bf16.msra.mxu0 0
        %2132 = vmatprep.subr.bf16.mxu0 0
        %2133 = vmatpush1.bf16.msra.mxu0 0
        %2134 = vmatprep.subr.bf16.mxu0 0
        %2135 = vmatpush1.bf16.msra.mxu0 0
        %2136 = vmatprep.subr.bf16.mxu0 0
        %2137 = vmatpush1.bf16.msra.mxu0 0
        %2138 = vmatprep.subr.bf16.mxu0 0
        %2139 = vmatpush1.bf16.msra.mxu0 0
        %2140 = vmatprep.subr.bf16.mxu0 0
        %2141 = vmatpush1.bf16.msra.mxu0 0
        %2142 = vmatprep.subr.bf16.mxu0 0
        %2143 = vmatpush1.bf16.msra.mxu0 0
        %2144 = vmatprep.subr.bf16.mxu0 0
        %2145 = vmatpush1.bf16.msra.mxu0 0
        %2146 = vmatprep.subr.bf16.mxu0 0
        %2147 = vmatpush1.bf16.msra.mxu0 0
        %2148 = vmatprep.subr.bf16.mxu0 0
        %2149 = vmatpush1.bf16.msra.mxu0 0
        %2150 = vmatprep.mubr.bf16.mxu0 0
        %2151 = vmatmul.mubr.bf16.gmra.mrb[0].mxu0 %v2116
        %v2152 = vpop.f32.mrb[0].mxu0
        %v2153 = vadd.f32 0.0, %v2152
        %v2154 = vpop.f32.mrb[0].mxu0
        %v2155 = vpop.f32.mrb[0].mxu0
        %v2156 = vadd.f32 0.0, %v2155
        %v2157 = vpop.f32.mrb[0].mxu0
        %2158 = vdwg.mxu0
        %v2161 = vunpack.c.l.b16 %v1998
        %v2162 = vunpack.c.l.b16 %v1999
        %v2163 = vpack.c.b16 %v2162, %v2161
        %v2165 = vsel %vm1603, %v2163, 0
        %2167 = vmatprep.subr.bf16.mxu0 0
        %2168 = vmatpush1.bf16.msra.mxu0 %v1997
        %2169 = vmatprep.subr.bf16.mxu0 0
        %2170 = vmatpush1.bf16.msra.mxu0 0
        %2171 = vmatprep.subr.bf16.mxu0 0
        %2172 = vmatpush1.bf16.msra.mxu0 0
        %2173 = vmatprep.subr.bf16.mxu0 0
        %2174 = vmatpush1.bf16.msra.mxu0 0
        %2175 = vmatprep.subr.bf16.mxu0 0
        %2176 = vmatpush1.bf16.msra.mxu0 0
        %2177 = vmatprep.subr.bf16.mxu0 0
        %2178 = vmatpush1.bf16.msra.mxu0 0
        %2179 = vmatprep.subr.bf16.mxu0 0
        %2180 = vmatpush1.bf16.msra.mxu0 0
        %2181 = vmatprep.subr.bf16.mxu0 0
        %2182 = vmatpush1.bf16.msra.mxu0 0
        %2183 = vmatprep.subr.bf16.mxu0 0
        %2184 = vmatpush1.bf16.msra.mxu0 0
        %2185 = vmatprep.subr.bf16.mxu0 0
        %2186 = vmatpush1.bf16.msra.mxu0 0
        %2187 = vmatprep.subr.bf16.mxu0 0
        %2188 = vmatpush1.bf16.msra.mxu0 0
        %2189 = vmatprep.subr.bf16.mxu0 0
        %2190 = vmatpush1.bf16.msra.mxu0 0
        %2191 = vmatprep.subr.bf16.mxu0 0
        %2192 = vmatpush1.bf16.msra.mxu0 0
        %2193 = vmatprep.subr.bf16.mxu0 0
        %2194 = vmatpush1.bf16.msra.mxu0 0
        %2195 = vmatprep.subr.bf16.mxu0 0
        %2196 = vmatpush1.bf16.msra.mxu0 0
        %2197 = vmatprep.subr.bf16.mxu0 0
        %2198 = vmatpush1.bf16.msra.mxu0 0
        %2199 = vmatprep.mubr.bf16.mxu0 0
        %2200 = vmatmul.mubr.bf16.gmra.mrb[0].mxu0 %v2165
        %v2201 = vpop.f32.mrb[0].mxu0
        %v2202 = vadd.f32 %v2153, %v2201
        %v2203 = vpop.f32.mrb[0].mxu0
        %v2204 = vpop.f32.mrb[0].mxu0
        %v2205 = vadd.f32 %v2156, %v2204
        %v2206 = vpop.f32.mrb[0].mxu0
        %2207 = vdwg.mxu0
        %s2208 = scalar_lea.vmem [#allocation5], 704
        %v2209 = vld [vmem:[%s2208] sm:$0xf]
        %v2210 = vld [vmem:[%s2208 + $0x4] sm:$0xf]
        %v2211 = vld [vmem:[%s2208 + $0x8] sm:$0xf]
        %v2212 = vld [vmem:[%s2208 + $0xc] sm:$0xf]
        %v2213 = vld [vmem:[%s2208 + $0x10] sm:$0xf]
        %v2214 = vld [vmem:[%s2208 + $0x14] sm:$0xf]
        %v2215 = vld [vmem:[%s2208 + $0x18] sm:$0xf]
        %v2216 = vld [vmem:[%s2208 + $0x1c] sm:$0xf]
        %v2217 = vld [vmem:[%s2208 + $0x20] sm:$0xf]
        %v2218 = vld [vmem:[%s2208 + $0x24] sm:$0xf]
        %v2219 = vld [vmem:[%s2208 + $0x28] sm:$0xf]
        %v2220 = vld [vmem:[%s2208 + $0x2c] sm:$0xf]
        %v2221 = vld [vmem:[%s2208 + $0x30] sm:$0xf]
        %v2222 = vld [vmem:[%s2208 + $0x34] sm:$0xf]
        %v2223 = vld [vmem:[%s2208 + $0x38] sm:$0xf]
        %v2224 = vld [vmem:[%s2208 + $0x3c] sm:$0xf]
        %v2241 = vunpack.c.l.b16 %v2209
        %v2242 = vunpack.c.l.b16 %v2210
        %v2243 = vunpack.c.l.b16 %v2211
        %v2244 = vunpack.c.l.b16 %v2212
        %v2245 = vunpack.c.l.b16 %v2213
        %v2246 = vunpack.c.l.b16 %v2214
        %v2247 = vunpack.c.l.b16 %v2215
        %v2248 = vunpack.c.l.b16 %v2216
        %v2249 = vunpack.c.l.b16 %v2217
        %v2250 = vunpack.c.l.b16 %v2218
        %v2251 = vunpack.c.l.b16 %v2219
        %v2252 = vunpack.c.l.b16 %v2220
        %v2253 = vunpack.c.l.b16 %v2221
        %v2254 = vunpack.c.l.b16 %v2222
        %v2255 = vunpack.c.l.b16 %v2223
        %v2256 = vunpack.c.l.b16 %v2224
        %v2257 = vpack.c.b16 %v2242, %v2241
        %v2258 = vpack.c.b16 %v2244, %v2243
        %v2259 = vpack.c.b16 %v2246, %v2245
        %v2260 = vpack.c.b16 %v2248, %v2247
        %v2261 = vpack.c.b16 %v2250, %v2249
        %v2262 = vpack.c.b16 %v2252, %v2251
        %v2263 = vpack.c.b16 %v2254, %v2253
        %v2264 = vpack.c.b16 %v2256, %v2255
        %2273 = vmatprep.subr.bf16.mxu0 0
        %2274 = vmatpush1.bf16.msra.mxu0 %v2257
        %2275 = vmatprep.subr.bf16.mxu0 0
        %2276 = vmatpush1.bf16.msra.mxu0 %v2258
        %2277 = vmatprep.subr.bf16.mxu0 0
        %2278 = vmatpush1.bf16.msra.mxu0 %v2259
        %2279 = vmatprep.subr.bf16.mxu0 0
        %2280 = vmatpush1.bf16.msra.mxu0 %v2260
        %2281 = vmatprep.subr.bf16.mxu0 0
        %2282 = vmatpush1.bf16.msra.mxu0 %v2261
        %2283 = vmatprep.subr.bf16.mxu0 0
        %2284 = vmatpush1.bf16.msra.mxu0 %v2262
        %2285 = vmatprep.subr.bf16.mxu0 0
        %2286 = vmatpush1.bf16.msra.mxu0 %v2263
        %2287 = vmatprep.subr.bf16.mxu0 0
        %2288 = vmatpush1.bf16.msra.mxu0 %v2264
        %2289 = vmatprep.subr.bf16.mxu0 0
        %2290 = vmatpush1.bf16.msra.mxu0 0
        %2291 = vmatprep.subr.bf16.mxu0 0
        %2292 = vmatpush1.bf16.msra.mxu0 0
        %2293 = vmatprep.subr.bf16.mxu0 0
        %2294 = vmatpush1.bf16.msra.mxu0 0
        %2295 = vmatprep.subr.bf16.mxu0 0
        %2296 = vmatpush1.bf16.msra.mxu0 0
        %2297 = vmatprep.subr.bf16.mxu0 0
        %2298 = vmatpush1.bf16.msra.mxu0 0
        %2299 = vmatprep.subr.bf16.mxu0 0
        %2300 = vmatpush1.bf16.msra.mxu0 0
        %2301 = vmatprep.subr.bf16.mxu0 0
        %2302 = vmatpush1.bf16.msra.mxu0 0
        %2303 = vmatprep.subr.bf16.mxu0 0
        %2304 = vmatpush1.bf16.msra.mxu0 0
        %2305 = vmatprep.mubr.bf16.mxu0 0
        %2306 = vmatmul.mubr.bf16.gmra.mrb[0].mxu0 %v1890
        %v2307 = vpop.f32.mrb[0].mxu0
        %v2308 = vadd.f32 0.0, %v2307
        %v2309 = vpop.f32.mrb[0].mxu0
        %v2310 = vpop.f32.mrb[0].mxu0
        %v2311 = vadd.f32 0.0, %v2310
        %v2312 = vpop.f32.mrb[0].mxu0
        %2313 = vdwg.mxu0
        %v2314 = vpack.c.bf16 %v2311, %v2308
        %s2315 = scalar_lea.vmem %s5, 16
        %v2316 = vld [vmem:[%s2315] sm:$0xf]
        %v2317 = vld [vmem:[%s2315 + $0x4] sm:$0xf]
        %v2320 = vunpack.c.l.b16 %v2316
        %v2321 = vunpack.c.l.b16 %v2317
        %v2322 = vpack.c.b16 %v2321, %v2320
        %v2324 = vsel %vm1603, %v2322, 0
        %2326 = vmatprep.subr.bf16.mxu0 0
        %2327 = vmatpush1.bf16.msra.mxu0 %v2314
        %2328 = vmatprep.subr.bf16.mxu0 0
        %2329 = vmatpush1.bf16.msra.mxu0 0
        %2330 = vmatprep.subr.bf16.mxu0 0
        %2331 = vmatpush1.bf16.msra.mxu0 0
        %2332 = vmatprep.subr.bf16.mxu0 0
        %2333 = vmatpush1.bf16.msra.mxu0 0
        %2334 = vmatprep.subr.bf16.mxu0 0
        %2335 = vmatpush1.bf16.msra.mxu0 0
        %2336 = vmatprep.subr.bf16.mxu0 0
        %2337 = vmatpush1.bf16.msra.mxu0 0
        %2338 = vmatprep.subr.bf16.mxu0 0
        %2339 = vmatpush1.bf16.msra.mxu0 0
        %2340 = vmatprep.subr.bf16.mxu0 0
        %2341 = vmatpush1.bf16.msra.mxu0 0
        %2342 = vmatprep.subr.bf16.mxu0 0
        %2343 = vmatpush1.bf16.msra.mxu0 0
        %2344 = vmatprep.subr.bf16.mxu0 0
        %2345 = vmatpush1.bf16.msra.mxu0 0
        %2346 = vmatprep.subr.bf16.mxu0 0
        %2347 = vmatpush1.bf16.msra.mxu0 0
        %2348 = vmatprep.subr.bf16.mxu0 0
        %2349 = vmatpush1.bf16.msra.mxu0 0
        %2350 = vmatprep.subr.bf16.mxu0 0
        %2351 = vmatpush1.bf16.msra.mxu0 0
        %2352 = vmatprep.subr.bf16.mxu0 0
        %2353 = vmatpush1.bf16.msra.mxu0 0
        %2354 = vmatprep.subr.bf16.mxu0 0
        %2355 = vmatpush1.bf16.msra.mxu0 0
        %2356 = vmatprep.subr.bf16.mxu0 0
        %2357 = vmatpush1.bf16.msra.mxu0 0
        %2358 = vmatprep.mubr.bf16.mxu0 0
        %2359 = vmatmul.mubr.bf16.gmra.mrb[0].mxu0 %v2324
        %v2360 = vpop.f32.mrb[0].mxu0
        %v2361 = vadd.f32 0.0, %v2360
        %v2362 = vpop.f32.mrb[0].mxu0
        %v2363 = vpop.f32.mrb[0].mxu0
        %v2364 = vadd.f32 0.0, %v2363
        %v2365 = vpop.f32.mrb[0].mxu0
        %2366 = vdwg.mxu0
        %v2367 = vadd.f32 %v2202, %v2361
        %v2368 = vadd.f32 %v2205, %v2364
        %2369 = vadd.xlane.f32.xlu0 %v2367
        %v2370 = vpop.xlane.xlu0 %2369
        %2371 = vadd.xlane.f32.xlu0 %v2368
        %v2372 = vpop.xlane.xlu0 %2371
        %v2373 = vmul.f32 %v2370, 0.25
        %v2374 = vmul.f32 %v2372, 0.25
        %v2375 = vmul.f32 %v2367, %v2367
        %v2376 = vmul.f32 %v2368, %v2368
        %2377 = vadd.xlane.f32.xlu0 %v2375
        %v2378 = vpop.xlane.xlu0 %2377
        %2379 = vadd.xlane.f32.xlu0 %v2376
        %v2380 = vpop.xlane.xlu0 %2379
        %v2381 = vmul.f32 %v2378, 0.25
        %v2382 = vmul.f32 %v2380, 0.25
        %v2383 = vmul.f32 %v2373, %v2373
        %v2384 = vmul.f32 %v2374, %v2374
        %v2385 = vsub.f32 %v2381, %v2383
        %v2386 = vsub.f32 %v2382, %v2384
        %v2387 = vsub.f32 %v2367, %v2373
        %v2388 = vsub.f32 %v2368, %v2374
        %v2389 = vadd.f32 %v2385, 1e-05
        %v2390 = vadd.f32 %v2386, 1e-05
        %v2391 = vrsqrt.pop %v2389
        %v2392 = vrsqrt.pop %v2390
        %v2393 = vmul.f32 %v2387, %v2391
        %v2394 = vmul.f32 %v2388, %v2392
        %v2395 = vadd.f32 %v2393, %v1376
        %v2396 = vadd.f32 %v2394, %v1377
        %v2397 = vpack.c.bf16 %v2396, %v2395
        %s2398 = scalar_lea.vmem [#allocation5], 768
        %v2399 = vld [vmem:[%s2398] sm:$0xf]
        %v2400 = vld [vmem:[%s2398 + $0x4] sm:$0xf]
        %v2401 = vld [vmem:[%s2398 + $0x8] sm:$0xf]
        %v2402 = vld [vmem:[%s2398 + $0xc] sm:$0xf]
        %v2403 = vld [vmem:[%s2398 + $0x10] sm:$0xf]
        %v2404 = vld [vmem:[%s2398 + $0x14] sm:$0xf]
        %v2405 = vld [vmem:[%s2398 + $0x18] sm:$0xf]
        %v2406 = vld [vmem:[%s2398 + $0x1c] sm:$0xf]
        %v2407 = vld [vmem:[%s2398 + $0x20] sm:$0xf]
        %v2408 = vld [vmem:[%s2398 + $0x24] sm:$0xf]
        %v2409 = vld [vmem:[%s2398 + $0x28] sm:$0xf]
        %v2410 = vld [vmem:[%s2398 + $0x2c] sm:$0xf]
        %v2411 = vld [vmem:[%s2398 + $0x30] sm:$0xf]
        %v2412 = vld [vmem:[%s2398 + $0x34] sm:$0xf]
        %v2413 = vld [vmem:[%s2398 + $0x38] sm:$0xf]
        %v2414 = vld [vmem:[%s2398 + $0x3c] sm:$0xf]
        %v2431 = vunpack.c.l.b16 %v2399
        %v2432 = vunpack.c.l.b16 %v2400
        %v2433 = vunpack.c.l.b16 %v2401
        %v2434 = vunpack.c.l.b16 %v2402
        %v2435 = vunpack.c.l.b16 %v2403
        %v2436 = vunpack.c.l.b16 %v2404
        %v2437 = vunpack.c.l.b16 %v2405
        %v2438 = vunpack.c.l.b16 %v2406
        %v2439 = vunpack.c.l.b16 %v2407
        %v2440 = vunpack.c.l.b16 %v2408
        %v2441 = vunpack.c.l.b16 %v2409
        %v2442 = vunpack.c.l.b16 %v2410
        %v2443 = vunpack.c.l.b16 %v2411
        %v2444 = vunpack.c.l.b16 %v2412
        %v2445 = vunpack.c.l.b16 %v2413
        %v2446 = vunpack.c.l.b16 %v2414
        %v2447 = vpack.c.b16 %v2432, %v2431
        %v2448 = vpack.c.b16 %v2434, %v2433
        %v2449 = vpack.c.b16 %v2436, %v2435
        %v2450 = vpack.c.b16 %v2438, %v2437
        %v2451 = vpack.c.b16 %v2440, %v2439
        %v2452 = vpack.c.b16 %v2442, %v2441
        %v2453 = vpack.c.b16 %v2444, %v2443
        %v2454 = vpack.c.b16 %v2446, %v2445
        %2463 = vmatprep.subr.bf16.mxu0 0
        %2464 = vmatpush1.bf16.msra.mxu0 %v2447
        %2465 = vmatprep.subr.bf16.mxu0 0
        %2466 = vmatpush1.bf16.msra.mxu0 %v2448
        %2467 = vmatprep.subr.bf16.mxu0 0
        %2468 = vmatpush1.bf16.msra.mxu0 %v2449
        %2469 = vmatprep.subr.bf16.mxu0 0
        %2470 = vmatpush1.bf16.msra.mxu0 %v2450
        %2471 = vmatprep.subr.bf16.mxu0 0
        %2472 = vmatpush1.bf16.msra.mxu0 %v2451
        %2473 = vmatprep.subr.bf16.mxu0 0
        %2474 = vmatpush1.bf16.msra.mxu0 %v2452
        %2475 = vmatprep.subr.bf16.mxu0 0
        %2476 = vmatpush1.bf16.msra.mxu0 %v2453
        %2477 = vmatprep.subr.bf16.mxu0 0
        %2478 = vmatpush1.bf16.msra.mxu0 %v2454
        %2479 = vmatprep.subr.bf16.mxu0 0
        %2480 = vmatpush1.bf16.msra.mxu0 0
        %2481 = vmatprep.subr.bf16.mxu0 0
        %2482 = vmatpush1.bf16.msra.mxu0 0
        %2483 = vmatprep.subr.bf16.mxu0 0
        %2484 = vmatpush1.bf16.msra.mxu0 0
        %2485 = vmatprep.subr.bf16.mxu0 0
        %2486 = vmatpush1.bf16.msra.mxu0 0
        %2487 = vmatprep.subr.bf16.mxu0 0
        %2488 = vmatpush1.bf16.msra.mxu0 0
        %2489 = vmatprep.subr.bf16.mxu0 0
        %2490 = vmatpush1.bf16.msra.mxu0 0
        %2491 = vmatprep.subr.bf16.mxu0 0
        %2492 = vmatpush1.bf16.msra.mxu0 0
        %2493 = vmatprep.subr.bf16.mxu0 0
        %2494 = vmatpush1.bf16.msra.mxu0 0
        %2495 = vmatprep.mubr.bf16.mxu0 0
        %2496 = vmatmul.mubr.bf16.gmra.mrb[0].mxu0 %v2397
        %v2497 = vpop.f32.mrb[0].mxu0
        %v2498 = vadd.f32 0.0, %v2497
        %v2499 = vpop.f32.mrb[0].mxu0
        %v2500 = vpop.f32.mrb[0].mxu0
        %v2501 = vadd.f32 0.0, %v2500
        %v2502 = vpop.f32.mrb[0].mxu0
        %2503 = vdwg.mxu0
        %v2504 = vpack.c.bf16 %v2501, %v2498
        %v2505 = vld [vmem:[#allocation8] sm:$0xf]
        %v2506 = vld [vmem:[#allocation8 + $0x4] sm:$0xf]
        %s2507 = scalar_lea.vmem [#allocation5], 832
        %v2508 = vld [vmem:[%s2507] sm:$0xf]
        %v2509 = vld [vmem:[%s2507 + $0x4] sm:$0xf]
        %v2510 = vld [vmem:[%s2507 + $0x8] sm:$0xf]
        %v2511 = vld [vmem:[%s2507 + $0xc] sm:$0xf]
        %v2512 = vld [vmem:[%s2507 + $0x10] sm:$0xf]
        %v2513 = vld [vmem:[%s2507 + $0x14] sm:$0xf]
        %v2514 = vld [vmem:[%s2507 + $0x18] sm:$0xf]
        %v2515 = vld [vmem:[%s2507 + $0x1c] sm:$0xf]
        %v2516 = vld [vmem:[%s2507 + $0x20] sm:$0xf]
        %v2517 = vld [vmem:[%s2507 + $0x24] sm:$0xf]
        %v2518 = vld [vmem:[%s2507 + $0x28] sm:$0xf]
        %v2519 = vld [vmem:[%s2507 + $0x2c] sm:$0xf]
        %v2520 = vld [vmem:[%s2507 + $0x30] sm:$0xf]
        %v2521 = vld [vmem:[%s2507 + $0x34] sm:$0xf]
        %v2522 = vld [vmem:[%s2507 + $0x38] sm:$0xf]
        %v2523 = vld [vmem:[%s2507 + $0x3c] sm:$0xf]
        %v2540 = vunpack.c.l.b16 %v2508
        %v2541 = vunpack.c.l.b16 %v2509
        %v2542 = vunpack.c.l.b16 %v2510
        %v2543 = vunpack.c.l.b16 %v2511
        %v2544 = vunpack.c.l.b16 %v2512
        %v2545 = vunpack.c.l.b16 %v2513
        %v2546 = vunpack.c.l.b16 %v2514
        %v2547 = vunpack.c.l.b16 %v2515
        %v2548 = vunpack.c.l.b16 %v2516
        %v2549 = vunpack.c.l.b16 %v2517
        %v2550 = vunpack.c.l.b16 %v2518
        %v2551 = vunpack.c.l.b16 %v2519
        %v2552 = vunpack.c.l.b16 %v2520
        %v2553 = vunpack.c.l.b16 %v2521
        %v2554 = vunpack.c.l.b16 %v2522
        %v2555 = vunpack.c.l.b16 %v2523
        %v2556 = vpack.c.b16 %v2541, %v2540
        %v2557 = vpack.c.b16 %v2543, %v2542
        %v2558 = vpack.c.b16 %v2545, %v2544
        %v2559 = vpack.c.b16 %v2547, %v2546
        %v2560 = vpack.c.b16 %v2549, %v2548
        %v2561 = vpack.c.b16 %v2551, %v2550
        %v2562 = vpack.c.b16 %v2553, %v2552
        %v2563 = vpack.c.b16 %v2555, %v2554
        %2572 = vmatprep.subr.bf16.mxu0 0
        %2573 = vmatpush1.bf16.msra.mxu0 %v2556
        %2574 = vmatprep.subr.bf16.mxu0 0
        %2575 = vmatpush1.bf16.msra.mxu0 %v2557
        %2576 = vmatprep.subr.bf16.mxu0 0
        %2577 = vmatpush1.bf16.msra.mxu0 %v2558
        %2578 = vmatprep.subr.bf16.mxu0 0
        %2579 = vmatpush1.bf16.msra.mxu0 %v2559
        %2580 = vmatprep.subr.bf16.mxu0 0
        %2581 = vmatpush1.bf16.msra.mxu0 %v2560
        %2582 = vmatprep.subr.bf16.mxu0 0
        %2583 = vmatpush1.bf16.msra.mxu0 %v2561
        %2584 = vmatprep.subr.bf16.mxu0 0
        %2585 = vmatpush1.bf16.msra.mxu0 %v2562
        %2586 = vmatprep.subr.bf16.mxu0 0
        %2587 = vmatpush1.bf16.msra.mxu0 %v2563
        %2588 = vmatprep.subr.bf16.mxu0 0
        %2589 = vmatpush1.bf16.msra.mxu0 0
        %2590 = vmatprep.subr.bf16.mxu0 0
        %2591 = vmatpush1.bf16.msra.mxu0 0
        %2592 = vmatprep.subr.bf16.mxu0 0
        %2593 = vmatpush1.bf16.msra.mxu0 0
        %2594 = vmatprep.subr.bf16.mxu0 0
        %2595 = vmatpush1.bf16.msra.mxu0 0
        %2596 = vmatprep.subr.bf16.mxu0 0
        %2597 = vmatpush1.bf16.msra.mxu0 0
        %2598 = vmatprep.subr.bf16.mxu0 0
        %2599 = vmatpush1.bf16.msra.mxu0 0
        %2600 = vmatprep.subr.bf16.mxu0 0
        %2601 = vmatpush1.bf16.msra.mxu0 0
        %2602 = vmatprep.subr.bf16.mxu0 0
        %2603 = vmatpush1.bf16.msra.mxu0 0
        %2604 = vmatprep.mubr.bf16.mxu0 0
        %2605 = vmatmul.mubr.bf16.gmra.mrb[0].mxu0 %v2397
        %v2606 = vpop.f32.mrb[0].mxu0
        %v2607 = vadd.f32 0.0, %v2606
        %v2608 = vpop.f32.mrb[0].mxu0
        %v2609 = vpop.f32.mrb[0].mxu0
        %v2610 = vadd.f32 0.0, %v2609
        %v2611 = vpop.f32.mrb[0].mxu0
        %2612 = vdwg.mxu0
        %v2613 = vpack.c.bf16 %v2610, %v2607
        %s2614 = scalar_lea.vmem [#allocation8], 8
        %v2615 = vld [vmem:[%s2614] sm:$0xf]
        %v2616 = vld [vmem:[%s2614 + $0x4] sm:$0xf]
        %v2619 = vunpack.c.l.b16 %v2615
        %v2620 = vunpack.c.l.b16 %v2616
        %v2621 = vpack.c.b16 %v2620, %v2619
        %v2623 = vsel %vm1603, %v2621, 0
        %2625 = vmatprep.subr.bf16.mxu0 0
        %2626 = vmatpush1.bf16.msra.mxu0 %v2613
        %2627 = vmatprep.subr.bf16.mxu0 0
        %2628 = vmatpush1.bf16.msra.mxu0 0
        %2629 = vmatprep.subr.bf16.mxu0 0
        %2630 = vmatpush1.bf16.msra.mxu0 0
        %2631 = vmatprep.subr.bf16.mxu0 0
        %2632 = vmatpush1.bf16.msra.mxu0 0
        %2633 = vmatprep.subr.bf16.mxu0 0
        %2634 = vmatpush1.bf16.msra.mxu0 0
        %2635 = vmatprep.subr.bf16.mxu0 0
        %2636 = vmatpush1.bf16.msra.mxu0 0
        %2637 = vmatprep.subr.bf16.mxu0 0
        %2638 = vmatpush1.bf16.msra.mxu0 0
        %2639 = vmatprep.subr.bf16.mxu0 0
        %2640 = vmatpush1.bf16.msra.mxu0 0
        %2641 = vmatprep.subr.bf16.mxu0 0
        %2642 = vmatpush1.bf16.msra.mxu0 0
        %2643 = vmatprep.subr.bf16.mxu0 0
        %2644 = vmatpush1.bf16.msra.mxu0 0
        %2645 = vmatprep.subr.bf16.mxu0 0
        %2646 = vmatpush1.bf16.msra.mxu0 0
        %2647 = vmatprep.subr.bf16.mxu0 0
        %2648 = vmatpush1.bf16.msra.mxu0 0
        %2649 = vmatprep.subr.bf16.mxu0 0
        %2650 = vmatpush1.bf16.msra.mxu0 0
        %2651 = vmatprep.subr.bf16.mxu0 0
        %2652 = vmatpush1.bf16.msra.mxu0 0
        %2653 = vmatprep.subr.bf16.mxu0 0
        %2654 = vmatpush1.bf16.msra.mxu0 0
        %2655 = vmatprep.subr.bf16.mxu0 0
        %2656 = vmatpush1.bf16.msra.mxu0 0
        %2657 = vmatprep.mubr.bf16.mxu0 0
        %2658 = vmatmul.mubr.bf16.gmra.mrb[0].mxu0 %v2623
        %v2659 = vpop.f32.mrb[0].mxu0
        %v2660 = vadd.f32 0.0, %v2659
        %v2661 = vpop.f32.mrb[0].mxu0
        %v2662 = vpop.f32.mrb[0].mxu0
        %v2663 = vadd.f32 0.0, %v2662
        %v2664 = vpop.f32.mrb[0].mxu0
        %2665 = vdwg.mxu0
        %v2668 = vunpack.c.l.b16 %v2505
        %v2669 = vunpack.c.l.b16 %v2506
        %v2670 = vpack.c.b16 %v2669, %v2668
        %v2672 = vsel %vm1603, %v2670, 0
        %2674 = vmatprep.subr.bf16.mxu0 0
        %2675 = vmatpush1.bf16.msra.mxu0 %v2504
        %2676 = vmatprep.subr.bf16.mxu0 0
        %2677 = vmatpush1.bf16.msra.mxu0 0
        %2678 = vmatprep.subr.bf16.mxu0 0
        %2679 = vmatpush1.bf16.msra.mxu0 0
        %2680 = vmatprep.subr.bf16.mxu0 0
        %2681 = vmatpush1.bf16.msra.mxu0 0
        %2682 = vmatprep.subr.bf16.mxu0 0
        %2683 = vmatpush1.bf16.msra.mxu0 0
        %2684 = vmatprep.subr.bf16.mxu0 0
        %2685 = vmatpush1.bf16.msra.mxu0 0
        %2686 = vmatprep.subr.bf16.mxu0 0
        %2687 = vmatpush1.bf16.msra.mxu0 0
        %2688 = vmatprep.subr.bf16.mxu0 0
        %2689 = vmatpush1.bf16.msra.mxu0 0
        %2690 = vmatprep.subr.bf16.mxu0 0
        %2691 = vmatpush1.bf16.msra.mxu0 0
        %2692 = vmatprep.subr.bf16.mxu0 0
        %2693 = vmatpush1.bf16.msra.mxu0 0
        %2694 = vmatprep.subr.bf16.mxu0 0
        %2695 = vmatpush1.bf16.msra.mxu0 0
        %2696 = vmatprep.subr.bf16.mxu0 0
        %2697 = vmatpush1.bf16.msra.mxu0 0
        %2698 = vmatprep.subr.bf16.mxu0 0
        %2699 = vmatpush1.bf16.msra.mxu0 0
        %2700 = vmatprep.subr.bf16.mxu0 0
        %2701 = vmatpush1.bf16.msra.mxu0 0
        %2702 = vmatprep.subr.bf16.mxu0 0
        %2703 = vmatpush1.bf16.msra.mxu0 0
        %2704 = vmatprep.subr.bf16.mxu0 0
        %2705 = vmatpush1.bf16.msra.mxu0 0
        %2706 = vmatprep.mubr.bf16.mxu0 0
        %2707 = vmatmul.mubr.bf16.gmra.mrb[0].mxu0 %v2672
        %v2708 = vpop.f32.mrb[0].mxu0
        %v2709 = vadd.f32 %v2660, %v2708
        %v2710 = vpop.f32.mrb[0].mxu0
        %v2711 = vpop.f32.mrb[0].mxu0
        %v2712 = vadd.f32 %v2663, %v2711
        %v2713 = vpop.f32.mrb[0].mxu0
        %2714 = vdwg.mxu0
        %s2715 = scalar_lea.vmem [#allocation5], 896
        %v2716 = vld [vmem:[%s2715] sm:$0xf]
        %v2717 = vld [vmem:[%s2715 + $0x4] sm:$0xf]
        %v2718 = vld [vmem:[%s2715 + $0x8] sm:$0xf]
        %v2719 = vld [vmem:[%s2715 + $0xc] sm:$0xf]
        %v2720 = vld [vmem:[%s2715 + $0x10] sm:$0xf]
        %v2721 = vld [vmem:[%s2715 + $0x14] sm:$0xf]
        %v2722 = vld [vmem:[%s2715 + $0x18] sm:$0xf]
        %v2723 = vld [vmem:[%s2715 + $0x1c] sm:$0xf]
        %v2724 = vld [vmem:[%s2715 + $0x20] sm:$0xf]
        %v2725 = vld [vmem:[%s2715 + $0x24] sm:$0xf]
        %v2726 = vld [vmem:[%s2715 + $0x28] sm:$0xf]
        %v2727 = vld [vmem:[%s2715 + $0x2c] sm:$0xf]
        %v2728 = vld [vmem:[%s2715 + $0x30] sm:$0xf]
        %v2729 = vld [vmem:[%s2715 + $0x34] sm:$0xf]
        %v2730 = vld [vmem:[%s2715 + $0x38] sm:$0xf]
        %v2731 = vld [vmem:[%s2715 + $0x3c] sm:$0xf]
        %v2748 = vunpack.c.l.b16 %v2716
        %v2749 = vunpack.c.l.b16 %v2717
        %v2750 = vunpack.c.l.b16 %v2718
        %v2751 = vunpack.c.l.b16 %v2719
        %v2752 = vunpack.c.l.b16 %v2720
        %v2753 = vunpack.c.l.b16 %v2721
        %v2754 = vunpack.c.l.b16 %v2722
        %v2755 = vunpack.c.l.b16 %v2723
        %v2756 = vunpack.c.l.b16 %v2724
        %v2757 = vunpack.c.l.b16 %v2725
        %v2758 = vunpack.c.l.b16 %v2726
        %v2759 = vunpack.c.l.b16 %v2727
        %v2760 = vunpack.c.l.b16 %v2728
        %v2761 = vunpack.c.l.b16 %v2729
        %v2762 = vunpack.c.l.b16 %v2730
        %v2763 = vunpack.c.l.b16 %v2731
        %v2764 = vpack.c.b16 %v2749, %v2748
        %v2765 = vpack.c.b16 %v2751, %v2750
        %v2766 = vpack.c.b16 %v2753, %v2752
        %v2767 = vpack.c.b16 %v2755, %v2754
        %v2768 = vpack.c.b16 %v2757, %v2756
        %v2769 = vpack.c.b16 %v2759, %v2758
        %v2770 = vpack.c.b16 %v2761, %v2760
        %v2771 = vpack.c.b16 %v2763, %v2762
        %2780 = vmatprep.subr.bf16.mxu0 0
        %2781 = vmatpush1.bf16.msra.mxu0 %v2764
        %2782 = vmatprep.subr.bf16.mxu0 0
        %2783 = vmatpush1.bf16.msra.mxu0 %v2765
        %2784 = vmatprep.subr.bf16.mxu0 0
        %2785 = vmatpush1.bf16.msra.mxu0 %v2766
        %2786 = vmatprep.subr.bf16.mxu0 0
        %2787 = vmatpush1.bf16.msra.mxu0 %v2767
        %2788 = vmatprep.subr.bf16.mxu0 0
        %2789 = vmatpush1.bf16.msra.mxu0 %v2768
        %2790 = vmatprep.subr.bf16.mxu0 0
        %2791 = vmatpush1.bf16.msra.mxu0 %v2769
        %2792 = vmatprep.subr.bf16.mxu0 0
        %2793 = vmatpush1.bf16.msra.mxu0 %v2770
        %2794 = vmatprep.subr.bf16.mxu0 0
        %2795 = vmatpush1.bf16.msra.mxu0 %v2771
        %2796 = vmatprep.subr.bf16.mxu0 0
        %2797 = vmatpush1.bf16.msra.mxu0 0
        %2798 = vmatprep.subr.bf16.mxu0 0
        %2799 = vmatpush1.bf16.msra.mxu0 0
        %2800 = vmatprep.subr.bf16.mxu0 0
        %2801 = vmatpush1.bf16.msra.mxu0 0
        %2802 = vmatprep.subr.bf16.mxu0 0
        %2803 = vmatpush1.bf16.msra.mxu0 0
        %2804 = vmatprep.subr.bf16.mxu0 0
        %2805 = vmatpush1.bf16.msra.mxu0 0
        %2806 = vmatprep.subr.bf16.mxu0 0
        %2807 = vmatpush1.bf16.msra.mxu0 0
        %2808 = vmatprep.subr.bf16.mxu0 0
        %2809 = vmatpush1.bf16.msra.mxu0 0
        %2810 = vmatprep.subr.bf16.mxu0 0
        %2811 = vmatpush1.bf16.msra.mxu0 0
        %2812 = vmatprep.mubr.bf16.mxu0 0
        %2813 = vmatmul.mubr.bf16.gmra.mrb[0].mxu0 %v2397
        %v2814 = vpop.f32.mrb[0].mxu0
        %v2815 = vadd.f32 0.0, %v2814
        %v2816 = vpop.f32.mrb[0].mxu0
        %v2817 = vpop.f32.mrb[0].mxu0
        %v2818 = vadd.f32 0.0, %v2817
        %v2819 = vpop.f32.mrb[0].mxu0
        %2820 = vdwg.mxu0
        %v2821 = vpack.c.bf16 %v2818, %v2815
        %s2822 = scalar_lea.vmem [#allocation8], 16
        %v2823 = vld [vmem:[%s2822] sm:$0xf]
        %v2824 = vld [vmem:[%s2822 + $0x4] sm:$0xf]
        %v2827 = vunpack.c.l.b16 %v2823
        %v2828 = vunpack.c.l.b16 %v2824
        %v2829 = vpack.c.b16 %v2828, %v2827
        %v2831 = vsel %vm1603, %v2829, 0
        %2833 = vmatprep.subr.bf16.mxu0 0
        %2834 = vmatpush1.bf16.msra.mxu0 %v2821
        %2835 = vmatprep.subr.bf16.mxu0 0
        %2836 = vmatpush1.bf16.msra.mxu0 0
        %2837 = vmatprep.subr.bf16.mxu0 0
        %2838 = vmatpush1.bf16.msra.mxu0 0
        %2839 = vmatprep.subr.bf16.mxu0 0
        %2840 = vmatpush1.bf16.msra.mxu0 0
        %2841 = vmatprep.subr.bf16.mxu0 0
        %2842 = vmatpush1.bf16.msra.mxu0 0
        %2843 = vmatprep.subr.bf16.mxu0 0
        %2844 = vmatpush1.bf16.msra.mxu0 0
        %2845 = vmatprep.subr.bf16.mxu0 0
        %2846 = vmatpush1.bf16.msra.mxu0 0
        %2847 = vmatprep.subr.bf16.mxu0 0
        %2848 = vmatpush1.bf16.msra.mxu0 0
        %2849 = vmatprep.subr.bf16.mxu0 0
        %2850 = vmatpush1.bf16.msra.mxu0 0
        %2851 = vmatprep.subr.bf16.mxu0 0
        %2852 = vmatpush1.bf16.msra.mxu0 0
        %2853 = vmatprep.subr.bf16.mxu0 0
        %2854 = vmatpush1.bf16.msra.mxu0 0
        %2855 = vmatprep.subr.bf16.mxu0 0
        %2856 = vmatpush1.bf16.msra.mxu0 0
        %2857 = vmatprep.subr.bf16.mxu0 0
        %2858 = vmatpush1.bf16.msra.mxu0 0
        %2859 = vmatprep.subr.bf16.mxu0 0
        %2860 = vmatpush1.bf16.msra.mxu0 0
        %2861 = vmatprep.subr.bf16.mxu0 0
        %2862 = vmatpush1.bf16.msra.mxu0 0
        %2863 = vmatprep.subr.bf16.mxu0 0
        %2864 = vmatpush1.bf16.msra.mxu0 0
        %2865 = vmatprep.mubr.bf16.mxu0 0
        %2866 = vmatmul.mubr.bf16.gmra.mrb[0].mxu0 %v2831
        %v2867 = vpop.f32.mrb[0].mxu0
        %v2868 = vadd.f32 0.0, %v2867
        %v2869 = vpop.f32.mrb[0].mxu0
        %v2870 = vpop.f32.mrb[0].mxu0
        %v2871 = vadd.f32 0.0, %v2870
        %v2872 = vpop.f32.mrb[0].mxu0
        %2873 = vdwg.mxu0
        %v2874 = vadd.f32 %v2709, %v2868
        %v2875 = vadd.f32 %v2712, %v2871
        %2876 = vadd.xlane.f32.xlu0 %v2874
        %v2877 = vpop.xlane.xlu0 %2876
        %2878 = vadd.xlane.f32.xlu0 %v2875
        %v2879 = vpop.xlane.xlu0 %2878
        %v2880 = vmul.f32 %v2877, 0.25
        %v2881 = vmul.f32 %v2879, 0.25
        %v2882 = vmul.f32 %v2874, %v2874
        %v2883 = vmul.f32 %v2875, %v2875
        %2884 = vadd.xlane.f32.xlu0 %v2882
        %v2885 = vpop.xlane.xlu0 %2884
        %2886 = vadd.xlane.f32.xlu0 %v2883
        %v2887 = vpop.xlane.xlu0 %2886
        %v2888 = vmul.f32 %v2885, 0.25
        %v2889 = vmul.f32 %v2887, 0.25
        %v2890 = vmul.f32 %v2880, %v2880
        %v2891 = vmul.f32 %v2881, %v2881
        %v2892 = vsub.f32 %v2888, %v2890
        %v2893 = vsub.f32 %v2889, %v2891
        %v2894 = vsub.f32 %v2874, %v2880
        %v2895 = vsub.f32 %v2875, %v2881
        %v2896 = vadd.f32 %v2892, 1e-05
        %v2897 = vadd.f32 %v2893, 1e-05
        %v2898 = vrsqrt.pop %v2896
        %v2899 = vrsqrt.pop %v2897
        %v2900 = vmul.f32 %v2894, %v2898
        %v2901 = vmul.f32 %v2895, %v2899
        %vm2902 = vcmp.ge.f32.partialorder %v2900, 0.0
        %vm2903 = vcmp.ge.f32.partialorder %v2901, 0.0
        %v2904 = vmul.f32 %v2900, 0.2
        %v2905 = vmul.f32 %v2901, 0.2
        %v2906 = vsel %vm2902, %v2900, %v2904
        %v2907 = vsel %vm2903, %v2901, %v2905
        %v2908 = vpack.c.bf16 %v2907, %v2906
        %s2909 = scalar_lea.vmem [#allocation5], 960
        %v2910 = vld [vmem:[%s2909] sm:$0xf]
        %v2911 = vld [vmem:[%s2909 + $0x4] sm:$0xf]
        %v2912 = vld [vmem:[%s2909 + $0x8] sm:$0xf]
        %v2913 = vld [vmem:[%s2909 + $0xc] sm:$0xf]
        %v2914 = vld [vmem:[%s2909 + $0x10] sm:$0xf]
        %v2915 = vld [vmem:[%s2909 + $0x14] sm:$0xf]
        %v2916 = vld [vmem:[%s2909 + $0x18] sm:$0xf]
        %v2917 = vld [vmem:[%s2909 + $0x1c] sm:$0xf]
        %v2918 = vld [vmem:[%s2909 + $0x20] sm:$0xf]
        %v2919 = vld [vmem:[%s2909 + $0x24] sm:$0xf]
        %v2920 = vld [vmem:[%s2909 + $0x28] sm:$0xf]
        %v2921 = vld [vmem:[%s2909 + $0x2c] sm:$0xf]
        %v2922 = vld [vmem:[%s2909 + $0x30] sm:$0xf]
        %v2923 = vld [vmem:[%s2909 + $0x34] sm:$0xf]
        %v2924 = vld [vmem:[%s2909 + $0x38] sm:$0xf]
        %v2925 = vld [vmem:[%s2909 + $0x3c] sm:$0xf]
        %v2942 = vunpack.c.l.b16 %v2910
        %v2943 = vunpack.c.l.b16 %v2911
        %v2944 = vunpack.c.l.b16 %v2912
        %v2945 = vunpack.c.l.b16 %v2913
        %v2946 = vunpack.c.l.b16 %v2914
        %v2947 = vunpack.c.l.b16 %v2915
        %v2948 = vunpack.c.l.b16 %v2916
        %v2949 = vunpack.c.l.b16 %v2917
        %v2950 = vunpack.c.l.b16 %v2918
        %v2951 = vunpack.c.l.b16 %v2919
        %v2952 = vunpack.c.l.b16 %v2920
        %v2953 = vunpack.c.l.b16 %v2921
        %v2954 = vunpack.c.l.b16 %v2922
        %v2955 = vunpack.c.l.b16 %v2923
        %v2956 = vunpack.c.l.b16 %v2924
        %v2957 = vunpack.c.l.b16 %v2925
        %v2958 = vpack.c.b16 %v2943, %v2942
        %v2959 = vpack.c.b16 %v2945, %v2944
        %v2960 = vpack.c.b16 %v2947, %v2946
        %v2961 = vpack.c.b16 %v2949, %v2948
        %v2962 = vpack.c.b16 %v2951, %v2950
        %v2963 = vpack.c.b16 %v2953, %v2952
        %v2964 = vpack.c.b16 %v2955, %v2954
        %v2965 = vpack.c.b16 %v2957, %v2956
        %2974 = vmatprep.subr.bf16.mxu0 0
        %2975 = vmatpush1.bf16.msra.mxu0 %v2958
        %2976 = vmatprep.subr.bf16.mxu0 0
        %2977 = vmatpush1.bf16.msra.mxu0 %v2959
        %2978 = vmatprep.subr.bf16.mxu0 0
        %2979 = vmatpush1.bf16.msra.mxu0 %v2960
        %2980 = vmatprep.subr.bf16.mxu0 0
        %2981 = vmatpush1.bf16.msra.mxu0 %v2961
        %2982 = vmatprep.subr.bf16.mxu0 0
        %2983 = vmatpush1.bf16.msra.mxu0 %v2962
        %2984 = vmatprep.subr.bf16.mxu0 0
        %2985 = vmatpush1.bf16.msra.mxu0 %v2963
        %2986 = vmatprep.subr.bf16.mxu0 0
        %2987 = vmatpush1.bf16.msra.mxu0 %v2964
        %2988 = vmatprep.subr.bf16.mxu0 0
        %2989 = vmatpush1.bf16.msra.mxu0 %v2965
        %2990 = vmatprep.subr.bf16.mxu0 0
        %2991 = vmatpush1.bf16.msra.mxu0 0
        %2992 = vmatprep.subr.bf16.mxu0 0
        %2993 = vmatpush1.bf16.msra.mxu0 0
        %2994 = vmatprep.subr.bf16.mxu0 0
        %2995 = vmatpush1.bf16.msra.mxu0 0
        %2996 = vmatprep.subr.bf16.mxu0 0
        %2997 = vmatpush1.bf16.msra.mxu0 0
        %2998 = vmatprep.subr.bf16.mxu0 0
        %2999 = vmatpush1.bf16.msra.mxu0 0
        %3000 = vmatprep.subr.bf16.mxu0 0
        %3001 = vmatpush1.bf16.msra.mxu0 0
        %3002 = vmatprep.subr.bf16.mxu0 0
        %3003 = vmatpush1.bf16.msra.mxu0 0
        %3004 = vmatprep.subr.bf16.mxu0 0
        %3005 = vmatpush1.bf16.msra.mxu0 0
        %3006 = vmatprep.mubr.bf16.mxu0 0
        %3007 = vmatmul.mubr.bf16.gmra.mrb[0].mxu0 %v2908
        %v3008 = vpop.f32.mrb[0].mxu0
        %v3009 = vadd.f32 0.0, %v3008
        %v3010 = vpop.f32.mrb[0].mxu0
        %v3011 = vpop.f32.mrb[0].mxu0
        %v3012 = vadd.f32 0.0, %v3011
        %v3013 = vpop.f32.mrb[0].mxu0
        %3014 = vdwg.mxu0
        %v3015 = vpack.c.bf16 %v3012, %v3009
        %v3016 = vld [vmem:[#allocation10] sm:$0xf]
        %v3017 = vld [vmem:[#allocation10 + $0x4] sm:$0xf]
        %s3018 = scalar_lea.vmem [#allocation5], 1024
        %v3019 = vld [vmem:[%s3018] sm:$0xf]
        %v3020 = vld [vmem:[%s3018 + $0x4] sm:$0xf]
        %v3021 = vld [vmem:[%s3018 + $0x8] sm:$0xf]
        %v3022 = vld [vmem:[%s3018 + $0xc] sm:$0xf]
        %v3023 = vld [vmem:[%s3018 + $0x10] sm:$0xf]
        %v3024 = vld [vmem:[%s3018 + $0x14] sm:$0xf]
        %v3025 = vld [vmem:[%s3018 + $0x18] sm:$0xf]
        %v3026 = vld [vmem:[%s3018 + $0x1c] sm:$0xf]
        %v3027 = vld [vmem:[%s3018 + $0x20] sm:$0xf]
        %v3028 = vld [vmem:[%s3018 + $0x24] sm:$0xf]
        %v3029 = vld [vmem:[%s3018 + $0x28] sm:$0xf]
        %v3030 = vld [vmem:[%s3018 + $0x2c] sm:$0xf]
        %v3031 = vld [vmem:[%s3018 + $0x30] sm:$0xf]
        %v3032 = vld [vmem:[%s3018 + $0x34] sm:$0xf]
        %v3033 = vld [vmem:[%s3018 + $0x38] sm:$0xf]
        %v3034 = vld [vmem:[%s3018 + $0x3c] sm:$0xf]
        %v3051 = vunpack.c.l.b16 %v3019
        %v3052 = vunpack.c.l.b16 %v3020
        %v3053 = vunpack.c.l.b16 %v3021
        %v3054 = vunpack.c.l.b16 %v3022
        %v3055 = vunpack.c.l.b16 %v3023
        %v3056 = vunpack.c.l.b16 %v3024
        %v3057 = vunpack.c.l.b16 %v3025
        %v3058 = vunpack.c.l.b16 %v3026
        %v3059 = vunpack.c.l.b16 %v3027
        %v3060 = vunpack.c.l.b16 %v3028
        %v3061 = vunpack.c.l.b16 %v3029
        %v3062 = vunpack.c.l.b16 %v3030
        %v3063 = vunpack.c.l.b16 %v3031
        %v3064 = vunpack.c.l.b16 %v3032
        %v3065 = vunpack.c.l.b16 %v3033
        %v3066 = vunpack.c.l.b16 %v3034
        %v3067 = vpack.c.b16 %v3052, %v3051
        %v3068 = vpack.c.b16 %v3054, %v3053
        %v3069 = vpack.c.b16 %v3056, %v3055
        %v3070 = vpack.c.b16 %v3058, %v3057
        %v3071 = vpack.c.b16 %v3060, %v3059
        %v3072 = vpack.c.b16 %v3062, %v3061
        %v3073 = vpack.c.b16 %v3064, %v3063
        %v3074 = vpack.c.b16 %v3066, %v3065
        %3083 = vmatprep.subr.bf16.mxu0 0
        %3084 = vmatpush1.bf16.msra.mxu0 %v3067
        %3085 = vmatprep.subr.bf16.mxu0 0
        %3086 = vmatpush1.bf16.msra.mxu0 %v3068
        %3087 = vmatprep.subr.bf16.mxu0 0
        %3088 = vmatpush1.bf16.msra.mxu0 %v3069
        %3089 = vmatprep.subr.bf16.mxu0 0
        %3090 = vmatpush1.bf16.msra.mxu0 %v3070
        %3091 = vmatprep.subr.bf16.mxu0 0
        %3092 = vmatpush1.bf16.msra.mxu0 %v3071
        %3093 = vmatprep.subr.bf16.mxu0 0
        %3094 = vmatpush1.bf16.msra.mxu0 %v3072
        %3095 = vmatprep.subr.bf16.mxu0 0
        %3096 = vmatpush1.bf16.msra.mxu0 %v3073
        %3097 = vmatprep.subr.bf16.mxu0 0
        %3098 = vmatpush1.bf16.msra.mxu0 %v3074
        %3099 = vmatprep.subr.bf16.mxu0 0
        %3100 = vmatpush1.bf16.msra.mxu0 0
        %3101 = vmatprep.subr.bf16.mxu0 0
        %3102 = vmatpush1.bf16.msra.mxu0 0
        %3103 = vmatprep.subr.bf16.mxu0 0
        %3104 = vmatpush1.bf16.msra.mxu0 0
        %3105 = vmatprep.subr.bf16.mxu0 0
        %3106 = vmatpush1.bf16.msra.mxu0 0
        %3107 = vmatprep.subr.bf16.mxu0 0
        %3108 = vmatpush1.bf16.msra.mxu0 0
        %3109 = vmatprep.subr.bf16.mxu0 0
        %3110 = vmatpush1.bf16.msra.mxu0 0
        %3111 = vmatprep.subr.bf16.mxu0 0
        %3112 = vmatpush1.bf16.msra.mxu0 0
        %3113 = vmatprep.subr.bf16.mxu0 0
        %3114 = vmatpush1.bf16.msra.mxu0 0
        %3115 = vmatprep.mubr.bf16.mxu0 0
        %3116 = vmatmul.mubr.bf16.gmra.mrb[0].mxu0 %v2908
        %v3117 = vpop.f32.mrb[0].mxu0
        %v3118 = vadd.f32 0.0, %v3117
        %v3119 = vpop.f32.mrb[0].mxu0
        %v3120 = vpop.f32.mrb[0].mxu0
        %v3121 = vadd.f32 0.0, %v3120
        %v3122 = vpop.f32.mrb[0].mxu0
        %3123 = vdwg.mxu0
        %v3124 = vpack.c.bf16 %v3121, %v3118
        %s3125 = scalar_lea.vmem [#allocation10], 8
        %v3126 = vld [vmem:[%s3125] sm:$0xf]
        %v3127 = vld [vmem:[%s3125 + $0x4] sm:$0xf]
        %v3130 = vunpack.c.l.b16 %v3126
        %v3131 = vunpack.c.l.b16 %v3127
        %v3132 = vpack.c.b16 %v3131, %v3130
        %v3134 = vsel %vm1603, %v3132, 0
        %3136 = vmatprep.subr.bf16.mxu0 0
        %3137 = vmatpush1.bf16.msra.mxu0 %v3124
        %3138 = vmatprep.subr.bf16.mxu0 0
        %3139 = vmatpush1.bf16.msra.mxu0 0
        %3140 = vmatprep.subr.bf16.mxu0 0
        %3141 = vmatpush1.bf16.msra.mxu0 0
        %3142 = vmatprep.subr.bf16.mxu0 0
        %3143 = vmatpush1.bf16.msra.mxu0 0
        %3144 = vmatprep.subr.bf16.mxu0 0
        %3145 = vmatpush1.bf16.msra.mxu0 0
        %3146 = vmatprep.subr.bf16.mxu0 0
        %3147 = vmatpush1.bf16.msra.mxu0 0
        %3148 = vmatprep.subr.bf16.mxu0 0
        %3149 = vmatpush1.bf16.msra.mxu0 0
        %3150 = vmatprep.subr.bf16.mxu0 0
        %3151 = vmatpush1.bf16.msra.mxu0 0
        %3152 = vmatprep.subr.bf16.mxu0 0
        %3153 = vmatpush1.bf16.msra.mxu0 0
        %3154 = vmatprep.subr.bf16.mxu0 0
        %3155 = vmatpush1.bf16.msra.mxu0 0
        %3156 = vmatprep.subr.bf16.mxu0 0
        %3157 = vmatpush1.bf16.msra.mxu0 0
        %3158 = vmatprep.subr.bf16.mxu0 0
        %3159 = vmatpush1.bf16.msra.mxu0 0
        %3160 = vmatprep.subr.bf16.mxu0 0
        %3161 = vmatpush1.bf16.msra.mxu0 0
        %3162 = vmatprep.subr.bf16.mxu0 0
        %3163 = vmatpush1.bf16.msra.mxu0 0
        %3164 = vmatprep.subr.bf16.mxu0 0
        %3165 = vmatpush1.bf16.msra.mxu0 0
        %3166 = vmatprep.subr.bf16.mxu0 0
        %3167 = vmatpush1.bf16.msra.mxu0 0
        %3168 = vmatprep.mubr.bf16.mxu0 0
        %3169 = vmatmul.mubr.bf16.gmra.mrb[0].mxu0 %v3134
        %v3170 = vpop.f32.mrb[0].mxu0
        %v3171 = vadd.f32 0.0, %v3170
        %v3172 = vpop.f32.mrb[0].mxu0
        %v3173 = vpop.f32.mrb[0].mxu0
        %v3174 = vadd.f32 0.0, %v3173
        %v3175 = vpop.f32.mrb[0].mxu0
        %3176 = vdwg.mxu0
        %v3179 = vunpack.c.l.b16 %v3016
        %v3180 = vunpack.c.l.b16 %v3017
        %v3181 = vpack.c.b16 %v3180, %v3179
        %v3183 = vsel %vm1603, %v3181, 0
        %3185 = vmatprep.subr.bf16.mxu0 0
        %3186 = vmatpush1.bf16.msra.mxu0 %v3015
        %3187 = vmatprep.subr.bf16.mxu0 0
        %3188 = vmatpush1.bf16.msra.mxu0 0
        %3189 = vmatprep.subr.bf16.mxu0 0
        %3190 = vmatpush1.bf16.msra.mxu0 0
        %3191 = vmatprep.subr.bf16.mxu0 0
        %3192 = vmatpush1.bf16.msra.mxu0 0
        %3193 = vmatprep.subr.bf16.mxu0 0
        %3194 = vmatpush1.bf16.msra.mxu0 0
        %3195 = vmatprep.subr.bf16.mxu0 0
        %3196 = vmatpush1.bf16.msra.mxu0 0
        %3197 = vmatprep.subr.bf16.mxu0 0
        %3198 = vmatpush1.bf16.msra.mxu0 0
        %3199 = vmatprep.subr.bf16.mxu0 0
        %3200 = vmatpush1.bf16.msra.mxu0 0
        %3201 = vmatprep.subr.bf16.mxu0 0
        %3202 = vmatpush1.bf16.msra.mxu0 0
        %3203 = vmatprep.subr.bf16.mxu0 0
        %3204 = vmatpush1.bf16.msra.mxu0 0
        %3205 = vmatprep.subr.bf16.mxu0 0
        %3206 = vmatpush1.bf16.msra.mxu0 0
        %3207 = vmatprep.subr.bf16.mxu0 0
        %3208 = vmatpush1.bf16.msra.mxu0 0
        %3209 = vmatprep.subr.bf16.mxu0 0
        %3210 = vmatpush1.bf16.msra.mxu0 0
        %3211 = vmatprep.subr.bf16.mxu0 0
        %3212 = vmatpush1.bf16.msra.mxu0 0
        %3213 = vmatprep.subr.bf16.mxu0 0
        %3214 = vmatpush1.bf16.msra.mxu0 0
        %3215 = vmatprep.subr.bf16.mxu0 0
        %3216 = vmatpush1.bf16.msra.mxu0 0
        %3217 = vmatprep.mubr.bf16.mxu0 0
        %3218 = vmatmul.mubr.bf16.gmra.mrb[0].mxu0 %v3183
        %v3219 = vpop.f32.mrb[0].mxu0
        %v3220 = vadd.f32 %v3171, %v3219
        %v3221 = vpop.f32.mrb[0].mxu0
        %v3222 = vpop.f32.mrb[0].mxu0
        %v3223 = vadd.f32 %v3174, %v3222
        %v3224 = vpop.f32.mrb[0].mxu0
        %3225 = vdwg.mxu0
        %s3226 = scalar_lea.vmem [#allocation5], 1088
        %v3227 = vld [vmem:[%s3226] sm:$0xf]
        %v3228 = vld [vmem:[%s3226 + $0x4] sm:$0xf]
        %v3229 = vld [vmem:[%s3226 + $0x8] sm:$0xf]
        %v3230 = vld [vmem:[%s3226 + $0xc] sm:$0xf]
        %v3231 = vld [vmem:[%s3226 + $0x10] sm:$0xf]
        %v3232 = vld [vmem:[%s3226 + $0x14] sm:$0xf]
        %v3233 = vld [vmem:[%s3226 + $0x18] sm:$0xf]
        %v3234 = vld [vmem:[%s3226 + $0x1c] sm:$0xf]
        %v3235 = vld [vmem:[%s3226 + $0x20] sm:$0xf]
        %v3236 = vld [vmem:[%s3226 + $0x24] sm:$0xf]
        %v3237 = vld [vmem:[%s3226 + $0x28] sm:$0xf]
        %v3238 = vld [vmem:[%s3226 + $0x2c] sm:$0xf]
        %v3239 = vld [vmem:[%s3226 + $0x30] sm:$0xf]
        %v3240 = vld [vmem:[%s3226 + $0x34] sm:$0xf]
        %v3241 = vld [vmem:[%s3226 + $0x38] sm:$0xf]
        %v3242 = vld [vmem:[%s3226 + $0x3c] sm:$0xf]
        %v3259 = vunpack.c.l.b16 %v3227
        %v3260 = vunpack.c.l.b16 %v3228
        %v3261 = vunpack.c.l.b16 %v3229
        %v3262 = vunpack.c.l.b16 %v3230
        %v3263 = vunpack.c.l.b16 %v3231
        %v3264 = vunpack.c.l.b16 %v3232
        %v3265 = vunpack.c.l.b16 %v3233
        %v3266 = vunpack.c.l.b16 %v3234
        %v3267 = vunpack.c.l.b16 %v3235
        %v3268 = vunpack.c.l.b16 %v3236
        %v3269 = vunpack.c.l.b16 %v3237
        %v3270 = vunpack.c.l.b16 %v3238
        %v3271 = vunpack.c.l.b16 %v3239
        %v3272 = vunpack.c.l.b16 %v3240
        %v3273 = vunpack.c.l.b16 %v3241
        %v3274 = vunpack.c.l.b16 %v3242
        %v3275 = vpack.c.b16 %v3260, %v3259
        %v3276 = vpack.c.b16 %v3262, %v3261
        %v3277 = vpack.c.b16 %v3264, %v3263
        %v3278 = vpack.c.b16 %v3266, %v3265
        %v3279 = vpack.c.b16 %v3268, %v3267
        %v3280 = vpack.c.b16 %v3270, %v3269
        %v3281 = vpack.c.b16 %v3272, %v3271
        %v3282 = vpack.c.b16 %v3274, %v3273
        %3291 = vmatprep.subr.bf16.mxu0 0
        %3292 = vmatpush1.bf16.msra.mxu0 %v3275
        %3293 = vmatprep.subr.bf16.mxu0 0
        %3294 = vmatpush1.bf16.msra.mxu0 %v3276
        %3295 = vmatprep.subr.bf16.mxu0 0
        %3296 = vmatpush1.bf16.msra.mxu0 %v3277
        %3297 = vmatprep.subr.bf16.mxu0 0
        %3298 = vmatpush1.bf16.msra.mxu0 %v3278
        %3299 = vmatprep.subr.bf16.mxu0 0
        %3300 = vmatpush1.bf16.msra.mxu0 %v3279
        %3301 = vmatprep.subr.bf16.mxu0 0
        %3302 = vmatpush1.bf16.msra.mxu0 %v3280
        %3303 = vmatprep.subr.bf16.mxu0 0
        %3304 = vmatpush1.bf16.msra.mxu0 %v3281
        %3305 = vmatprep.subr.bf16.mxu0 0
        %3306 = vmatpush1.bf16.msra.mxu0 %v3282
        %3307 = vmatprep.subr.bf16.mxu0 0
        %3308 = vmatpush1.bf16.msra.mxu0 0
        %3309 = vmatprep.subr.bf16.mxu0 0
        %3310 = vmatpush1.bf16.msra.mxu0 0
        %3311 = vmatprep.subr.bf16.mxu0 0
        %3312 = vmatpush1.bf16.msra.mxu0 0
        %3313 = vmatprep.subr.bf16.mxu0 0
        %3314 = vmatpush1.bf16.msra.mxu0 0
        %3315 = vmatprep.subr.bf16.mxu0 0
        %3316 = vmatpush1.bf16.msra.mxu0 0
        %3317 = vmatprep.subr.bf16.mxu0 0
        %3318 = vmatpush1.bf16.msra.mxu0 0
        %3319 = vmatprep.subr.bf16.mxu0 0
        %3320 = vmatpush1.bf16.msra.mxu0 0
        %3321 = vmatprep.subr.bf16.mxu0 0
        %3322 = vmatpush1.bf16.msra.mxu0 0
        %3323 = vmatprep.mubr.bf16.mxu0 0
        %3324 = vmatmul.mubr.bf16.gmra.mrb[0].mxu0 %v2908
        %v3325 = vpop.f32.mrb[0].mxu0
        %v3326 = vadd.f32 0.0, %v3325
        %v3327 = vpop.f32.mrb[0].mxu0
        %v3328 = vpop.f32.mrb[0].mxu0
        %v3329 = vadd.f32 0.0, %v3328
        %v3330 = vpop.f32.mrb[0].mxu0
        %3331 = vdwg.mxu0
        %v3332 = vpack.c.bf16 %v3329, %v3326
        %s3333 = scalar_lea.vmem [#allocation10], 16
        %v3334 = vld [vmem:[%s3333] sm:$0xf]
        %v3335 = vld [vmem:[%s3333 + $0x4] sm:$0xf]
        %v3338 = vunpack.c.l.b16 %v3334
        %v3339 = vunpack.c.l.b16 %v3335
        %v3340 = vpack.c.b16 %v3339, %v3338
        %v3342 = vsel %vm1603, %v3340, 0
        %3344 = vmatprep.subr.bf16.mxu0 0
        %3345 = vmatpush1.bf16.msra.mxu0 %v3332
        %3346 = vmatprep.subr.bf16.mxu0 0
        %3347 = vmatpush1.bf16.msra.mxu0 0
        %3348 = vmatprep.subr.bf16.mxu0 0
        %3349 = vmatpush1.bf16.msra.mxu0 0
        %3350 = vmatprep.subr.bf16.mxu0 0
        %3351 = vmatpush1.bf16.msra.mxu0 0
        %3352 = vmatprep.subr.bf16.mxu0 0
        %3353 = vmatpush1.bf16.msra.mxu0 0
        %3354 = vmatprep.subr.bf16.mxu0 0
        %3355 = vmatpush1.bf16.msra.mxu0 0
        %3356 = vmatprep.subr.bf16.mxu0 0
        %3357 = vmatpush1.bf16.msra.mxu0 0
        %3358 = vmatprep.subr.bf16.mxu0 0
        %3359 = vmatpush1.bf16.msra.mxu0 0
        %3360 = vmatprep.subr.bf16.mxu0 0
        %3361 = vmatpush1.bf16.msra.mxu0 0
        %3362 = vmatprep.subr.bf16.mxu0 0
        %3363 = vmatpush1.bf16.msra.mxu0 0
        %3364 = vmatprep.subr.bf16.mxu0 0
        %3365 = vmatpush1.bf16.msra.mxu0 0
        %3366 = vmatprep.subr.bf16.mxu0 0
        %3367 = vmatpush1.bf16.msra.mxu0 0
        %3368 = vmatprep.subr.bf16.mxu0 0
        %3369 = vmatpush1.bf16.msra.mxu0 0
        %3370 = vmatprep.subr.bf16.mxu0 0
        %3371 = vmatpush1.bf16.msra.mxu0 0
        %3372 = vmatprep.subr.bf16.mxu0 0
        %3373 = vmatpush1.bf16.msra.mxu0 0
        %3374 = vmatprep.subr.bf16.mxu0 0
        %3375 = vmatpush1.bf16.msra.mxu0 0
        %3376 = vmatprep.mubr.bf16.mxu0 0
        %3377 = vmatmul.mubr.bf16.gmra.mrb[0].mxu0 %v3342
        %v3378 = vpop.f32.mrb[0].mxu0
        %v3379 = vadd.f32 0.0, %v3378
        %v3380 = vpop.f32.mrb[0].mxu0
        %v3381 = vpop.f32.mrb[0].mxu0
        %v3382 = vadd.f32 0.0, %v3381
        %v3383 = vpop.f32.mrb[0].mxu0
        %3384 = vdwg.mxu0
        %v3385 = vadd.f32 %v3220, %v3379
        %v3386 = vadd.f32 %v3223, %v3382
        %3387 = vadd.xlane.f32.xlu0 %v3385
        %v3388 = vpop.xlane.xlu0 %3387
        %3389 = vadd.xlane.f32.xlu0 %v3386
        %v3390 = vpop.xlane.xlu0 %3389
        %v3391 = vmul.f32 %v3388, 0.25
        %v3392 = vmul.f32 %v3390, 0.25
        %v3393 = vmul.f32 %v3385, %v3385
        %v3394 = vmul.f32 %v3386, %v3386
        %3395 = vadd.xlane.f32.xlu0 %v3393
        %v3396 = vpop.xlane.xlu0 %3395
        %3397 = vadd.xlane.f32.xlu0 %v3394
        %v3398 = vpop.xlane.xlu0 %3397
        %v3399 = vmul.f32 %v3396, 0.25
        %v3400 = vmul.f32 %v3398, 0.25
        %v3401 = vmul.f32 %v3391, %v3391
        %v3402 = vmul.f32 %v3392, %v3392
        %v3403 = vsub.f32 %v3399, %v3401
        %v3404 = vsub.f32 %v3400, %v3402
        %v3405 = vsub.f32 %v3385, %v3391
        %v3406 = vsub.f32 %v3386, %v3392
        %v3407 = vadd.f32 %v3403, 1e-05
        %v3408 = vadd.f32 %v3404, 1e-05
        %v3409 = vrsqrt.pop %v3407
        %v3410 = vrsqrt.pop %v3408
        %v3411 = vmul.f32 %v3405, %v3409
        %v3412 = vmul.f32 %v3406, %v3410
        %v3413 = vadd.f32 %v3411, %v2395
        %v3414 = vadd.f32 %v3412, %v2396
        %3415 = vst [vmem:[%s378] sm:$0xff] %v3413
        %3416 = vst [vmem:[%s378 + $0x8] sm:$0xff] %v3414
        %s3417 = sand.u32 %s208, 1
        %s3418 = scalar_lea.sflag [#allocation4], %s3417
        %s3419 = sand.u32 %s208, 1
        %s3420 = smul.addr %s3419, 16
        %s3421 = scalar_lea.vmem [#allocation11], %s3420
        // Predicated region
        $region73: #{tpu_custom_call.1} parent=51 // pred_check
          %p3422 = pneg %p218
        $region74: #{tpu_custom_call.1} parent=51 // pred_check_branch
          %3424 = sbr.rel (%p3422) target = $region76
        $region75: #{tpu_custom_call.1} parent=51 // pred_region
          %s3426 = ssub.s32 256, 256
          %3427 = vsyncadd %s3418, %s3426
          %s3428 = smul.addr %s27, 2
          %s3429 = smul.addr %s3428, 128
          %s3430 = scalar_lea.hbm %s8, %s3429
          %s3431 = sshll.u32 %s3421, 4
          %s3432 = int_to_ptr.vmem [resolvable:$true] %s3431
          %3437 = dma.vmem_to_hbm [thread:$0]  %s3432, 256, %s3430, %s3418, 128, 128, 8
        $region76: #{tpu_custom_call.1} parent=51 // pred_fallthru
          _
      $region52: #{tpu_custom_call.1} parent=5 // pred_fallthru
        _
      %p3438 = scmp.le.s32.totalorder 2, %s22
      // Predicated region
      $region77: #{tpu_custom_call.1} parent=5 // pred_check
        %p3439 = pneg %p3438
      $region78: #{tpu_custom_call.1} parent=5 // pred_check_branch
        %3441 = sbr.rel (%p3439) target = $region80
      $region79: #{tpu_custom_call.1} parent=5 // pred_region
        %s3442 = ssub.s32 %s22, 2
        // Predicated region
        $region81: #{tpu_custom_call.1} parent=79 // pred_check
          %p3443 = pneg %p224
        $region82: #{tpu_custom_call.1} parent=79 // pred_check_branch
          %3445 = sbr.rel (%p3443) target = $region84
        $region83: #{tpu_custom_call.1} parent=79 // pred_region
          %s3446 = sand.u32 %s209, 1
          %s3447 = scalar_lea.sflag [#allocation4], %s3446
          %s3448 = sand.u32 %s209, 1
          %s3449 = smul.addr %s3448, 16
          %s3450 = scalar_lea.vmem [#allocation11], %s3449
          %3451 = dma.done %s3447, 256
        $region84: #{tpu_custom_call.1} parent=79 // pred_fallthru
          _
      $region80: #{tpu_custom_call.1} parent=5 // pred_fallthru
        _
    $region6: #{tpu_custom_call.1} parent=1 // loop_footer
      %s26 = sadd.s32 1, %s22
    $region7: #{tpu_custom_call.1} parent=1 // loop_footer_branch
      %21 = sbr.rel target = $region3
    $region8: #{tpu_custom_call.1} parent=1 // loop_exit
      _
    %3452 = vsyncpa [#allocation3], 1
    %s3453 = scalar_lea.sflag [#allocation3], 1
    %3454 = vsyncpa %s3453, 1
    %3455 = vsyncpa [#allocation6], 1
    %3456 = vsyncpa [#allocation9], 1
    %3457 = vsyncpa [#allocation4], 1
    %s3458 = scalar_lea.sflag [#allocation4], 1
    %3459 = vsyncpa %s3458, 1

</llo_original>
